<compile_context>
chip_gen: v7x
topology: tpu7x:2x2x1
jax: 0.10.0
libtpu: 0.0.40
codegen_flags: <defaults>
</compile_context>

<pallas_src>
import jax
import jax.numpy as jnp
from jax.experimental import pallas as pl
from jax.experimental.pallas import tpu as pltpu

HIDDEN = 128
CPAD = 128          # lane-padded class dimension for the FC/softmax epilogue
FPAD = 8            # sublane-padded input-feature dimension (3 -> 8)
NEG_BIG = -1e30     # logit value for padded class lanes (exp -> 0)


# -----------------------------------------------------------------------------
# Fused forward kernel: lstm1 + lstm2 + dropout + fc + softmax in one call.
# -----------------------------------------------------------------------------
def fused_forward_kernel(x_ref, wih1_ref, whh1_ref, b1_ref,
                         w2_ref, b2_ref, wfc_ref, bfc_ref,
                         h0_ref, c0_ref, keep_ref, out_ref):
    H = HIDDEN
    Bp = h0_ref.shape[0]
    T = x_ref.shape[0] // Bp

    def gate_split(gates):
        # PyTorch LSTM gate order: [i, f, g, o]; slices are 128-lane aligned.
        i_g = jax.nn.sigmoid(gates[:, 0 * H:1 * H])
        f_g = jax.nn.sigmoid(gates[:, 1 * H:2 * H])
        g_g = jnp.tanh(gates[:, 2 * H:3 * H])
        o_g = jax.nn.sigmoid(gates[:, 3 * H:4 * H])
        return i_g, f_g, g_g, o_g

    # ---- layer 1: hoisted input projection (one batched matmul, off the
    #      per-step dependent chain) -------------------------------------------
    xg1 = jnp.dot(x_ref[...], wih1_ref[...],
                  preferred_element_type=jnp.float32) + b1_ref[...]   # (T*Bp, 4H)

    whh1 = whh1_ref[...]                                              # bf16 (H, 4H)
    h1 = h0_ref[...]
    c1 = c0_ref[...]
    h1_seq = []
    # T is small & static -> plain Python loop == full unroll; per-step values
    # (h1, and the 8 saved hidden states) stay in vregs, no scratch traffic.
    # TODO(synk): partial unroll / grid over the time axis for production T.
    for t in range(T):
        gates = xg1[t * Bp:(t + 1) * Bp, :] + jnp.dot(
            h1.astype(jnp.bfloat16), whh1, preferred_element_type=jnp.float32)
        i_g, f_g, g_g, o_g = gate_split(gates)
        c1 = f_g * c1 + i_g * g_g
        h1 = o_g * jnp.tanh(c1)
        h1_seq.append(h1)

    # ---- layer 2: initial state = layer-1 FINAL state (per the module);
    #      fused input+recurrent projection, K = 256 ---------------------------
    w2 = w2_ref[...]                                                  # bf16 (2H, 4H)
    b2 = b2_ref[...]
    h2 = h1
    c2 = c1
    for t in range(T):
        inp = jnp.concatenate(
            [h1_seq[t].astype(jnp.bfloat16), h2.astype(jnp.bfloat16)], axis=-1)
        gates = jnp.dot(inp, w2, preferred_element_type=jnp.float32) + b2
        i_g, f_g, g_g, o_g = gate_split(gates)
        c2 = f_g * c2 + i_g * g_g
        h2 = o_g * jnp.tanh(c2)

    # ---- dropout(p=0.5) on the last hidden state -----------------------------
    # out[:, -1, :] of lstm2 == h2; keep mask is 0/1, the 1/(1-p)=2 scale is
    # folded into w_fc host-side.
    x_drop = h2 * keep_ref[...]

    # ---- fc + softmax over the lane-padded (128-wide) class dimension --------
    logits = jnp.dot(x_drop, wfc_ref[...],
                     preferred_element_type=jnp.float32) + bfc_ref[...]
    m = jnp.max(logits, axis=-1, keepdims=True)
    e = jnp.exp(logits - m)                       # padded lanes -> exactly 0
    out_ref[...] = (e / jnp.sum(e, axis=-1, keepdims=True)).astype(out_ref.dtype)


# -----------------------------------------------------------------------------
# Parameter construction (deterministic, mimics PyTorch uniform(-1/sqrt(H), ..))
# Weights are stored pre-transposed for right-multiplication: (F, 4H), (H, 4H).
# -----------------------------------------------------------------------------
def init_params(key, num_classes):
    H = HIDDEN
    bound = 1.0 / jnp.sqrt(jnp.float32(H))
    ks = jax.random.split(key, 10)

    def u(k, shape):
        return jax.random.uniform(k, shape, jnp.float32, -bound, bound)

    return {
        # lstm1: input_size=3
        "w_ih1": u(ks[0], (3, 4 * H)),
        "w_hh1": u(ks[1], (H, 4 * H)),
        "b1":    u(ks[2], (1, 4 * H)) + u(ks[3], (1, 4 * H)),   # bias_ih+bias_hh
        # lstm2: input_size=128
        "w_ih2": u(ks[4], (H, 4 * H)),
        "w_hh2": u(ks[5], (H, 4 * H)),
        "b2":    u(ks[6], (1, 4 * H)) + u(ks[7], (1, 4 * H)),
        # fc: Linear(128 -> num_classes)
        "w_fc":  u(ks[8], (H, num_classes)),
        "b_fc":  u(ks[9], (1, num_classes)),
    }


# -----------------------------------------------------------------------------
# Full forward pass: one fused pallas_call.
# -----------------------------------------------------------------------------
def model_forward(x, params, key):
    """x: (B, 3, T) float32 (PyTorch NCT layout). Returns (B, num_classes)."""
    B, Fin, T = x.shape
    C = params["w_fc"].shape[1]
    Bp = ((B + 7) // 8) * 8                 # pad batch to a full sublane tile

    k_h, k_c, k_drop = jax.random.split(key, 3)

    # One transpose: (B, 3, T) -> time-major (T, B, 3); pad batch rows and the
    # 3 input features to 8; flatten to a single (T*Bp, 8) LHS slab.
    x_tbf = jnp.transpose(x, (2, 0, 1))
    x_tbf = jnp.pad(x_tbf, ((0, 0), (0, Bp - B), (0, FPAD - Fin)))
    x_flat = x_tbf.reshape(T * Bp, FPAD)

    # torch.randn initial states, reproduced deterministically with JAX keys.
    # TODO(synk): bitwise parity with torch's RNG stream is not reproducible.
    h0 = jnp.pad(jax.random.normal(k_h, (B, HIDDEN), jnp.float32),
                 ((0, Bp - B), (0, 0)))
    c0 = jnp.pad(jax.random.normal(k_c, (B, HIDDEN), jnp.float32),
                 ((0, Bp - B), (0, 0)))

    # Host-side dropout keep-mask: Bernoulli(0.5) from the full key stream
    # (only the last timestep feeds the FC, so only its mask is needed).
    keep = jax.random.bernoulli(k_drop, 0.5, (Bp, HIDDEN)).astype(jnp.float32)

    # Weight prep (host-side, constant-foldable under jit):
    w_ih1 = jnp.pad(params["w_ih1"], ((0, FPAD - Fin), (0, 0)))       # (8, 4H) f32
    w_hh1 = params["w_hh1"].astype(jnp.bfloat16)                      # (H, 4H)
    w2 = jnp.concatenate([params["w_ih2"], params["w_hh2"]],
                         axis=0).astype(jnp.bfloat16)                 # (2H, 4H)
    # Fold the dropout 1/(1-p)=2 scale into the FC weight; lane-pad classes.
    w_fc = jnp.pad(params["w_fc"] * 2.0, ((0, 0), (0, CPAD - C)))
    b_fc = jnp.pad(params["b_fc"], ((0, 0), (0, CPAD - C)),
                   constant_values=NEG_BIG)

    vmem = pl.BlockSpec(memory_space=pltpu.MemorySpace.VMEM)

    out_pad = pl.pallas_call(
        fused_forward_kernel,
        out_shape=jax.ShapeDtypeStruct((Bp, CPAD), jnp.float32),
        in_specs=[vmem] * 11,
        out_specs=vmem,
    )(x_flat, w_ih1, w_hh1, params["b1"],
      w2, params["b2"], w_fc, b_fc, h0, c0, keep)

    return out_pad[:B, :C]


if __name__ == "__main__":
    key = jax.random.PRNGKey(0)
    k_param, k_x, k_fwd = jax.random.split(key, 3)

    num_classes = 6
    B, C_in, T = 2, 3, 8                    # small synthetic shapes
    params = init_params(k_param, num_classes)
    x = jax.random.normal(k_x, (B, C_in, T), jnp.float32)

    out = jax.block_until_ready(model_forward(x, params, k_fwd))

    assert out.shape == (B, num_classes)
    assert bool(jnp.all(out >= 0.0))
    assert bool(jnp.allclose(jnp.sum(out, axis=1), 1.0, atol=1e-5))   # softmax rows
    print("KERNEL_OK")
</pallas_src>

<mosaic_0001>
module attributes {stable_mosaic.version = 11 : i64} {
  func.func @fused_forward_kernel(%arg0: memref<64x8xf32, #tpu.memory_space<vmem>>, %arg1: memref<8x512xf32, #tpu.memory_space<vmem>>, %arg2: memref<128x512xbf16, #tpu.memory_space<vmem>>, %arg3: memref<1x512xf32, #tpu.memory_space<vmem>>, %arg4: memref<256x512xbf16, #tpu.memory_space<vmem>>, %arg5: memref<1x512xf32, #tpu.memory_space<vmem>>, %arg6: memref<128x128xf32, #tpu.memory_space<vmem>>, %arg7: memref<1x128xf32, #tpu.memory_space<vmem>>, %arg8: memref<8x128xf32, #tpu.memory_space<vmem>>, %arg9: memref<8x128xf32, #tpu.memory_space<vmem>>, %arg10: memref<8x128xf32, #tpu.memory_space<vmem>>, %arg11: memref<8x128xf32, #tpu.memory_space<vmem>>) attributes {dimension_semantics = [], scalar_prefetch = 0 : i64, scratch_operands = 0 : i64, tpu.core_type = #tpu.core_type<tc>} {
    %c0 = arith.constant 0 : index
    %c0_0 = arith.constant 0 : index
    %0 = vector.load %arg0[%c0, %c0_0] : memref<64x8xf32, #tpu.memory_space<vmem>>, vector<64x8xf32>
    %c0_1 = arith.constant 0 : index
    %c0_2 = arith.constant 0 : index
    %1 = vector.load %arg1[%c0_1, %c0_2] : memref<8x512xf32, #tpu.memory_space<vmem>>, vector<8x512xf32>
    %cst = arith.constant dense<0.000000e+00> : vector<64x512xf32>
    %2 = tpu.matmul %0, %1, %cst {dimension_numbers = #tpu.dot_dimension_numbers<[1], [0], [0], [1], [0, 0, 1, 1], [], []>} : vector<64x8xf32>, vector<8x512xf32>, vector<64x512xf32> -> vector<64x512xf32>
    %c0_3 = arith.constant 0 : index
    %c0_4 = arith.constant 0 : index
    %3 = vector.load %arg3[%c0_3, %c0_4] : memref<1x512xf32, #tpu.memory_space<vmem>>, vector<1x512xf32>
    %4 = vector.broadcast %3 : vector<1x512xf32> to vector<64x512xf32>
    %5 = arith.addf %2, %4 : vector<64x512xf32>
    %c0_5 = arith.constant 0 : index
    %c0_6 = arith.constant 0 : index
    %6 = vector.load %arg2[%c0_5, %c0_6] : memref<128x512xbf16, #tpu.memory_space<vmem>>, vector<128x512xbf16>
    %c0_7 = arith.constant 0 : index
    %c0_8 = arith.constant 0 : index
    %7 = vector.load %arg8[%c0_7, %c0_8] : memref<8x128xf32, #tpu.memory_space<vmem>>, vector<8x128xf32>
    %c0_9 = arith.constant 0 : index
    %c0_10 = arith.constant 0 : index
    %8 = vector.load %arg9[%c0_9, %c0_10] : memref<8x128xf32, #tpu.memory_space<vmem>>, vector<8x128xf32>
    %9 = vector.extract_strided_slice %5 {offsets = [0, 0], sizes = [8, 512], strides = [1, 1]} : vector<64x512xf32> to vector<8x512xf32>
    %10 = arith.truncf %7 : vector<8x128xf32> to vector<8x128xbf16>
    %cst_11 = arith.constant dense<0.000000e+00> : vector<8x512xf32>
    %11 = tpu.matmul %10, %6, %cst_11 {dimension_numbers = #tpu.dot_dimension_numbers<[1], [0], [0], [1], [0, 0, 1, 1], [], []>} : vector<8x128xbf16>, vector<128x512xbf16>, vector<8x512xf32> -> vector<8x512xf32>
    %12 = arith.addf %9, %11 : vector<8x512xf32>
    %13 = vector.extract_strided_slice %12 {offsets = [0, 0], sizes = [8, 128], strides = [1, 1]} : vector<8x512xf32> to vector<8x128xf32>
    %14 = arith.negf %13 : vector<8x128xf32>
    %15 = math.exp %14 : vector<8x128xf32>
    %cst_12 = arith.constant 1.000000e+00 : f32
    %16 = vector.broadcast %cst_12 : f32 to vector<8x128xf32>
    %17 = arith.addf %16, %15 : vector<8x128xf32>
    %18 = arith.divf %16, %17 : vector<8x128xf32>
    %19 = vector.extract_strided_slice %12 {offsets = [0, 128], sizes = [8, 128], strides = [1, 1]} : vector<8x512xf32> to vector<8x128xf32>
    %20 = arith.negf %19 : vector<8x128xf32>
    %21 = math.exp %20 : vector<8x128xf32>
    %cst_13 = arith.constant 1.000000e+00 : f32
    %22 = vector.broadcast %cst_13 : f32 to vector<8x128xf32>
    %23 = arith.addf %22, %21 : vector<8x128xf32>
    %24 = arith.divf %22, %23 : vector<8x128xf32>
    %25 = vector.extract_strided_slice %12 {offsets = [0, 256], sizes = [8, 128], strides = [1, 1]} : vector<8x512xf32> to vector<8x128xf32>
    %26 = math.tanh %25 : vector<8x128xf32>
    %27 = vector.extract_strided_slice %12 {offsets = [0, 384], sizes = [8, 128], strides = [1, 1]} : vector<8x512xf32> to vector<8x128xf32>
    %28 = arith.negf %27 : vector<8x128xf32>
    %29 = math.exp %28 : vector<8x128xf32>
    %cst_14 = arith.constant 1.000000e+00 : f32
    %30 = vector.broadcast %cst_14 : f32 to vector<8x128xf32>
    %31 = arith.addf %30, %29 : vector<8x128xf32>
    %32 = arith.divf %30, %31 : vector<8x128xf32>
    %33 = arith.mulf %24, %8 : vector<8x128xf32>
    %34 = arith.mulf %18, %26 : vector<8x128xf32>
    %35 = arith.addf %33, %34 : vector<8x128xf32>
    %36 = math.tanh %35 : vector<8x128xf32>
    %37 = arith.mulf %32, %36 : vector<8x128xf32>
    %38 = vector.extract_strided_slice %5 {offsets = [8, 0], sizes = [8, 512], strides = [1, 1]} : vector<64x512xf32> to vector<8x512xf32>
    %39 = arith.truncf %37 : vector<8x128xf32> to vector<8x128xbf16>
    %cst_15 = arith.constant dense<0.000000e+00> : vector<8x512xf32>
    %40 = tpu.matmul %39, %6, %cst_15 {dimension_numbers = #tpu.dot_dimension_numbers<[1], [0], [0], [1], [0, 0, 1, 1], [], []>} : vector<8x128xbf16>, vector<128x512xbf16>, vector<8x512xf32> -> vector<8x512xf32>
    %41 = arith.addf %38, %40 : vector<8x512xf32>
    %42 = vector.extract_strided_slice %41 {offsets = [0, 0], sizes = [8, 128], strides = [1, 1]} : vector<8x512xf32> to vector<8x128xf32>
    %43 = arith.negf %42 : vector<8x128xf32>
    %44 = math.exp %43 : vector<8x128xf32>
    %cst_16 = arith.constant 1.000000e+00 : f32
    %45 = vector.broadcast %cst_16 : f32 to vector<8x128xf32>
    %46 = arith.addf %45, %44 : vector<8x128xf32>
    %47 = arith.divf %45, %46 : vector<8x128xf32>
    %48 = vector.extract_strided_slice %41 {offsets = [0, 128], sizes = [8, 128], strides = [1, 1]} : vector<8x512xf32> to vector<8x128xf32>
    %49 = arith.negf %48 : vector<8x128xf32>
    %50 = math.exp %49 : vector<8x128xf32>
    %cst_17 = arith.constant 1.000000e+00 : f32
    %51 = vector.broadcast %cst_17 : f32 to vector<8x128xf32>
    %52 = arith.addf %51, %50 : vector<8x128xf32>
    %53 = arith.divf %51, %52 : vector<8x128xf32>
    %54 = vector.extract_strided_slice %41 {offsets = [0, 256], sizes = [8, 128], strides = [1, 1]} : vector<8x512xf32> to vector<8x128xf32>
    %55 = math.tanh %54 : vector<8x128xf32>
    %56 = vector.extract_strided_slice %41 {offsets = [0, 384], sizes = [8, 128], strides = [1, 1]} : vector<8x512xf32> to vector<8x128xf32>
    %57 = arith.negf %56 : vector<8x128xf32>
    %58 = math.exp %57 : vector<8x128xf32>
    %cst_18 = arith.constant 1.000000e+00 : f32
    %59 = vector.broadcast %cst_18 : f32 to vector<8x128xf32>
    %60 = arith.addf %59, %58 : vector<8x128xf32>
    %61 = arith.divf %59, %60 : vector<8x128xf32>
    %62 = arith.mulf %53, %35 : vector<8x128xf32>
    %63 = arith.mulf %47, %55 : vector<8x128xf32>
    %64 = arith.addf %62, %63 : vector<8x128xf32>
    %65 = math.tanh %64 : vector<8x128xf32>
    %66 = arith.mulf %61, %65 : vector<8x128xf32>
    %67 = vector.extract_strided_slice %5 {offsets = [16, 0], sizes = [8, 512], strides = [1, 1]} : vector<64x512xf32> to vector<8x512xf32>
    %68 = arith.truncf %66 : vector<8x128xf32> to vector<8x128xbf16>
    %cst_19 = arith.constant dense<0.000000e+00> : vector<8x512xf32>
    %69 = tpu.matmul %68, %6, %cst_19 {dimension_numbers = #tpu.dot_dimension_numbers<[1], [0], [0], [1], [0, 0, 1, 1], [], []>} : vector<8x128xbf16>, vector<128x512xbf16>, vector<8x512xf32> -> vector<8x512xf32>
    %70 = arith.addf %67, %69 : vector<8x512xf32>
    %71 = vector.extract_strided_slice %70 {offsets = [0, 0], sizes = [8, 128], strides = [1, 1]} : vector<8x512xf32> to vector<8x128xf32>
    %72 = arith.negf %71 : vector<8x128xf32>
    %73 = math.exp %72 : vector<8x128xf32>
    %cst_20 = arith.constant 1.000000e+00 : f32
    %74 = vector.broadcast %cst_20 : f32 to vector<8x128xf32>
    %75 = arith.addf %74, %73 : vector<8x128xf32>
    %76 = arith.divf %74, %75 : vector<8x128xf32>
    %77 = vector.extract_strided_slice %70 {offsets = [0, 128], sizes = [8, 128], strides = [1, 1]} : vector<8x512xf32> to vector<8x128xf32>
    %78 = arith.negf %77 : vector<8x128xf32>
    %79 = math.exp %78 : vector<8x128xf32>
    %cst_21 = arith.constant 1.000000e+00 : f32
    %80 = vector.broadcast %cst_21 : f32 to vector<8x128xf32>
    %81 = arith.addf %80, %79 : vector<8x128xf32>
    %82 = arith.divf %80, %81 : vector<8x128xf32>
    %83 = vector.extract_strided_slice %70 {offsets = [0, 256], sizes = [8, 128], strides = [1, 1]} : vector<8x512xf32> to vector<8x128xf32>
    %84 = math.tanh %83 : vector<8x128xf32>
    %85 = vector.extract_strided_slice %70 {offsets = [0, 384], sizes = [8, 128], strides = [1, 1]} : vector<8x512xf32> to vector<8x128xf32>
    %86 = arith.negf %85 : vector<8x128xf32>
    %87 = math.exp %86 : vector<8x128xf32>
    %cst_22 = arith.constant 1.000000e+00 : f32
    %88 = vector.broadcast %cst_22 : f32 to vector<8x128xf32>
    %89 = arith.addf %88, %87 : vector<8x128xf32>
    %90 = arith.divf %88, %89 : vector<8x128xf32>
    %91 = arith.mulf %82, %64 : vector<8x128xf32>
    %92 = arith.mulf %76, %84 : vector<8x128xf32>
    %93 = arith.addf %91, %92 : vector<8x128xf32>
    %94 = math.tanh %93 : vector<8x128xf32>
    %95 = arith.mulf %90, %94 : vector<8x128xf32>
    %96 = vector.extract_strided_slice %5 {offsets = [24, 0], sizes = [8, 512], strides = [1, 1]} : vector<64x512xf32> to vector<8x512xf32>
    %97 = arith.truncf %95 : vector<8x128xf32> to vector<8x128xbf16>
    %cst_23 = arith.constant dense<0.000000e+00> : vector<8x512xf32>
    %98 = tpu.matmul %97, %6, %cst_23 {dimension_numbers = #tpu.dot_dimension_numbers<[1], [0], [0], [1], [0, 0, 1, 1], [], []>} : vector<8x128xbf16>, vector<128x512xbf16>, vector<8x512xf32> -> vector<8x512xf32>
    %99 = arith.addf %96, %98 : vector<8x512xf32>
    %100 = vector.extract_strided_slice %99 {offsets = [0, 0], sizes = [8, 128], strides = [1, 1]} : vector<8x512xf32> to vector<8x128xf32>
    %101 = arith.negf %100 : vector<8x128xf32>
    %102 = math.exp %101 : vector<8x128xf32>
    %cst_24 = arith.constant 1.000000e+00 : f32
    %103 = vector.broadcast %cst_24 : f32 to vector<8x128xf32>
    %104 = arith.addf %103, %102 : vector<8x128xf32>
    %105 = arith.divf %103, %104 : vector<8x128xf32>
    %106 = vector.extract_strided_slice %99 {offsets = [0, 128], sizes = [8, 128], strides = [1, 1]} : vector<8x512xf32> to vector<8x128xf32>
    %107 = arith.negf %106 : vector<8x128xf32>
    %108 = math.exp %107 : vector<8x128xf32>
    %cst_25 = arith.constant 1.000000e+00 : f32
    %109 = vector.broadcast %cst_25 : f32 to vector<8x128xf32>
    %110 = arith.addf %109, %108 : vector<8x128xf32>
    %111 = arith.divf %109, %110 : vector<8x128xf32>
    %112 = vector.extract_strided_slice %99 {offsets = [0, 256], sizes = [8, 128], strides = [1, 1]} : vector<8x512xf32> to vector<8x128xf32>
    %113 = math.tanh %112 : vector<8x128xf32>
    %114 = vector.extract_strided_slice %99 {offsets = [0, 384], sizes = [8, 128], strides = [1, 1]} : vector<8x512xf32> to vector<8x128xf32>
    %115 = arith.negf %114 : vector<8x128xf32>
    %116 = math.exp %115 : vector<8x128xf32>
    %cst_26 = arith.constant 1.000000e+00 : f32
    %117 = vector.broadcast %cst_26 : f32 to vector<8x128xf32>
    %118 = arith.addf %117, %116 : vector<8x128xf32>
    %119 = arith.divf %117, %118 : vector<8x128xf32>
    %120 = arith.mulf %111, %93 : vector<8x128xf32>
    %121 = arith.mulf %105, %113 : vector<8x128xf32>
    %122 = arith.addf %120, %121 : vector<8x128xf32>
    %123 = math.tanh %122 : vector<8x128xf32>
    %124 = arith.mulf %119, %123 : vector<8x128xf32>
    %125 = vector.extract_strided_slice %5 {offsets = [32, 0], sizes = [8, 512], strides = [1, 1]} : vector<64x512xf32> to vector<8x512xf32>
    %126 = arith.truncf %124 : vector<8x128xf32> to vector<8x128xbf16>
    %cst_27 = arith.constant dense<0.000000e+00> : vector<8x512xf32>
    %127 = tpu.matmul %126, %6, %cst_27 {dimension_numbers = #tpu.dot_dimension_numbers<[1], [0], [0], [1], [0, 0, 1, 1], [], []>} : vector<8x128xbf16>, vector<128x512xbf16>, vector<8x512xf32> -> vector<8x512xf32>
    %128 = arith.addf %125, %127 : vector<8x512xf32>
    %129 = vector.extract_strided_slice %128 {offsets = [0, 0], sizes = [8, 128], strides = [1, 1]} : vector<8x512xf32> to vector<8x128xf32>
    %130 = arith.negf %129 : vector<8x128xf32>
    %131 = math.exp %130 : vector<8x128xf32>
    %cst_28 = arith.constant 1.000000e+00 : f32
    %132 = vector.broadcast %cst_28 : f32 to vector<8x128xf32>
    %133 = arith.addf %132, %131 : vector<8x128xf32>
    %134 = arith.divf %132, %133 : vector<8x128xf32>
    %135 = vector.extract_strided_slice %128 {offsets = [0, 128], sizes = [8, 128], strides = [1, 1]} : vector<8x512xf32> to vector<8x128xf32>
    %136 = arith.negf %135 : vector<8x128xf32>
    %137 = math.exp %136 : vector<8x128xf32>
    %cst_29 = arith.constant 1.000000e+00 : f32
    %138 = vector.broadcast %cst_29 : f32 to vector<8x128xf32>
    %139 = arith.addf %138, %137 : vector<8x128xf32>
    %140 = arith.divf %138, %139 : vector<8x128xf32>
    %141 = vector.extract_strided_slice %128 {offsets = [0, 256], sizes = [8, 128], strides = [1, 1]} : vector<8x512xf32> to vector<8x128xf32>
    %142 = math.tanh %141 : vector<8x128xf32>
    %143 = vector.extract_strided_slice %128 {offsets = [0, 384], sizes = [8, 128], strides = [1, 1]} : vector<8x512xf32> to vector<8x128xf32>
    %144 = arith.negf %143 : vector<8x128xf32>
    %145 = math.exp %144 : vector<8x128xf32>
    %cst_30 = arith.constant 1.000000e+00 : f32
    %146 = vector.broadcast %cst_30 : f32 to vector<8x128xf32>
    %147 = arith.addf %146, %145 : vector<8x128xf32>
    %148 = arith.divf %146, %147 : vector<8x128xf32>
    %149 = arith.mulf %140, %122 : vector<8x128xf32>
    %150 = arith.mulf %134, %142 : vector<8x128xf32>
    %151 = arith.addf %149, %150 : vector<8x128xf32>
    %152 = math.tanh %151 : vector<8x128xf32>
    %153 = arith.mulf %148, %152 : vector<8x128xf32>
    %154 = vector.extract_strided_slice %5 {offsets = [40, 0], sizes = [8, 512], strides = [1, 1]} : vector<64x512xf32> to vector<8x512xf32>
    %155 = arith.truncf %153 : vector<8x128xf32> to vector<8x128xbf16>
    %cst_31 = arith.constant dense<0.000000e+00> : vector<8x512xf32>
    %156 = tpu.matmul %155, %6, %cst_31 {dimension_numbers = #tpu.dot_dimension_numbers<[1], [0], [0], [1], [0, 0, 1, 1], [], []>} : vector<8x128xbf16>, vector<128x512xbf16>, vector<8x512xf32> -> vector<8x512xf32>
    %157 = arith.addf %154, %156 : vector<8x512xf32>
    %158 = vector.extract_strided_slice %157 {offsets = [0, 0], sizes = [8, 128], strides = [1, 1]} : vector<8x512xf32> to vector<8x128xf32>
    %159 = arith.negf %158 : vector<8x128xf32>
    %160 = math.exp %159 : vector<8x128xf32>
    %cst_32 = arith.constant 1.000000e+00 : f32
    %161 = vector.broadcast %cst_32 : f32 to vector<8x128xf32>
    %162 = arith.addf %161, %160 : vector<8x128xf32>
    %163 = arith.divf %161, %162 : vector<8x128xf32>
    %164 = vector.extract_strided_slice %157 {offsets = [0, 128], sizes = [8, 128], strides = [1, 1]} : vector<8x512xf32> to vector<8x128xf32>
    %165 = arith.negf %164 : vector<8x128xf32>
    %166 = math.exp %165 : vector<8x128xf32>
    %cst_33 = arith.constant 1.000000e+00 : f32
    %167 = vector.broadcast %cst_33 : f32 to vector<8x128xf32>
    %168 = arith.addf %167, %166 : vector<8x128xf32>
    %169 = arith.divf %167, %168 : vector<8x128xf32>
    %170 = vector.extract_strided_slice %157 {offsets = [0, 256], sizes = [8, 128], strides = [1, 1]} : vector<8x512xf32> to vector<8x128xf32>
    %171 = math.tanh %170 : vector<8x128xf32>
    %172 = vector.extract_strided_slice %157 {offsets = [0, 384], sizes = [8, 128], strides = [1, 1]} : vector<8x512xf32> to vector<8x128xf32>
    %173 = arith.negf %172 : vector<8x128xf32>
    %174 = math.exp %173 : vector<8x128xf32>
    %cst_34 = arith.constant 1.000000e+00 : f32
    %175 = vector.broadcast %cst_34 : f32 to vector<8x128xf32>
    %176 = arith.addf %175, %174 : vector<8x128xf32>
    %177 = arith.divf %175, %176 : vector<8x128xf32>
    %178 = arith.mulf %169, %151 : vector<8x128xf32>
    %179 = arith.mulf %163, %171 : vector<8x128xf32>
    %180 = arith.addf %178, %179 : vector<8x128xf32>
    %181 = math.tanh %180 : vector<8x128xf32>
    %182 = arith.mulf %177, %181 : vector<8x128xf32>
    %183 = vector.extract_strided_slice %5 {offsets = [48, 0], sizes = [8, 512], strides = [1, 1]} : vector<64x512xf32> to vector<8x512xf32>
    %184 = arith.truncf %182 : vector<8x128xf32> to vector<8x128xbf16>
    %cst_35 = arith.constant dense<0.000000e+00> : vector<8x512xf32>
    %185 = tpu.matmul %184, %6, %cst_35 {dimension_numbers = #tpu.dot_dimension_numbers<[1], [0], [0], [1], [0, 0, 1, 1], [], []>} : vector<8x128xbf16>, vector<128x512xbf16>, vector<8x512xf32> -> vector<8x512xf32>
    %186 = arith.addf %183, %185 : vector<8x512xf32>
    %187 = vector.extract_strided_slice %186 {offsets = [0, 0], sizes = [8, 128], strides = [1, 1]} : vector<8x512xf32> to vector<8x128xf32>
    %188 = arith.negf %187 : vector<8x128xf32>
    %189 = math.exp %188 : vector<8x128xf32>
    %cst_36 = arith.constant 1.000000e+00 : f32
    %190 = vector.broadcast %cst_36 : f32 to vector<8x128xf32>
    %191 = arith.addf %190, %189 : vector<8x128xf32>
    %192 = arith.divf %190, %191 : vector<8x128xf32>
    %193 = vector.extract_strided_slice %186 {offsets = [0, 128], sizes = [8, 128], strides = [1, 1]} : vector<8x512xf32> to vector<8x128xf32>
    %194 = arith.negf %193 : vector<8x128xf32>
    %195 = math.exp %194 : vector<8x128xf32>
    %cst_37 = arith.constant 1.000000e+00 : f32
    %196 = vector.broadcast %cst_37 : f32 to vector<8x128xf32>
    %197 = arith.addf %196, %195 : vector<8x128xf32>
    %198 = arith.divf %196, %197 : vector<8x128xf32>
    %199 = vector.extract_strided_slice %186 {offsets = [0, 256], sizes = [8, 128], strides = [1, 1]} : vector<8x512xf32> to vector<8x128xf32>
    %200 = math.tanh %199 : vector<8x128xf32>
    %201 = vector.extract_strided_slice %186 {offsets = [0, 384], sizes = [8, 128], strides = [1, 1]} : vector<8x512xf32> to vector<8x128xf32>
    %202 = arith.negf %201 : vector<8x128xf32>
    %203 = math.exp %202 : vector<8x128xf32>
    %cst_38 = arith.constant 1.000000e+00 : f32
    %204 = vector.broadcast %cst_38 : f32 to vector<8x128xf32>
    %205 = arith.addf %204, %203 : vector<8x128xf32>
    %206 = arith.divf %204, %205 : vector<8x128xf32>
    %207 = arith.mulf %198, %180 : vector<8x128xf32>
    %208 = arith.mulf %192, %200 : vector<8x128xf32>
    %209 = arith.addf %207, %208 : vector<8x128xf32>
    %210 = math.tanh %209 : vector<8x128xf32>
    %211 = arith.mulf %206, %210 : vector<8x128xf32>
    %212 = vector.extract_strided_slice %5 {offsets = [56, 0], sizes = [8, 512], strides = [1, 1]} : vector<64x512xf32> to vector<8x512xf32>
    %213 = arith.truncf %211 : vector<8x128xf32> to vector<8x128xbf16>
    %cst_39 = arith.constant dense<0.000000e+00> : vector<8x512xf32>
    %214 = tpu.matmul %213, %6, %cst_39 {dimension_numbers = #tpu.dot_dimension_numbers<[1], [0], [0], [1], [0, 0, 1, 1], [], []>} : vector<8x128xbf16>, vector<128x512xbf16>, vector<8x512xf32> -> vector<8x512xf32>
    %215 = arith.addf %212, %214 : vector<8x512xf32>
    %216 = vector.extract_strided_slice %215 {offsets = [0, 0], sizes = [8, 128], strides = [1, 1]} : vector<8x512xf32> to vector<8x128xf32>
    %217 = arith.negf %216 : vector<8x128xf32>
    %218 = math.exp %217 : vector<8x128xf32>
    %cst_40 = arith.constant 1.000000e+00 : f32
    %219 = vector.broadcast %cst_40 : f32 to vector<8x128xf32>
    %220 = arith.addf %219, %218 : vector<8x128xf32>
    %221 = arith.divf %219, %220 : vector<8x128xf32>
    %222 = vector.extract_strided_slice %215 {offsets = [0, 128], sizes = [8, 128], strides = [1, 1]} : vector<8x512xf32> to vector<8x128xf32>
    %223 = arith.negf %222 : vector<8x128xf32>
    %224 = math.exp %223 : vector<8x128xf32>
    %cst_41 = arith.constant 1.000000e+00 : f32
    %225 = vector.broadcast %cst_41 : f32 to vector<8x128xf32>
    %226 = arith.addf %225, %224 : vector<8x128xf32>
    %227 = arith.divf %225, %226 : vector<8x128xf32>
    %228 = vector.extract_strided_slice %215 {offsets = [0, 256], sizes = [8, 128], strides = [1, 1]} : vector<8x512xf32> to vector<8x128xf32>
    %229 = math.tanh %228 : vector<8x128xf32>
    %230 = vector.extract_strided_slice %215 {offsets = [0, 384], sizes = [8, 128], strides = [1, 1]} : vector<8x512xf32> to vector<8x128xf32>
    %231 = arith.negf %230 : vector<8x128xf32>
    %232 = math.exp %231 : vector<8x128xf32>
    %cst_42 = arith.constant 1.000000e+00 : f32
    %233 = vector.broadcast %cst_42 : f32 to vector<8x128xf32>
    %234 = arith.addf %233, %232 : vector<8x128xf32>
    %235 = arith.divf %233, %234 : vector<8x128xf32>
    %236 = arith.mulf %227, %209 : vector<8x128xf32>
    %237 = arith.mulf %221, %229 : vector<8x128xf32>
    %238 = arith.addf %236, %237 : vector<8x128xf32>
    %239 = math.tanh %238 : vector<8x128xf32>
    %240 = arith.mulf %235, %239 : vector<8x128xf32>
    %c0_43 = arith.constant 0 : index
    %c0_44 = arith.constant 0 : index
    %241 = vector.load %arg4[%c0_43, %c0_44] : memref<256x512xbf16, #tpu.memory_space<vmem>>, vector<256x512xbf16>
    %c0_45 = arith.constant 0 : index
    %c0_46 = arith.constant 0 : index
    %242 = vector.load %arg5[%c0_45, %c0_46] : memref<1x512xf32, #tpu.memory_space<vmem>>, vector<1x512xf32>
    %243 = arith.truncf %37 : vector<8x128xf32> to vector<8x128xbf16>
    %244 = arith.truncf %240 : vector<8x128xf32> to vector<8x128xbf16>
    %245 = tpu.concatenate %243, %244 in 1 : vector<8x128xbf16>, vector<8x128xbf16> -> vector<8x256xbf16>
    %cst_47 = arith.constant dense<0.000000e+00> : vector<8x512xf32>
    %246 = tpu.matmul %245, %241, %cst_47 {dimension_numbers = #tpu.dot_dimension_numbers<[1], [0], [0], [1], [0, 0, 1, 1], [], []>} : vector<8x256xbf16>, vector<256x512xbf16>, vector<8x512xf32> -> vector<8x512xf32>
    %247 = vector.broadcast %242 : vector<1x512xf32> to vector<8x512xf32>
    %248 = arith.addf %246, %247 : vector<8x512xf32>
    %249 = vector.extract_strided_slice %248 {offsets = [0, 0], sizes = [8, 128], strides = [1, 1]} : vector<8x512xf32> to vector<8x128xf32>
    %250 = arith.negf %249 : vector<8x128xf32>
    %251 = math.exp %250 : vector<8x128xf32>
    %cst_48 = arith.constant 1.000000e+00 : f32
    %252 = vector.broadcast %cst_48 : f32 to vector<8x128xf32>
    %253 = arith.addf %252, %251 : vector<8x128xf32>
    %254 = arith.divf %252, %253 : vector<8x128xf32>
    %255 = vector.extract_strided_slice %248 {offsets = [0, 128], sizes = [8, 128], strides = [1, 1]} : vector<8x512xf32> to vector<8x128xf32>
    %256 = arith.negf %255 : vector<8x128xf32>
    %257 = math.exp %256 : vector<8x128xf32>
    %cst_49 = arith.constant 1.000000e+00 : f32
    %258 = vector.broadcast %cst_49 : f32 to vector<8x128xf32>
    %259 = arith.addf %258, %257 : vector<8x128xf32>
    %260 = arith.divf %258, %259 : vector<8x128xf32>
    %261 = vector.extract_strided_slice %248 {offsets = [0, 256], sizes = [8, 128], strides = [1, 1]} : vector<8x512xf32> to vector<8x128xf32>
    %262 = math.tanh %261 : vector<8x128xf32>
    %263 = vector.extract_strided_slice %248 {offsets = [0, 384], sizes = [8, 128], strides = [1, 1]} : vector<8x512xf32> to vector<8x128xf32>
    %264 = arith.negf %263 : vector<8x128xf32>
    %265 = math.exp %264 : vector<8x128xf32>
    %cst_50 = arith.constant 1.000000e+00 : f32
    %266 = vector.broadcast %cst_50 : f32 to vector<8x128xf32>
    %267 = arith.addf %266, %265 : vector<8x128xf32>
    %268 = arith.divf %266, %267 : vector<8x128xf32>
    %269 = arith.mulf %260, %238 : vector<8x128xf32>
    %270 = arith.mulf %254, %262 : vector<8x128xf32>
    %271 = arith.addf %269, %270 : vector<8x128xf32>
    %272 = math.tanh %271 : vector<8x128xf32>
    %273 = arith.mulf %268, %272 : vector<8x128xf32>
    %274 = arith.truncf %66 : vector<8x128xf32> to vector<8x128xbf16>
    %275 = arith.truncf %273 : vector<8x128xf32> to vector<8x128xbf16>
    %276 = tpu.concatenate %274, %275 in 1 : vector<8x128xbf16>, vector<8x128xbf16> -> vector<8x256xbf16>
    %cst_51 = arith.constant dense<0.000000e+00> : vector<8x512xf32>
    %277 = tpu.matmul %276, %241, %cst_51 {dimension_numbers = #tpu.dot_dimension_numbers<[1], [0], [0], [1], [0, 0, 1, 1], [], []>} : vector<8x256xbf16>, vector<256x512xbf16>, vector<8x512xf32> -> vector<8x512xf32>
    %278 = vector.broadcast %242 : vector<1x512xf32> to vector<8x512xf32>
    %279 = arith.addf %277, %278 : vector<8x512xf32>
    %280 = vector.extract_strided_slice %279 {offsets = [0, 0], sizes = [8, 128], strides = [1, 1]} : vector<8x512xf32> to vector<8x128xf32>
    %281 = arith.negf %280 : vector<8x128xf32>
    %282 = math.exp %281 : vector<8x128xf32>
    %cst_52 = arith.constant 1.000000e+00 : f32
    %283 = vector.broadcast %cst_52 : f32 to vector<8x128xf32>
    %284 = arith.addf %283, %282 : vector<8x128xf32>
    %285 = arith.divf %283, %284 : vector<8x128xf32>
    %286 = vector.extract_strided_slice %279 {offsets = [0, 128], sizes = [8, 128], strides = [1, 1]} : vector<8x512xf32> to vector<8x128xf32>
    %287 = arith.negf %286 : vector<8x128xf32>
    %288 = math.exp %287 : vector<8x128xf32>
    %cst_53 = arith.constant 1.000000e+00 : f32
    %289 = vector.broadcast %cst_53 : f32 to vector<8x128xf32>
    %290 = arith.addf %289, %288 : vector<8x128xf32>
    %291 = arith.divf %289, %290 : vector<8x128xf32>
    %292 = vector.extract_strided_slice %279 {offsets = [0, 256], sizes = [8, 128], strides = [1, 1]} : vector<8x512xf32> to vector<8x128xf32>
    %293 = math.tanh %292 : vector<8x128xf32>
    %294 = vector.extract_strided_slice %279 {offsets = [0, 384], sizes = [8, 128], strides = [1, 1]} : vector<8x512xf32> to vector<8x128xf32>
    %295 = arith.negf %294 : vector<8x128xf32>
    %296 = math.exp %295 : vector<8x128xf32>
    %cst_54 = arith.constant 1.000000e+00 : f32
    %297 = vector.broadcast %cst_54 : f32 to vector<8x128xf32>
    %298 = arith.addf %297, %296 : vector<8x128xf32>
    %299 = arith.divf %297, %298 : vector<8x128xf32>
    %300 = arith.mulf %291, %271 : vector<8x128xf32>
    %301 = arith.mulf %285, %293 : vector<8x128xf32>
    %302 = arith.addf %300, %301 : vector<8x128xf32>
    %303 = math.tanh %302 : vector<8x128xf32>
    %304 = arith.mulf %299, %303 : vector<8x128xf32>
    %305 = arith.truncf %95 : vector<8x128xf32> to vector<8x128xbf16>
    %306 = arith.truncf %304 : vector<8x128xf32> to vector<8x128xbf16>
    %307 = tpu.concatenate %305, %306 in 1 : vector<8x128xbf16>, vector<8x128xbf16> -> vector<8x256xbf16>
    %cst_55 = arith.constant dense<0.000000e+00> : vector<8x512xf32>
    %308 = tpu.matmul %307, %241, %cst_55 {dimension_numbers = #tpu.dot_dimension_numbers<[1], [0], [0], [1], [0, 0, 1, 1], [], []>} : vector<8x256xbf16>, vector<256x512xbf16>, vector<8x512xf32> -> vector<8x512xf32>
    %309 = vector.broadcast %242 : vector<1x512xf32> to vector<8x512xf32>
    %310 = arith.addf %308, %309 : vector<8x512xf32>
    %311 = vector.extract_strided_slice %310 {offsets = [0, 0], sizes = [8, 128], strides = [1, 1]} : vector<8x512xf32> to vector<8x128xf32>
    %312 = arith.negf %311 : vector<8x128xf32>
    %313 = math.exp %312 : vector<8x128xf32>
    %cst_56 = arith.constant 1.000000e+00 : f32
    %314 = vector.broadcast %cst_56 : f32 to vector<8x128xf32>
    %315 = arith.addf %314, %313 : vector<8x128xf32>
    %316 = arith.divf %314, %315 : vector<8x128xf32>
    %317 = vector.extract_strided_slice %310 {offsets = [0, 128], sizes = [8, 128], strides = [1, 1]} : vector<8x512xf32> to vector<8x128xf32>
    %318 = arith.negf %317 : vector<8x128xf32>
    %319 = math.exp %318 : vector<8x128xf32>
    %cst_57 = arith.constant 1.000000e+00 : f32
    %320 = vector.broadcast %cst_57 : f32 to vector<8x128xf32>
    %321 = arith.addf %320, %319 : vector<8x128xf32>
    %322 = arith.divf %320, %321 : vector<8x128xf32>
    %323 = vector.extract_strided_slice %310 {offsets = [0, 256], sizes = [8, 128], strides = [1, 1]} : vector<8x512xf32> to vector<8x128xf32>
    %324 = math.tanh %323 : vector<8x128xf32>
    %325 = vector.extract_strided_slice %310 {offsets = [0, 384], sizes = [8, 128], strides = [1, 1]} : vector<8x512xf32> to vector<8x128xf32>
    %326 = arith.negf %325 : vector<8x128xf32>
    %327 = math.exp %326 : vector<8x128xf32>
    %cst_58 = arith.constant 1.000000e+00 : f32
    %328 = vector.broadcast %cst_58 : f32 to vector<8x128xf32>
    %329 = arith.addf %328, %327 : vector<8x128xf32>
    %330 = arith.divf %328, %329 : vector<8x128xf32>
    %331 = arith.mulf %322, %302 : vector<8x128xf32>
    %332 = arith.mulf %316, %324 : vector<8x128xf32>
    %333 = arith.addf %331, %332 : vector<8x128xf32>
    %334 = math.tanh %333 : vector<8x128xf32>
    %335 = arith.mulf %330, %334 : vector<8x128xf32>
    %336 = arith.truncf %124 : vector<8x128xf32> to vector<8x128xbf16>
    %337 = arith.truncf %335 : vector<8x128xf32> to vector<8x128xbf16>
    %338 = tpu.concatenate %336, %337 in 1 : vector<8x128xbf16>, vector<8x128xbf16> -> vector<8x256xbf16>
    %cst_59 = arith.constant dense<0.000000e+00> : vector<8x512xf32>
    %339 = tpu.matmul %338, %241, %cst_59 {dimension_numbers = #tpu.dot_dimension_numbers<[1], [0], [0], [1], [0, 0, 1, 1], [], []>} : vector<8x256xbf16>, vector<256x512xbf16>, vector<8x512xf32> -> vector<8x512xf32>
    %340 = vector.broadcast %242 : vector<1x512xf32> to vector<8x512xf32>
    %341 = arith.addf %339, %340 : vector<8x512xf32>
    %342 = vector.extract_strided_slice %341 {offsets = [0, 0], sizes = [8, 128], strides = [1, 1]} : vector<8x512xf32> to vector<8x128xf32>
    %343 = arith.negf %342 : vector<8x128xf32>
    %344 = math.exp %343 : vector<8x128xf32>
    %cst_60 = arith.constant 1.000000e+00 : f32
    %345 = vector.broadcast %cst_60 : f32 to vector<8x128xf32>
    %346 = arith.addf %345, %344 : vector<8x128xf32>
    %347 = arith.divf %345, %346 : vector<8x128xf32>
    %348 = vector.extract_strided_slice %341 {offsets = [0, 128], sizes = [8, 128], strides = [1, 1]} : vector<8x512xf32> to vector<8x128xf32>
    %349 = arith.negf %348 : vector<8x128xf32>
    %350 = math.exp %349 : vector<8x128xf32>
    %cst_61 = arith.constant 1.000000e+00 : f32
    %351 = vector.broadcast %cst_61 : f32 to vector<8x128xf32>
    %352 = arith.addf %351, %350 : vector<8x128xf32>
    %353 = arith.divf %351, %352 : vector<8x128xf32>
    %354 = vector.extract_strided_slice %341 {offsets = [0, 256], sizes = [8, 128], strides = [1, 1]} : vector<8x512xf32> to vector<8x128xf32>
    %355 = math.tanh %354 : vector<8x128xf32>
    %356 = vector.extract_strided_slice %341 {offsets = [0, 384], sizes = [8, 128], strides = [1, 1]} : vector<8x512xf32> to vector<8x128xf32>
    %357 = arith.negf %356 : vector<8x128xf32>
    %358 = math.exp %357 : vector<8x128xf32>
    %cst_62 = arith.constant 1.000000e+00 : f32
    %359 = vector.broadcast %cst_62 : f32 to vector<8x128xf32>
    %360 = arith.addf %359, %358 : vector<8x128xf32>
    %361 = arith.divf %359, %360 : vector<8x128xf32>
    %362 = arith.mulf %353, %333 : vector<8x128xf32>
    %363 = arith.mulf %347, %355 : vector<8x128xf32>
    %364 = arith.addf %362, %363 : vector<8x128xf32>
    %365 = math.tanh %364 : vector<8x128xf32>
    %366 = arith.mulf %361, %365 : vector<8x128xf32>
    %367 = arith.truncf %153 : vector<8x128xf32> to vector<8x128xbf16>
    %368 = arith.truncf %366 : vector<8x128xf32> to vector<8x128xbf16>
    %369 = tpu.concatenate %367, %368 in 1 : vector<8x128xbf16>, vector<8x128xbf16> -> vector<8x256xbf16>
    %cst_63 = arith.constant dense<0.000000e+00> : vector<8x512xf32>
    %370 = tpu.matmul %369, %241, %cst_63 {dimension_numbers = #tpu.dot_dimension_numbers<[1], [0], [0], [1], [0, 0, 1, 1], [], []>} : vector<8x256xbf16>, vector<256x512xbf16>, vector<8x512xf32> -> vector<8x512xf32>
    %371 = vector.broadcast %242 : vector<1x512xf32> to vector<8x512xf32>
    %372 = arith.addf %370, %371 : vector<8x512xf32>
    %373 = vector.extract_strided_slice %372 {offsets = [0, 0], sizes = [8, 128], strides = [1, 1]} : vector<8x512xf32> to vector<8x128xf32>
    %374 = arith.negf %373 : vector<8x128xf32>
    %375 = math.exp %374 : vector<8x128xf32>
    %cst_64 = arith.constant 1.000000e+00 : f32
    %376 = vector.broadcast %cst_64 : f32 to vector<8x128xf32>
    %377 = arith.addf %376, %375 : vector<8x128xf32>
    %378 = arith.divf %376, %377 : vector<8x128xf32>
    %379 = vector.extract_strided_slice %372 {offsets = [0, 128], sizes = [8, 128], strides = [1, 1]} : vector<8x512xf32> to vector<8x128xf32>
    %380 = arith.negf %379 : vector<8x128xf32>
    %381 = math.exp %380 : vector<8x128xf32>
    %cst_65 = arith.constant 1.000000e+00 : f32
    %382 = vector.broadcast %cst_65 : f32 to vector<8x128xf32>
    %383 = arith.addf %382, %381 : vector<8x128xf32>
    %384 = arith.divf %382, %383 : vector<8x128xf32>
    %385 = vector.extract_strided_slice %372 {offsets = [0, 256], sizes = [8, 128], strides = [1, 1]} : vector<8x512xf32> to vector<8x128xf32>
    %386 = math.tanh %385 : vector<8x128xf32>
    %387 = vector.extract_strided_slice %372 {offsets = [0, 384], sizes = [8, 128], strides = [1, 1]} : vector<8x512xf32> to vector<8x128xf32>
    %388 = arith.negf %387 : vector<8x128xf32>
    %389 = math.exp %388 : vector<8x128xf32>
    %cst_66 = arith.constant 1.000000e+00 : f32
    %390 = vector.broadcast %cst_66 : f32 to vector<8x128xf32>
    %391 = arith.addf %390, %389 : vector<8x128xf32>
    %392 = arith.divf %390, %391 : vector<8x128xf32>
    %393 = arith.mulf %384, %364 : vector<8x128xf32>
    %394 = arith.mulf %378, %386 : vector<8x128xf32>
    %395 = arith.addf %393, %394 : vector<8x128xf32>
    %396 = math.tanh %395 : vector<8x128xf32>
    %397 = arith.mulf %392, %396 : vector<8x128xf32>
    %398 = arith.truncf %182 : vector<8x128xf32> to vector<8x128xbf16>
    %399 = arith.truncf %397 : vector<8x128xf32> to vector<8x128xbf16>
    %400 = tpu.concatenate %398, %399 in 1 : vector<8x128xbf16>, vector<8x128xbf16> -> vector<8x256xbf16>
    %cst_67 = arith.constant dense<0.000000e+00> : vector<8x512xf32>
    %401 = tpu.matmul %400, %241, %cst_67 {dimension_numbers = #tpu.dot_dimension_numbers<[1], [0], [0], [1], [0, 0, 1, 1], [], []>} : vector<8x256xbf16>, vector<256x512xbf16>, vector<8x512xf32> -> vector<8x512xf32>
    %402 = vector.broadcast %242 : vector<1x512xf32> to vector<8x512xf32>
    %403 = arith.addf %401, %402 : vector<8x512xf32>
    %404 = vector.extract_strided_slice %403 {offsets = [0, 0], sizes = [8, 128], strides = [1, 1]} : vector<8x512xf32> to vector<8x128xf32>
    %405 = arith.negf %404 : vector<8x128xf32>
    %406 = math.exp %405 : vector<8x128xf32>
    %cst_68 = arith.constant 1.000000e+00 : f32
    %407 = vector.broadcast %cst_68 : f32 to vector<8x128xf32>
    %408 = arith.addf %407, %406 : vector<8x128xf32>
    %409 = arith.divf %407, %408 : vector<8x128xf32>
    %410 = vector.extract_strided_slice %403 {offsets = [0, 128], sizes = [8, 128], strides = [1, 1]} : vector<8x512xf32> to vector<8x128xf32>
    %411 = arith.negf %410 : vector<8x128xf32>
    %412 = math.exp %411 : vector<8x128xf32>
    %cst_69 = arith.constant 1.000000e+00 : f32
    %413 = vector.broadcast %cst_69 : f32 to vector<8x128xf32>
    %414 = arith.addf %413, %412 : vector<8x128xf32>
    %415 = arith.divf %413, %414 : vector<8x128xf32>
    %416 = vector.extract_strided_slice %403 {offsets = [0, 256], sizes = [8, 128], strides = [1, 1]} : vector<8x512xf32> to vector<8x128xf32>
    %417 = math.tanh %416 : vector<8x128xf32>
    %418 = vector.extract_strided_slice %403 {offsets = [0, 384], sizes = [8, 128], strides = [1, 1]} : vector<8x512xf32> to vector<8x128xf32>
    %419 = arith.negf %418 : vector<8x128xf32>
    %420 = math.exp %419 : vector<8x128xf32>
    %cst_70 = arith.constant 1.000000e+00 : f32
    %421 = vector.broadcast %cst_70 : f32 to vector<8x128xf32>
    %422 = arith.addf %421, %420 : vector<8x128xf32>
    %423 = arith.divf %421, %422 : vector<8x128xf32>
    %424 = arith.mulf %415, %395 : vector<8x128xf32>
    %425 = arith.mulf %409, %417 : vector<8x128xf32>
    %426 = arith.addf %424, %425 : vector<8x128xf32>
    %427 = math.tanh %426 : vector<8x128xf32>
    %428 = arith.mulf %423, %427 : vector<8x128xf32>
    %429 = arith.truncf %211 : vector<8x128xf32> to vector<8x128xbf16>
    %430 = arith.truncf %428 : vector<8x128xf32> to vector<8x128xbf16>
    %431 = tpu.concatenate %429, %430 in 1 : vector<8x128xbf16>, vector<8x128xbf16> -> vector<8x256xbf16>
    %cst_71 = arith.constant dense<0.000000e+00> : vector<8x512xf32>
    %432 = tpu.matmul %431, %241, %cst_71 {dimension_numbers = #tpu.dot_dimension_numbers<[1], [0], [0], [1], [0, 0, 1, 1], [], []>} : vector<8x256xbf16>, vector<256x512xbf16>, vector<8x512xf32> -> vector<8x512xf32>
    %433 = vector.broadcast %242 : vector<1x512xf32> to vector<8x512xf32>
    %434 = arith.addf %432, %433 : vector<8x512xf32>
    %435 = vector.extract_strided_slice %434 {offsets = [0, 0], sizes = [8, 128], strides = [1, 1]} : vector<8x512xf32> to vector<8x128xf32>
    %436 = arith.negf %435 : vector<8x128xf32>
    %437 = math.exp %436 : vector<8x128xf32>
    %cst_72 = arith.constant 1.000000e+00 : f32
    %438 = vector.broadcast %cst_72 : f32 to vector<8x128xf32>
    %439 = arith.addf %438, %437 : vector<8x128xf32>
    %440 = arith.divf %438, %439 : vector<8x128xf32>
    %441 = vector.extract_strided_slice %434 {offsets = [0, 128], sizes = [8, 128], strides = [1, 1]} : vector<8x512xf32> to vector<8x128xf32>
    %442 = arith.negf %441 : vector<8x128xf32>
    %443 = math.exp %442 : vector<8x128xf32>
    %cst_73 = arith.constant 1.000000e+00 : f32
    %444 = vector.broadcast %cst_73 : f32 to vector<8x128xf32>
    %445 = arith.addf %444, %443 : vector<8x128xf32>
    %446 = arith.divf %444, %445 : vector<8x128xf32>
    %447 = vector.extract_strided_slice %434 {offsets = [0, 256], sizes = [8, 128], strides = [1, 1]} : vector<8x512xf32> to vector<8x128xf32>
    %448 = math.tanh %447 : vector<8x128xf32>
    %449 = vector.extract_strided_slice %434 {offsets = [0, 384], sizes = [8, 128], strides = [1, 1]} : vector<8x512xf32> to vector<8x128xf32>
    %450 = arith.negf %449 : vector<8x128xf32>
    %451 = math.exp %450 : vector<8x128xf32>
    %cst_74 = arith.constant 1.000000e+00 : f32
    %452 = vector.broadcast %cst_74 : f32 to vector<8x128xf32>
    %453 = arith.addf %452, %451 : vector<8x128xf32>
    %454 = arith.divf %452, %453 : vector<8x128xf32>
    %455 = arith.mulf %446, %426 : vector<8x128xf32>
    %456 = arith.mulf %440, %448 : vector<8x128xf32>
    %457 = arith.addf %455, %456 : vector<8x128xf32>
    %458 = math.tanh %457 : vector<8x128xf32>
    %459 = arith.mulf %454, %458 : vector<8x128xf32>
    %460 = arith.truncf %240 : vector<8x128xf32> to vector<8x128xbf16>
    %461 = arith.truncf %459 : vector<8x128xf32> to vector<8x128xbf16>
    %462 = tpu.concatenate %460, %461 in 1 : vector<8x128xbf16>, vector<8x128xbf16> -> vector<8x256xbf16>
    %cst_75 = arith.constant dense<0.000000e+00> : vector<8x512xf32>
    %463 = tpu.matmul %462, %241, %cst_75 {dimension_numbers = #tpu.dot_dimension_numbers<[1], [0], [0], [1], [0, 0, 1, 1], [], []>} : vector<8x256xbf16>, vector<256x512xbf16>, vector<8x512xf32> -> vector<8x512xf32>
    %464 = vector.broadcast %242 : vector<1x512xf32> to vector<8x512xf32>
    %465 = arith.addf %463, %464 : vector<8x512xf32>
    %466 = vector.extract_strided_slice %465 {offsets = [0, 0], sizes = [8, 128], strides = [1, 1]} : vector<8x512xf32> to vector<8x128xf32>
    %467 = arith.negf %466 : vector<8x128xf32>
    %468 = math.exp %467 : vector<8x128xf32>
    %cst_76 = arith.constant 1.000000e+00 : f32
    %469 = vector.broadcast %cst_76 : f32 to vector<8x128xf32>
    %470 = arith.addf %469, %468 : vector<8x128xf32>
    %471 = arith.divf %469, %470 : vector<8x128xf32>
    %472 = vector.extract_strided_slice %465 {offsets = [0, 128], sizes = [8, 128], strides = [1, 1]} : vector<8x512xf32> to vector<8x128xf32>
    %473 = arith.negf %472 : vector<8x128xf32>
    %474 = math.exp %473 : vector<8x128xf32>
    %cst_77 = arith.constant 1.000000e+00 : f32
    %475 = vector.broadcast %cst_77 : f32 to vector<8x128xf32>
    %476 = arith.addf %475, %474 : vector<8x128xf32>
    %477 = arith.divf %475, %476 : vector<8x128xf32>
    %478 = vector.extract_strided_slice %465 {offsets = [0, 256], sizes = [8, 128], strides = [1, 1]} : vector<8x512xf32> to vector<8x128xf32>
    %479 = math.tanh %478 : vector<8x128xf32>
    %480 = vector.extract_strided_slice %465 {offsets = [0, 384], sizes = [8, 128], strides = [1, 1]} : vector<8x512xf32> to vector<8x128xf32>
    %481 = arith.negf %480 : vector<8x128xf32>
    %482 = math.exp %481 : vector<8x128xf32>
    %cst_78 = arith.constant 1.000000e+00 : f32
    %483 = vector.broadcast %cst_78 : f32 to vector<8x128xf32>
    %484 = arith.addf %483, %482 : vector<8x128xf32>
    %485 = arith.divf %483, %484 : vector<8x128xf32>
    %486 = arith.mulf %477, %457 : vector<8x128xf32>
    %487 = arith.mulf %471, %479 : vector<8x128xf32>
    %488 = arith.addf %486, %487 : vector<8x128xf32>
    %489 = math.tanh %488 : vector<8x128xf32>
    %490 = arith.mulf %485, %489 : vector<8x128xf32>
    %c0_79 = arith.constant 0 : index
    %c0_80 = arith.constant 0 : index
    %491 = vector.load %arg10[%c0_79, %c0_80] : memref<8x128xf32, #tpu.memory_space<vmem>>, vector<8x128xf32>
    %492 = arith.mulf %490, %491 : vector<8x128xf32>
    %c0_81 = arith.constant 0 : index
    %c0_82 = arith.constant 0 : index
    %493 = vector.load %arg6[%c0_81, %c0_82] : memref<128x128xf32, #tpu.memory_space<vmem>>, vector<128x128xf32>
    %cst_83 = arith.constant dense<0.000000e+00> : vector<8x128xf32>
    %494 = tpu.matmul %492, %493, %cst_83 {dimension_numbers = #tpu.dot_dimension_numbers<[1], [0], [0], [1], [0, 0, 1, 1], [], []>} : vector<8x128xf32>, vector<128x128xf32>, vector<8x128xf32> -> vector<8x128xf32>
    %c0_84 = arith.constant 0 : index
    %c0_85 = arith.constant 0 : index
    %495 = vector.load %arg7[%c0_84, %c0_85] : memref<1x128xf32, #tpu.memory_space<vmem>>, vector<1x128xf32>
    %496 = vector.broadcast %495 : vector<1x128xf32> to vector<8x128xf32>
    %497 = arith.addf %494, %496 : vector<8x128xf32>
    %cst_86 = arith.constant dense<0xFF800000> : vector<8xf32>
    %498 = vector.multi_reduction <maximumf>, %497, %cst_86 [1] : vector<8x128xf32> to vector<8xf32>
    %499 = vector.shape_cast %498 : vector<8xf32> to vector<8x1xf32>
    %500 = vector.broadcast %499 : vector<8x1xf32> to vector<8x128xf32>
    %501 = arith.subf %497, %500 : vector<8x128xf32>
    %502 = math.exp %501 : vector<8x128xf32>
    %cst_87 = arith.constant dense<0.000000e+00> : vector<8xf32>
    %503 = vector.multi_reduction <add>, %502, %cst_87 [1] : vector<8x128xf32> to vector<8xf32>
    %504 = vector.shape_cast %503 : vector<8xf32> to vector<8x1xf32>
    %505 = vector.broadcast %504 : vector<8x1xf32> to vector<8x128xf32>
    %506 = arith.divf %502, %505 : vector<8x128xf32>
    %c0_88 = arith.constant 0 : index
    %c0_89 = arith.constant 0 : index
    %507 = vector.load %arg11[%c0_88, %c0_89] : memref<8x128xf32, #tpu.memory_space<vmem>>, vector<8x128xf32>
    tpu.vector_store %arg11[%c0_88, %c0_89], %506 {strides = array<i32>} : memref<8x128xf32, #tpu.memory_space<vmem>>, vector<8x128xf32>,
    return
  }
}

</mosaic_0001>

<llo_original>
// kernel: tpu_custom_call.1
$region0: #{tpu_custom_call.1}
  #allocation0 [shape = 'u32[]', space=smem, size = 0x4, offset = 0x4, fixed_abs, tag = 'smem constant byte address 0x4 - core index']
  #allocation1 [shape = 'u32[144,128]{1,0:T(1,128)}', space=vmem, size = 0x12000, scoped, tag = 'internal scratch']
  %s0 = inlined_call_operand.vmem [shape: f32[64,8], index: 0, kind: input, shape index: {}]
  %s1 = inlined_call_operand.vmem [shape: f32[8,512], index: 1, kind: input, shape index: {}]
  %s2 = inlined_call_operand.hbm [shape: bf16[128,512], index: 2, kind: input, shape index: {}]
  %s3 = inlined_call_operand.vmem [shape: f32[1,512], index: 3, kind: input, shape index: {}]
  %s4 = inlined_call_operand.hbm [shape: bf16[256,512], index: 4, kind: input, shape index: {}]
  %s5 = inlined_call_operand.vmem [shape: f32[1,512], index: 5, kind: input, shape index: {}]
  %s6 = inlined_call_operand.hbm [shape: f32[128,128], index: 6, kind: input, shape index: {}]
  %s7 = inlined_call_operand.vmem [shape: f32[1,128], index: 7, kind: input, shape index: {}]
  %s8 = inlined_call_operand.vmem [shape: f32[8,128], index: 8, kind: input, shape index: {}]
  %s9 = inlined_call_operand.vmem [shape: f32[8,128], index: 9, kind: input, shape index: {}]
  %s10 = inlined_call_operand.vmem [shape: f32[8,128], index: 10, kind: input, shape index: {}]
  %s11 = inlined_call_operand.hbm [shape: f32[8,128], index: 11, kind: output, shape index: {}]
  %s12 = sld [smem:[#allocation0]]
  $region66: #{tpu_custom_call.1} parent=0
    _
  %s14 = ssub.s32 1, %s12
  %s15 = scalar_select 0, %s14, %s12
  $region1: #{tpu_custom_call.1} parent=0
    #allocation2 [shape = 'u8[131072]{0}', space=vmem, size = 0x20000, scoped, tag = 'input window, operand 2, single buffered']
    #allocation3 [shape = 's32[1]{0}', space=sflag, size = 0x4, scoped, tag = 'scoped memory for tpu_custom_call.1']
    #allocation4 [shape = 's32[1]{0}', space=sflag, size = 0x4, scoped, tag = 'scoped memory for tpu_custom_call.1']
    #allocation5 [shape = 'u8[262144]{0}', space=vmem, size = 0x40000, scoped, tag = 'input window, operand 4, single buffered']
    #allocation6 [shape = 's32[1]{0}', space=sflag, size = 0x4, scoped, tag = 'scoped memory for tpu_custom_call.1']
    #allocation7 [shape = 'u8[65536]{0}', space=vmem, size = 0x10000, scoped, tag = 'input window, operand 6, single buffered']
    #allocation8 [shape = 'u8[4096]{0}', space=vmem, size = 0x1000, scoped, tag = 'output window, operand 0, single buffered']
    %16 = vsyncpa [#allocation3], 0
    %17 = vsyncpa [#allocation6], 0
    %18 = vsyncpa [#allocation4], 0
    // Predicated region
    $region2: #{tpu_custom_call.1} parent=1 // pred_check
      _
    $region3: #{tpu_custom_call.1} parent=1 // pred_check_branch
      %20 = sbr.rel (0) target = $region5
    $region4: #{tpu_custom_call.1} parent=1 // pred_region
      _
    $region5: #{tpu_custom_call.1} parent=1 // pred_fallthru
      _
    // Predicated region
    $region6: #{tpu_custom_call.1} parent=1 // pred_check
      _
    $region7: #{tpu_custom_call.1} parent=1 // pred_check_branch
      %22 = sbr.rel (0) target = $region9
    $region8: #{tpu_custom_call.1} parent=1 // pred_region
      _
    $region9: #{tpu_custom_call.1} parent=1 // pred_fallthru
      _
    // Predicated region
    $region10: #{tpu_custom_call.1} parent=1 // pred_check
      _
    $region11: #{tpu_custom_call.1} parent=1 // pred_check_branch
      %24 = sbr.rel (0) target = $region13
    $region12: #{tpu_custom_call.1} parent=1 // pred_region
      %s26 = ssub.s32 4096, 4096
      %27 = vsyncadd [#allocation3], %s26
      %s28 = sshll.u32 [#allocation2], 4
      %s29 = int_to_ptr.vmem [resolvable:$true] %s28
      %34 = dma.hbm_to_vmem [thread:$0]  %s2, 4096, %s29, [#allocation3], 256, 256, 16
    $region13: #{tpu_custom_call.1} parent=1 // pred_fallthru
      _
    // Predicated region
    $region14: #{tpu_custom_call.1} parent=1 // pred_check
      _
    $region15: #{tpu_custom_call.1} parent=1 // pred_check_branch
      %36 = sbr.rel (0) target = $region17
    $region16: #{tpu_custom_call.1} parent=1 // pred_region
      _
    $region17: #{tpu_custom_call.1} parent=1 // pred_fallthru
      _
    // Predicated region
    $region18: #{tpu_custom_call.1} parent=1 // pred_check
      _
    $region19: #{tpu_custom_call.1} parent=1 // pred_check_branch
      %38 = sbr.rel (0) target = $region21
    $region20: #{tpu_custom_call.1} parent=1 // pred_region
      %s40 = ssub.s32 8192, 8192
      %41 = vsyncadd [#allocation6], %s40
      %s42 = sshll.u32 [#allocation5], 4
      %s43 = int_to_ptr.vmem [resolvable:$true] %s42
      %48 = dma.hbm_to_vmem [thread:$0]  %s4, 8192, %s43, [#allocation6], 256, 256, 16
    $region21: #{tpu_custom_call.1} parent=1 // pred_fallthru
      _
    // Predicated region
    $region22: #{tpu_custom_call.1} parent=1 // pred_check
      _
    $region23: #{tpu_custom_call.1} parent=1 // pred_check_branch
      %50 = sbr.rel (0) target = $region25
    $region24: #{tpu_custom_call.1} parent=1 // pred_region
      _
    $region25: #{tpu_custom_call.1} parent=1 // pred_fallthru
      _
    // Predicated region
    $region26: #{tpu_custom_call.1} parent=1 // pred_check
      _
    $region27: #{tpu_custom_call.1} parent=1 // pred_check_branch
      %52 = sbr.rel (0) target = $region29
    $region28: #{tpu_custom_call.1} parent=1 // pred_region
      %s54 = ssub.s32 2048, 2048
      %55 = vsyncadd [#allocation6], %s54
      %s56 = sshll.u32 [#allocation7], 4
      %s57 = int_to_ptr.vmem [resolvable:$true] %s56
      %62 = dma.hbm_to_vmem [thread:$0]  %s6, 2048, %s57, [#allocation6], 128, 128, 8
    $region29: #{tpu_custom_call.1} parent=1 // pred_fallthru
      _
    // Predicated region
    $region30: #{tpu_custom_call.1} parent=1 // pred_check
      _
    $region31: #{tpu_custom_call.1} parent=1 // pred_check_branch
      %64 = sbr.rel (0) target = $region33
    $region32: #{tpu_custom_call.1} parent=1 // pred_region
      _
    $region33: #{tpu_custom_call.1} parent=1 // pred_fallthru
      _
    // Predicated region
    $region34: #{tpu_custom_call.1} parent=1 // pred_check
      _
    $region35: #{tpu_custom_call.1} parent=1 // pred_check_branch
      %66 = sbr.rel (0) target = $region37
    $region36: #{tpu_custom_call.1} parent=1 // pred_region
      _
    $region37: #{tpu_custom_call.1} parent=1 // pred_fallthru
      _
    // Predicated region
    $region38: #{tpu_custom_call.1} parent=1 // pred_check
      _
    $region39: #{tpu_custom_call.1} parent=1 // pred_check_branch
      %68 = sbr.rel (0) target = $region41
    $region40: #{tpu_custom_call.1} parent=1 // pred_region
      _
    $region41: #{tpu_custom_call.1} parent=1 // pred_fallthru
      _
    // Predicated region
    $region42: #{tpu_custom_call.1} parent=1 // pred_check
      _
    $region43: #{tpu_custom_call.1} parent=1 // pred_check_branch
      %70 = sbr.rel (0) target = $region45
    $region44: #{tpu_custom_call.1} parent=1 // pred_region
      _
    $region45: #{tpu_custom_call.1} parent=1 // pred_fallthru
      _
    // Predicated region
    $region46: #{tpu_custom_call.1} parent=1 // pred_check
      _
    $region47: #{tpu_custom_call.1} parent=1 // pred_check_branch
      %72 = sbr.rel (0) target = $region49
    $region48: #{tpu_custom_call.1} parent=1 // pred_region
      %73 = dma.done [#allocation3], 4096
    $region49: #{tpu_custom_call.1} parent=1 // pred_fallthru
      _
    // Predicated region
    $region50: #{tpu_custom_call.1} parent=1 // pred_check
      _
    $region51: #{tpu_custom_call.1} parent=1 // pred_check_branch
      %75 = sbr.rel (0) target = $region53
    $region52: #{tpu_custom_call.1} parent=1 // pred_region
      %76 = dma.done [#allocation6], 8192
    $region53: #{tpu_custom_call.1} parent=1 // pred_fallthru
      _
    // Predicated region
    $region54: #{tpu_custom_call.1} parent=1 // pred_check
      _
    $region55: #{tpu_custom_call.1} parent=1 // pred_check_branch
      %78 = sbr.rel (0) target = $region57
    $region56: #{tpu_custom_call.1} parent=1 // pred_region
      %79 = dma.done [#allocation6], 2048
    $region57: #{tpu_custom_call.1} parent=1 // pred_fallthru
      _
    %v81 = vld [vmem:[%s0] sm:$0xff]
    %v82 = vld [vmem:[%s0 + $0x8] sm:$0xff]
    %v83 = vld [vmem:[%s0 + $0x10] sm:$0xff]
    %v84 = vld [vmem:[%s0 + $0x18] sm:$0xff]
    %v85 = vld [vmem:[%s0 + $0x20] sm:$0xff]
    %v86 = vld [vmem:[%s0 + $0x28] sm:$0xff]
    %v87 = vld [vmem:[%s0 + $0x30] sm:$0xff]
    %v88 = vld [vmem:[%s0 + $0x38] sm:$0xff]
    %v89 = vld [vmem:[%s1] sm:$0xff]
    %v90 = vld [vmem:[%s1 + $0x8] sm:$0xff]
    %v91 = vld [vmem:[%s1 + $0x10] sm:$0xff]
    %v92 = vld [vmem:[%s1 + $0x18] sm:$0xff]
    %v93 = vld [vmem:[%s3] sm:$0xf]
    %v95 = vlaneseq
    %v96 = vshrl.u32 %v95, 7
    %v97 = vsub.s32 0, %v96
    %v98 = vrot.slane %v93, %v97
    %v99 = vlaneseq
    %v100 = vshrl.u32 %v99, 7
    %v101 = vsub.s32 1, %v100
    %v102 = vrot.slane %v93, %v101
    %v103 = vlaneseq
    %v104 = vshrl.u32 %v103, 7
    %v105 = vsub.s32 2, %v104
    %v106 = vrot.slane %v93, %v105
    %v107 = vlaneseq
    %v108 = vshrl.u32 %v107, 7
    %v109 = vsub.s32 3, %v108
    %v110 = vrot.slane %v93, %v109
    %vm115 = vcmask 64512
    %v117 = vsel %vm115, %v81, 0
    %v120 = vsel %vm115, %v82, 0
    %v123 = vsel %vm115, %v83, 0
    %v126 = vsel %vm115, %v84, 0
    %v129 = vsel %vm115, %v85, 0
    %v132 = vsel %vm115, %v86, 0
    %v135 = vsel %vm115, %v87, 0
    %v138 = vsel %vm115, %v88, 0
    %140 = vmatprep.subr.mxu0 %v90
    %141 = vmatpush1.msra.mxu0 %v89
    %142 = vmatprep.subr.mxu0 0.0
    %143 = vmatpush1.msra.mxu0 0.0
    %144 = vmatprep.subr.mxu0 0.0
    %145 = vmatpush1.msra.mxu0 0.0
    %146 = vmatprep.subr.mxu0 0.0
    %147 = vmatpush1.msra.mxu0 0.0
    %148 = vmatprep.subr.mxu0 0.0
    %149 = vmatpush1.msra.mxu0 0.0
    %150 = vmatprep.subr.mxu0 0.0
    %151 = vmatpush1.msra.mxu0 0.0
    %152 = vmatprep.subr.mxu0 0.0
    %153 = vmatpush1.msra.mxu0 0.0
    %154 = vmatprep.subr.mxu0 0.0
    %155 = vmatpush1.msra.mxu0 0.0
    %156 = vmatprep.subr.mxu0 0.0
    %157 = vmatpush1.msra.mxu0 0.0
    %158 = vmatprep.subr.mxu0 0.0
    %159 = vmatpush1.msra.mxu0 0.0
    %160 = vmatprep.subr.mxu0 0.0
    %161 = vmatpush1.msra.mxu0 0.0
    %162 = vmatprep.subr.mxu0 0.0
    %163 = vmatpush1.msra.mxu0 0.0
    %164 = vmatprep.subr.mxu0 0.0
    %165 = vmatpush1.msra.mxu0 0.0
    %166 = vmatprep.subr.mxu0 0.0
    %167 = vmatpush1.msra.mxu0 0.0
    %168 = vmatprep.subr.mxu0 0.0
    %169 = vmatpush1.msra.mxu0 0.0
    %170 = vmatprep.subr.mxu0 0.0
    %171 = vmatpush1.msra.mxu0 0.0
    %172 = vmatprep.subr.mxu0 0.0
    %173 = vmatpush1.msra.mxu0 0.0
    %174 = vmatprep.subr.mxu0 0.0
    %175 = vmatpush1.msra.mxu0 0.0
    %176 = vmatprep.subr.mxu0 0.0
    %177 = vmatpush1.msra.mxu0 0.0
    %178 = vmatprep.subr.mxu0 0.0
    %179 = vmatpush1.msra.mxu0 0.0
    %180 = vmatprep.subr.mxu0 0.0
    %181 = vmatpush1.msra.mxu0 0.0
    %182 = vmatprep.subr.mxu0 0.0
    %183 = vmatpush1.msra.mxu0 0.0
    %184 = vmatprep.subr.mxu0 0.0
    %185 = vmatpush1.msra.mxu0 0.0
    %186 = vmatprep.subr.mxu0 0.0
    %187 = vmatpush1.msra.mxu0 0.0
    %188 = vmatprep.subr.mxu0 0.0
    %189 = vmatpush1.msra.mxu0 0.0
    %190 = vmatprep.subr.mxu0 0.0
    %191 = vmatpush1.msra.mxu0 0.0
    %192 = vmatprep.subr.mxu0 0.0
    %193 = vmatpush1.msra.mxu0 0.0
    %194 = vmatprep.subr.mxu0 0.0
    %195 = vmatpush1.msra.mxu0 0.0
    %196 = vmatprep.subr.mxu0 0.0
    %197 = vmatpush1.msra.mxu0 0.0
    %198 = vmatprep.subr.mxu0 0.0
    %199 = vmatpush1.msra.mxu0 0.0
    %200 = vmatprep.subr.mxu0 0.0
    %201 = vmatpush1.msra.mxu0 0.0
    %202 = vmatprep.subr.mxu0 0.0
    %203 = vmatpush1.msra.mxu0 0.0
    %204 = vmatprep.mubr.f32.mxu0 0.0
    %205 = vmatmul.mubr.f32.gmra.mrb[0].mxu0 %v117
    %v206 = vpop.f32.mrb[0].mxu0
    %v207 = vadd.f32 %v98, %v206
    %v208 = vpop.f32.mrb[0].mxu0
    %v209 = vadd.f32 %v102, %v208
    %210 = vmatprep.mubr.f32.mxu0 0.0
    %211 = vmatmul.mubr.f32.gmra.mrb[0].mxu0 %v120
    %v212 = vpop.f32.mrb[0].mxu0
    %v213 = vadd.f32 %v98, %v212
    %v214 = vpop.f32.mrb[0].mxu0
    %v215 = vadd.f32 %v102, %v214
    %216 = vmatprep.mubr.f32.mxu0 0.0
    %217 = vmatmul.mubr.f32.gmra.mrb[0].mxu0 %v123
    %v218 = vpop.f32.mrb[0].mxu0
    %v219 = vadd.f32 %v98, %v218
    %v220 = vpop.f32.mrb[0].mxu0
    %v221 = vadd.f32 %v102, %v220
    %222 = vmatprep.mubr.f32.mxu0 0.0
    %223 = vmatmul.mubr.f32.gmra.mrb[0].mxu0 %v126
    %v224 = vpop.f32.mrb[0].mxu0
    %v225 = vadd.f32 %v98, %v224
    %v226 = vpop.f32.mrb[0].mxu0
    %v227 = vadd.f32 %v102, %v226
    %228 = vmatprep.mubr.f32.mxu0 0.0
    %229 = vmatmul.mubr.f32.gmra.mrb[0].mxu0 %v129
    %v230 = vpop.f32.mrb[0].mxu0
    %v231 = vadd.f32 %v98, %v230
    %v232 = vpop.f32.mrb[0].mxu0
    %v233 = vadd.f32 %v102, %v232
    %234 = vmatprep.mubr.f32.mxu0 0.0
    %235 = vmatmul.mubr.f32.gmra.mrb[0].mxu0 %v132
    %v236 = vpop.f32.mrb[0].mxu0
    %v237 = vadd.f32 %v98, %v236
    %v238 = vpop.f32.mrb[0].mxu0
    %v239 = vadd.f32 %v102, %v238
    %240 = vmatprep.mubr.f32.mxu0 0.0
    %241 = vmatmul.mubr.f32.gmra.mrb[0].mxu0 %v135
    %v242 = vpop.f32.mrb[0].mxu0
    %v243 = vadd.f32 %v98, %v242
    %v244 = vpop.f32.mrb[0].mxu0
    %v245 = vadd.f32 %v102, %v244
    %246 = vmatprep.mubr.f32.mxu0 0.0
    %247 = vmatmul.mubr.f32.gmra.mrb[0].mxu0 %v138
    %v248 = vpop.f32.mrb[0].mxu0
    %v249 = vadd.f32 %v98, %v248
    %v250 = vpop.f32.mrb[0].mxu0
    %v251 = vadd.f32 %v102, %v250
    %252 = vdwg.mxu0
    %253 = vmatprep.subr.mxu0 %v92
    %254 = vmatpush1.msra.mxu0 %v91
    %255 = vmatprep.subr.mxu0 0.0
    %256 = vmatpush1.msra.mxu0 0.0
    %257 = vmatprep.subr.mxu0 0.0
    %258 = vmatpush1.msra.mxu0 0.0
    %259 = vmatprep.subr.mxu0 0.0
    %260 = vmatpush1.msra.mxu0 0.0
    %261 = vmatprep.subr.mxu0 0.0
    %262 = vmatpush1.msra.mxu0 0.0
    %263 = vmatprep.subr.mxu0 0.0
    %264 = vmatpush1.msra.mxu0 0.0
    %265 = vmatprep.subr.mxu0 0.0
    %266 = vmatpush1.msra.mxu0 0.0
    %267 = vmatprep.subr.mxu0 0.0
    %268 = vmatpush1.msra.mxu0 0.0
    %269 = vmatprep.subr.mxu0 0.0
    %270 = vmatpush1.msra.mxu0 0.0
    %271 = vmatprep.subr.mxu0 0.0
    %272 = vmatpush1.msra.mxu0 0.0
    %273 = vmatprep.subr.mxu0 0.0
    %274 = vmatpush1.msra.mxu0 0.0
    %275 = vmatprep.subr.mxu0 0.0
    %276 = vmatpush1.msra.mxu0 0.0
    %277 = vmatprep.subr.mxu0 0.0
    %278 = vmatpush1.msra.mxu0 0.0
    %279 = vmatprep.subr.mxu0 0.0
    %280 = vmatpush1.msra.mxu0 0.0
    %281 = vmatprep.subr.mxu0 0.0
    %282 = vmatpush1.msra.mxu0 0.0
    %283 = vmatprep.subr.mxu0 0.0
    %284 = vmatpush1.msra.mxu0 0.0
    %285 = vmatprep.subr.mxu0 0.0
    %286 = vmatpush1.msra.mxu0 0.0
    %287 = vmatprep.subr.mxu0 0.0
    %288 = vmatpush1.msra.mxu0 0.0
    %289 = vmatprep.subr.mxu0 0.0
    %290 = vmatpush1.msra.mxu0 0.0
    %291 = vmatprep.subr.mxu0 0.0
    %292 = vmatpush1.msra.mxu0 0.0
    %293 = vmatprep.subr.mxu0 0.0
    %294 = vmatpush1.msra.mxu0 0.0
    %295 = vmatprep.subr.mxu0 0.0
    %296 = vmatpush1.msra.mxu0 0.0
    %297 = vmatprep.subr.mxu0 0.0
    %298 = vmatpush1.msra.mxu0 0.0
    %299 = vmatprep.subr.mxu0 0.0
    %300 = vmatpush1.msra.mxu0 0.0
    %301 = vmatprep.subr.mxu0 0.0
    %302 = vmatpush1.msra.mxu0 0.0
    %303 = vmatprep.subr.mxu0 0.0
    %304 = vmatpush1.msra.mxu0 0.0
    %305 = vmatprep.subr.mxu0 0.0
    %306 = vmatpush1.msra.mxu0 0.0
    %307 = vmatprep.subr.mxu0 0.0
    %308 = vmatpush1.msra.mxu0 0.0
    %309 = vmatprep.subr.mxu0 0.0
    %310 = vmatpush1.msra.mxu0 0.0
    %311 = vmatprep.subr.mxu0 0.0
    %312 = vmatpush1.msra.mxu0 0.0
    %313 = vmatprep.subr.mxu0 0.0
    %314 = vmatpush1.msra.mxu0 0.0
    %315 = vmatprep.subr.mxu0 0.0
    %316 = vmatpush1.msra.mxu0 0.0
    %317 = vmatprep.mubr.f32.mxu0 0.0
    %318 = vmatmul.mubr.f32.gmra.mrb[0].mxu0 %v117
    %v319 = vpop.f32.mrb[0].mxu0
    %v320 = vadd.f32 %v106, %v319
    %v321 = vpop.f32.mrb[0].mxu0
    %v322 = vadd.f32 %v110, %v321
    %323 = vmatprep.mubr.f32.mxu0 0.0
    %324 = vmatmul.mubr.f32.gmra.mrb[0].mxu0 %v120
    %v325 = vpop.f32.mrb[0].mxu0
    %v326 = vadd.f32 %v106, %v325
    %v327 = vpop.f32.mrb[0].mxu0
    %v328 = vadd.f32 %v110, %v327
    %329 = vmatprep.mubr.f32.mxu0 0.0
    %330 = vmatmul.mubr.f32.gmra.mrb[0].mxu0 %v123
    %v331 = vpop.f32.mrb[0].mxu0
    %v332 = vadd.f32 %v106, %v331
    %v333 = vpop.f32.mrb[0].mxu0
    %v334 = vadd.f32 %v110, %v333
    %335 = vmatprep.mubr.f32.mxu0 0.0
    %336 = vmatmul.mubr.f32.gmra.mrb[0].mxu0 %v126
    %v337 = vpop.f32.mrb[0].mxu0
    %v338 = vadd.f32 %v106, %v337
    %v339 = vpop.f32.mrb[0].mxu0
    %v340 = vadd.f32 %v110, %v339
    %341 = vmatprep.mubr.f32.mxu0 0.0
    %342 = vmatmul.mubr.f32.gmra.mrb[0].mxu0 %v129
    %v343 = vpop.f32.mrb[0].mxu0
    %v344 = vadd.f32 %v106, %v343
    %v345 = vpop.f32.mrb[0].mxu0
    %v346 = vadd.f32 %v110, %v345
    %347 = vmatprep.mubr.f32.mxu0 0.0
    %348 = vmatmul.mubr.f32.gmra.mrb[0].mxu0 %v132
    %v349 = vpop.f32.mrb[0].mxu0
    %v350 = vadd.f32 %v106, %v349
    %v351 = vpop.f32.mrb[0].mxu0
    %v352 = vadd.f32 %v110, %v351
    %353 = vmatprep.mubr.f32.mxu0 0.0
    %354 = vmatmul.mubr.f32.gmra.mrb[0].mxu0 %v135
    %v355 = vpop.f32.mrb[0].mxu0
    %v356 = vadd.f32 %v106, %v355
    %v357 = vpop.f32.mrb[0].mxu0
    %v358 = vadd.f32 %v110, %v357
    %359 = vmatprep.mubr.f32.mxu0 0.0
    %360 = vmatmul.mubr.f32.gmra.mrb[0].mxu0 %v138
    %v361 = vpop.f32.mrb[0].mxu0
    %v362 = vadd.f32 %v106, %v361
    %v363 = vpop.f32.mrb[0].mxu0
    %v364 = vadd.f32 %v110, %v363
    %365 = vdwg.mxu0
    %v366 = vld [vmem:[#allocation2] sm:$0xff]
    %v367 = vld [vmem:[#allocation2 + $0x8] sm:$0xff]
    %v368 = vld [vmem:[#allocation2 + $0x10] sm:$0xff]
    %v369 = vld [vmem:[#allocation2 + $0x18] sm:$0xff]
    %v370 = vld [vmem:[#allocation2 + $0x20] sm:$0xff]
    %v371 = vld [vmem:[#allocation2 + $0x28] sm:$0xff]
    %v372 = vld [vmem:[#allocation2 + $0x30] sm:$0xff]
    %v373 = vld [vmem:[#allocation2 + $0x38] sm:$0xff]
    %v374 = vld [vmem:[#allocation2 + $0x40] sm:$0xff]
    %v375 = vld [vmem:[#allocation2 + $0x48] sm:$0xff]
    %v376 = vld [vmem:[#allocation2 + $0x50] sm:$0xff]
    %v377 = vld [vmem:[#allocation2 + $0x58] sm:$0xff]
    %v378 = vld [vmem:[#allocation2 + $0x60] sm:$0xff]
    %v379 = vld [vmem:[#allocation2 + $0x68] sm:$0xff]
    %v380 = vld [vmem:[#allocation2 + $0x70] sm:$0xff]
    %v381 = vld [vmem:[#allocation2 + $0x78] sm:$0xff]
    %v382 = vld [vmem:[#allocation2 + $0x80] sm:$0xff]
    %v383 = vld [vmem:[#allocation2 + $0x88] sm:$0xff]
    %v384 = vld [vmem:[#allocation2 + $0x90] sm:$0xff]
    %v385 = vld [vmem:[#allocation2 + $0x98] sm:$0xff]
    %v386 = vld [vmem:[#allocation2 + $0xa0] sm:$0xff]
    %v387 = vld [vmem:[#allocation2 + $0xa8] sm:$0xff]
    %v388 = vld [vmem:[#allocation2 + $0xb0] sm:$0xff]
    %v389 = vld [vmem:[#allocation2 + $0xb8] sm:$0xff]
    %v390 = vld [vmem:[#allocation2 + $0xc0] sm:$0xff]
    %v391 = vld [vmem:[#allocation2 + $0xc8] sm:$0xff]
    %v392 = vld [vmem:[#allocation2 + $0xd0] sm:$0xff]
    %v393 = vld [vmem:[#allocation2 + $0xd8] sm:$0xff]
    %v394 = vld [vmem:[#allocation2 + $0xe0] sm:$0xff]
    %v395 = vld [vmem:[#allocation2 + $0xe8] sm:$0xff]
    %v396 = vld [vmem:[#allocation2 + $0xf0] sm:$0xff]
    %v397 = vld [vmem:[#allocation2 + $0xf8] sm:$0xff]
    %v398 = vld [vmem:[%s8] sm:$0xff]
    %v399 = vld [vmem:[%s9] sm:$0xff]
    %v400 = vpack.c.bf16 %v398, %v398
    %v433 = vunpack.c.l.b16 %v366
    %v434 = vunpack.c.h.b16 %v366
    %v435 = vunpack.c.l.b16 %v367
    %v436 = vunpack.c.h.b16 %v367
    %v437 = vunpack.c.l.b16 %v368
    %v438 = vunpack.c.h.b16 %v368
    %v439 = vunpack.c.l.b16 %v369
    %v440 = vunpack.c.h.b16 %v369
    %v441 = vunpack.c.l.b16 %v370
    %v442 = vunpack.c.h.b16 %v370
    %v443 = vunpack.c.l.b16 %v371
    %v444 = vunpack.c.h.b16 %v371
    %v445 = vunpack.c.l.b16 %v372
    %v446 = vunpack.c.h.b16 %v372
    %v447 = vunpack.c.l.b16 %v373
    %v448 = vunpack.c.h.b16 %v373
    %v449 = vunpack.c.l.b16 %v374
    %v450 = vunpack.c.h.b16 %v374
    %v451 = vunpack.c.l.b16 %v375
    %v452 = vunpack.c.h.b16 %v375
    %v453 = vunpack.c.l.b16 %v376
    %v454 = vunpack.c.h.b16 %v376
    %v455 = vunpack.c.l.b16 %v377
    %v456 = vunpack.c.h.b16 %v377
    %v457 = vunpack.c.l.b16 %v378
    %v458 = vunpack.c.h.b16 %v378
    %v459 = vunpack.c.l.b16 %v379
    %v460 = vunpack.c.h.b16 %v379
    %v461 = vunpack.c.l.b16 %v380
    %v462 = vunpack.c.h.b16 %v380
    %v463 = vunpack.c.l.b16 %v381
    %v464 = vunpack.c.h.b16 %v381
    %v465 = vunpack.c.l.b16 %v382
    %v466 = vunpack.c.h.b16 %v382
    %v467 = vunpack.c.l.b16 %v383
    %v468 = vunpack.c.h.b16 %v383
    %v469 = vunpack.c.l.b16 %v384
    %v470 = vunpack.c.h.b16 %v384
    %v471 = vunpack.c.l.b16 %v385
    %v472 = vunpack.c.h.b16 %v385
    %v473 = vunpack.c.l.b16 %v386
    %v474 = vunpack.c.h.b16 %v386
    %v475 = vunpack.c.l.b16 %v387
    %v476 = vunpack.c.h.b16 %v387
    %v477 = vunpack.c.l.b16 %v388
    %v478 = vunpack.c.h.b16 %v388
    %v479 = vunpack.c.l.b16 %v389
    %v480 = vunpack.c.h.b16 %v389
    %v481 = vunpack.c.l.b16 %v390
    %v482 = vunpack.c.h.b16 %v390
    %v483 = vunpack.c.l.b16 %v391
    %v484 = vunpack.c.h.b16 %v391
    %v485 = vunpack.c.l.b16 %v392
    %v486 = vunpack.c.h.b16 %v392
    %v487 = vunpack.c.l.b16 %v393
    %v488 = vunpack.c.h.b16 %v393
    %v489 = vunpack.c.l.b16 %v394
    %v490 = vunpack.c.h.b16 %v394
    %v491 = vunpack.c.l.b16 %v395
    %v492 = vunpack.c.h.b16 %v395
    %v493 = vunpack.c.l.b16 %v396
    %v494 = vunpack.c.h.b16 %v396
    %v495 = vunpack.c.l.b16 %v397
    %v496 = vunpack.c.h.b16 %v397
    %v497 = vpack.c.b16 %v437, %v433
    %v498 = vpack.c.b16 %v438, %v434
    %v499 = vpack.c.b16 %v439, %v435
    %v500 = vpack.c.b16 %v440, %v436
    %v501 = vpack.c.b16 %v445, %v441
    %v502 = vpack.c.b16 %v446, %v442
    %v503 = vpack.c.b16 %v447, %v443
    %v504 = vpack.c.b16 %v448, %v444
    %v505 = vpack.c.b16 %v453, %v449
    %v506 = vpack.c.b16 %v454, %v450
    %v507 = vpack.c.b16 %v455, %v451
    %v508 = vpack.c.b16 %v456, %v452
    %v509 = vpack.c.b16 %v461, %v457
    %v510 = vpack.c.b16 %v462, %v458
    %v511 = vpack.c.b16 %v463, %v459
    %v512 = vpack.c.b16 %v464, %v460
    %v513 = vpack.c.b16 %v469, %v465
    %v514 = vpack.c.b16 %v470, %v466
    %v515 = vpack.c.b16 %v471, %v467
    %v516 = vpack.c.b16 %v472, %v468
    %v517 = vpack.c.b16 %v477, %v473
    %v518 = vpack.c.b16 %v478, %v474
    %v519 = vpack.c.b16 %v479, %v475
    %v520 = vpack.c.b16 %v480, %v476
    %v521 = vpack.c.b16 %v485, %v481
    %v522 = vpack.c.b16 %v486, %v482
    %v523 = vpack.c.b16 %v487, %v483
    %v524 = vpack.c.b16 %v488, %v484
    %v525 = vpack.c.b16 %v493, %v489
    %v526 = vpack.c.b16 %v494, %v490
    %v527 = vpack.c.b16 %v495, %v491
    %v528 = vpack.c.b16 %v496, %v492
    %561 = vmatprep.subr.bf16.mxu0 %v498
    %562 = vmatpush1.bf16.msra.mxu0 %v497
    %563 = vmatprep.subr.bf16.mxu0 %v502
    %564 = vmatpush1.bf16.msra.mxu0 %v501
    %565 = vmatprep.subr.bf16.mxu0 %v506
    %566 = vmatpush1.bf16.msra.mxu0 %v505
    %567 = vmatprep.subr.bf16.mxu0 %v510
    %568 = vmatpush1.bf16.msra.mxu0 %v509
    %569 = vmatprep.subr.bf16.mxu0 %v514
    %570 = vmatpush1.bf16.msra.mxu0 %v513
    %571 = vmatprep.subr.bf16.mxu0 %v518
    %572 = vmatpush1.bf16.msra.mxu0 %v517
    %573 = vmatprep.subr.bf16.mxu0 %v522
    %574 = vmatpush1.bf16.msra.mxu0 %v521
    %575 = vmatprep.subr.bf16.mxu0 %v526
    %576 = vmatpush1.bf16.msra.mxu0 %v525
    %577 = vmatprep.subr.bf16.mxu0 0
    %578 = vmatpush1.bf16.msra.mxu0 0
    %579 = vmatprep.subr.bf16.mxu0 0
    %580 = vmatpush1.bf16.msra.mxu0 0
    %581 = vmatprep.subr.bf16.mxu0 0
    %582 = vmatpush1.bf16.msra.mxu0 0
    %583 = vmatprep.subr.bf16.mxu0 0
    %584 = vmatpush1.bf16.msra.mxu0 0
    %585 = vmatprep.subr.bf16.mxu0 0
    %586 = vmatpush1.bf16.msra.mxu0 0
    %587 = vmatprep.subr.bf16.mxu0 0
    %588 = vmatpush1.bf16.msra.mxu0 0
    %589 = vmatprep.subr.bf16.mxu0 0
    %590 = vmatpush1.bf16.msra.mxu0 0
    %591 = vmatprep.subr.bf16.mxu0 0
    %592 = vmatpush1.bf16.msra.mxu0 0
    %593 = vmatprep.mubr.bf16.mxu0 0
    %594 = vmatmul.mubr.bf16.gmra.mrb[0].mxu0 %v400
    %v595 = vpop.f32.mrb[0].mxu0
    %v596 = vadd.f32 0.0, %v595
    %v597 = vpop.f32.mrb[0].mxu0
    %v598 = vadd.f32 0.0, %v597
    %v599 = vpop.f32.mrb[0].mxu0
    %v600 = vpop.f32.mrb[0].mxu0
    %601 = vdwg.mxu0
    %602 = vmatprep.subr.bf16.mxu0 %v500
    %603 = vmatpush1.bf16.msra.mxu0 %v499
    %604 = vmatprep.subr.bf16.mxu0 %v504
    %605 = vmatpush1.bf16.msra.mxu0 %v503
    %606 = vmatprep.subr.bf16.mxu0 %v508
    %607 = vmatpush1.bf16.msra.mxu0 %v507
    %608 = vmatprep.subr.bf16.mxu0 %v512
    %609 = vmatpush1.bf16.msra.mxu0 %v511
    %610 = vmatprep.subr.bf16.mxu0 %v516
    %611 = vmatpush1.bf16.msra.mxu0 %v515
    %612 = vmatprep.subr.bf16.mxu0 %v520
    %613 = vmatpush1.bf16.msra.mxu0 %v519
    %614 = vmatprep.subr.bf16.mxu0 %v524
    %615 = vmatpush1.bf16.msra.mxu0 %v523
    %616 = vmatprep.subr.bf16.mxu0 %v528
    %617 = vmatpush1.bf16.msra.mxu0 %v527
    %618 = vmatprep.subr.bf16.mxu0 0
    %619 = vmatpush1.bf16.msra.mxu0 0
    %620 = vmatprep.subr.bf16.mxu0 0
    %621 = vmatpush1.bf16.msra.mxu0 0
    %622 = vmatprep.subr.bf16.mxu0 0
    %623 = vmatpush1.bf16.msra.mxu0 0
    %624 = vmatprep.subr.bf16.mxu0 0
    %625 = vmatpush1.bf16.msra.mxu0 0
    %626 = vmatprep.subr.bf16.mxu0 0
    %627 = vmatpush1.bf16.msra.mxu0 0
    %628 = vmatprep.subr.bf16.mxu0 0
    %629 = vmatpush1.bf16.msra.mxu0 0
    %630 = vmatprep.subr.bf16.mxu0 0
    %631 = vmatpush1.bf16.msra.mxu0 0
    %632 = vmatprep.subr.bf16.mxu0 0
    %633 = vmatpush1.bf16.msra.mxu0 0
    %634 = vmatprep.mubr.bf16.mxu0 0
    %635 = vmatmul.mubr.bf16.gmra.mrb[0].mxu0 %v400
    %v636 = vpop.f32.mrb[0].mxu0
    %v637 = vadd.f32 0.0, %v636
    %v638 = vpop.f32.mrb[0].mxu0
    %v639 = vadd.f32 0.0, %v638
    %v640 = vpop.f32.mrb[0].mxu0
    %v641 = vpop.f32.mrb[0].mxu0
    %642 = vdwg.mxu0
    %v643 = vadd.f32 %v207, %v596
    %v644 = vadd.f32 %v209, %v598
    %v645 = vadd.f32 %v320, %v637
    %v646 = vadd.f32 %v322, %v639
    %v647 = vxor.u32 %v643, 2147483648
    %v648 = vmul.f32 %v647, 1.442695
    %v649 = vpow.pop %v648
    %v650 = vadd.f32 %v649, 1.0
    %v651 = vrcp.pop %v650
    %v652 = vmul.f32 1.0, %v651
    %v653 = vxor.u32 %v644, 2147483648
    %v654 = vmul.f32 %v653, 1.442695
    %v655 = vpow.pop %v654
    %v656 = vadd.f32 %v655, 1.0
    %v657 = vrcp.pop %v656
    %v658 = vmul.f32 1.0, %v657
    %v659 = vtanh.pop %v645
    %v660 = vxor.u32 %v646, 2147483648
    %v661 = vmul.f32 %v660, 1.442695
    %v662 = vpow.pop %v661
    %v663 = vadd.f32 %v662, 1.0
    %v664 = vrcp.pop %v663
    %v665 = vmul.f32 1.0, %v664
    %v666 = vmul.f32 %v658, %v399
    %v667 = vmul.f32 %v652, %v659
    %v668 = vadd.f32 %v666, %v667
    %v669 = vtanh.pop %v668
    %v670 = vmul.f32 %v665, %v669
    %v671 = vpack.c.bf16 %v670, %v670
    %672 = vmatprep.subr.bf16.mxu0 %v498
    %673 = vmatpush1.bf16.msra.mxu0 %v497
    %674 = vmatprep.subr.bf16.mxu0 %v502
    %675 = vmatpush1.bf16.msra.mxu0 %v501
    %676 = vmatprep.subr.bf16.mxu0 %v506
    %677 = vmatpush1.bf16.msra.mxu0 %v505
    %678 = vmatprep.subr.bf16.mxu0 %v510
    %679 = vmatpush1.bf16.msra.mxu0 %v509
    %680 = vmatprep.subr.bf16.mxu0 %v514
    %681 = vmatpush1.bf16.msra.mxu0 %v513
    %682 = vmatprep.subr.bf16.mxu0 %v518
    %683 = vmatpush1.bf16.msra.mxu0 %v517
    %684 = vmatprep.subr.bf16.mxu0 %v522
    %685 = vmatpush1.bf16.msra.mxu0 %v521
    %686 = vmatprep.subr.bf16.mxu0 %v526
    %687 = vmatpush1.bf16.msra.mxu0 %v525
    %688 = vmatprep.subr.bf16.mxu0 0
    %689 = vmatpush1.bf16.msra.mxu0 0
    %690 = vmatprep.subr.bf16.mxu0 0
    %691 = vmatpush1.bf16.msra.mxu0 0
    %692 = vmatprep.subr.bf16.mxu0 0
    %693 = vmatpush1.bf16.msra.mxu0 0
    %694 = vmatprep.subr.bf16.mxu0 0
    %695 = vmatpush1.bf16.msra.mxu0 0
    %696 = vmatprep.subr.bf16.mxu0 0
    %697 = vmatpush1.bf16.msra.mxu0 0
    %698 = vmatprep.subr.bf16.mxu0 0
    %699 = vmatpush1.bf16.msra.mxu0 0
    %700 = vmatprep.subr.bf16.mxu0 0
    %701 = vmatpush1.bf16.msra.mxu0 0
    %702 = vmatprep.subr.bf16.mxu0 0
    %703 = vmatpush1.bf16.msra.mxu0 0
    %704 = vmatprep.mubr.bf16.mxu0 0
    %705 = vmatmul.mubr.bf16.gmra.mrb[0].mxu0 %v671
    %v706 = vpop.f32.mrb[0].mxu0
    %v707 = vadd.f32 0.0, %v706
    %v708 = vpop.f32.mrb[0].mxu0
    %v709 = vadd.f32 0.0, %v708
    %v710 = vpop.f32.mrb[0].mxu0
    %v711 = vpop.f32.mrb[0].mxu0
    %712 = vdwg.mxu0
    %713 = vmatprep.subr.bf16.mxu0 %v500
    %714 = vmatpush1.bf16.msra.mxu0 %v499
    %715 = vmatprep.subr.bf16.mxu0 %v504
    %716 = vmatpush1.bf16.msra.mxu0 %v503
    %717 = vmatprep.subr.bf16.mxu0 %v508
    %718 = vmatpush1.bf16.msra.mxu0 %v507
    %719 = vmatprep.subr.bf16.mxu0 %v512
    %720 = vmatpush1.bf16.msra.mxu0 %v511
    %721 = vmatprep.subr.bf16.mxu0 %v516
    %722 = vmatpush1.bf16.msra.mxu0 %v515
    %723 = vmatprep.subr.bf16.mxu0 %v520
    %724 = vmatpush1.bf16.msra.mxu0 %v519
    %725 = vmatprep.subr.bf16.mxu0 %v524
    %726 = vmatpush1.bf16.msra.mxu0 %v523
    %727 = vmatprep.subr.bf16.mxu0 %v528
    %728 = vmatpush1.bf16.msra.mxu0 %v527
    %729 = vmatprep.subr.bf16.mxu0 0
    %730 = vmatpush1.bf16.msra.mxu0 0
    %731 = vmatprep.subr.bf16.mxu0 0
    %732 = vmatpush1.bf16.msra.mxu0 0
    %733 = vmatprep.subr.bf16.mxu0 0
    %734 = vmatpush1.bf16.msra.mxu0 0
    %735 = vmatprep.subr.bf16.mxu0 0
    %736 = vmatpush1.bf16.msra.mxu0 0
    %737 = vmatprep.subr.bf16.mxu0 0
    %738 = vmatpush1.bf16.msra.mxu0 0
    %739 = vmatprep.subr.bf16.mxu0 0
    %740 = vmatpush1.bf16.msra.mxu0 0
    %741 = vmatprep.subr.bf16.mxu0 0
    %742 = vmatpush1.bf16.msra.mxu0 0
    %743 = vmatprep.subr.bf16.mxu0 0
    %744 = vmatpush1.bf16.msra.mxu0 0
    %745 = vmatprep.mubr.bf16.mxu0 0
    %746 = vmatmul.mubr.bf16.gmra.mrb[0].mxu0 %v671
    %v747 = vpop.f32.mrb[0].mxu0
    %v748 = vadd.f32 0.0, %v747
    %v749 = vpop.f32.mrb[0].mxu0
    %v750 = vadd.f32 0.0, %v749
    %v751 = vpop.f32.mrb[0].mxu0
    %v752 = vpop.f32.mrb[0].mxu0
    %753 = vdwg.mxu0
    %v754 = vadd.f32 %v213, %v707
    %v755 = vadd.f32 %v215, %v709
    %v756 = vadd.f32 %v326, %v748
    %v757 = vadd.f32 %v328, %v750
    %v758 = vxor.u32 %v754, 2147483648
    %v759 = vmul.f32 %v758, 1.442695
    %v760 = vpow.pop %v759
    %v761 = vadd.f32 %v760, 1.0
    %v762 = vrcp.pop %v761
    %v763 = vmul.f32 1.0, %v762
    %v764 = vxor.u32 %v755, 2147483648
    %v765 = vmul.f32 %v764, 1.442695
    %v766 = vpow.pop %v765
    %v767 = vadd.f32 %v766, 1.0
    %v768 = vrcp.pop %v767
    %v769 = vmul.f32 1.0, %v768
    %v770 = vtanh.pop %v756
    %v771 = vxor.u32 %v757, 2147483648
    %v772 = vmul.f32 %v771, 1.442695
    %v773 = vpow.pop %v772
    %v774 = vadd.f32 %v773, 1.0
    %v775 = vrcp.pop %v774
    %v776 = vmul.f32 1.0, %v775
    %v777 = vmul.f32 %v769, %v668
    %v778 = vmul.f32 %v763, %v770
    %v779 = vadd.f32 %v777, %v778
    %v780 = vtanh.pop %v779
    %v781 = vmul.f32 %v776, %v780
    %v782 = vpack.c.bf16 %v781, %v781
    %783 = vmatprep.subr.bf16.mxu0 %v498
    %784 = vmatpush1.bf16.msra.mxu0 %v497
    %785 = vmatprep.subr.bf16.mxu0 %v502
    %786 = vmatpush1.bf16.msra.mxu0 %v501
    %787 = vmatprep.subr.bf16.mxu0 %v506
    %788 = vmatpush1.bf16.msra.mxu0 %v505
    %789 = vmatprep.subr.bf16.mxu0 %v510
    %790 = vmatpush1.bf16.msra.mxu0 %v509
    %791 = vmatprep.subr.bf16.mxu0 %v514
    %792 = vmatpush1.bf16.msra.mxu0 %v513
    %793 = vmatprep.subr.bf16.mxu0 %v518
    %794 = vmatpush1.bf16.msra.mxu0 %v517
    %795 = vmatprep.subr.bf16.mxu0 %v522
    %796 = vmatpush1.bf16.msra.mxu0 %v521
    %797 = vmatprep.subr.bf16.mxu0 %v526
    %798 = vmatpush1.bf16.msra.mxu0 %v525
    %799 = vmatprep.subr.bf16.mxu0 0
    %800 = vmatpush1.bf16.msra.mxu0 0
    %801 = vmatprep.subr.bf16.mxu0 0
    %802 = vmatpush1.bf16.msra.mxu0 0
    %803 = vmatprep.subr.bf16.mxu0 0
    %804 = vmatpush1.bf16.msra.mxu0 0
    %805 = vmatprep.subr.bf16.mxu0 0
    %806 = vmatpush1.bf16.msra.mxu0 0
    %807 = vmatprep.subr.bf16.mxu0 0
    %808 = vmatpush1.bf16.msra.mxu0 0
    %809 = vmatprep.subr.bf16.mxu0 0
    %810 = vmatpush1.bf16.msra.mxu0 0
    %811 = vmatprep.subr.bf16.mxu0 0
    %812 = vmatpush1.bf16.msra.mxu0 0
    %813 = vmatprep.subr.bf16.mxu0 0
    %814 = vmatpush1.bf16.msra.mxu0 0
    %815 = vmatprep.mubr.bf16.mxu0 0
    %816 = vmatmul.mubr.bf16.gmra.mrb[0].mxu0 %v782
    %v817 = vpop.f32.mrb[0].mxu0
    %v818 = vadd.f32 0.0, %v817
    %v819 = vpop.f32.mrb[0].mxu0
    %v820 = vadd.f32 0.0, %v819
    %v821 = vpop.f32.mrb[0].mxu0
    %v822 = vpop.f32.mrb[0].mxu0
    %823 = vdwg.mxu0
    %824 = vmatprep.subr.bf16.mxu0 %v500
    %825 = vmatpush1.bf16.msra.mxu0 %v499
    %826 = vmatprep.subr.bf16.mxu0 %v504
    %827 = vmatpush1.bf16.msra.mxu0 %v503
    %828 = vmatprep.subr.bf16.mxu0 %v508
    %829 = vmatpush1.bf16.msra.mxu0 %v507
    %830 = vmatprep.subr.bf16.mxu0 %v512
    %831 = vmatpush1.bf16.msra.mxu0 %v511
    %832 = vmatprep.subr.bf16.mxu0 %v516
    %833 = vmatpush1.bf16.msra.mxu0 %v515
    %834 = vmatprep.subr.bf16.mxu0 %v520
    %835 = vmatpush1.bf16.msra.mxu0 %v519
    %836 = vmatprep.subr.bf16.mxu0 %v524
    %837 = vmatpush1.bf16.msra.mxu0 %v523
    %838 = vmatprep.subr.bf16.mxu0 %v528
    %839 = vmatpush1.bf16.msra.mxu0 %v527
    %840 = vmatprep.subr.bf16.mxu0 0
    %841 = vmatpush1.bf16.msra.mxu0 0
    %842 = vmatprep.subr.bf16.mxu0 0
    %843 = vmatpush1.bf16.msra.mxu0 0
    %844 = vmatprep.subr.bf16.mxu0 0
    %845 = vmatpush1.bf16.msra.mxu0 0
    %846 = vmatprep.subr.bf16.mxu0 0
    %847 = vmatpush1.bf16.msra.mxu0 0
    %848 = vmatprep.subr.bf16.mxu0 0
    %849 = vmatpush1.bf16.msra.mxu0 0
    %850 = vmatprep.subr.bf16.mxu0 0
    %851 = vmatpush1.bf16.msra.mxu0 0
    %852 = vmatprep.subr.bf16.mxu0 0
    %853 = vmatpush1.bf16.msra.mxu0 0
    %854 = vmatprep.subr.bf16.mxu0 0
    %855 = vmatpush1.bf16.msra.mxu0 0
    %856 = vmatprep.mubr.bf16.mxu0 0
    %857 = vmatmul.mubr.bf16.gmra.mrb[0].mxu0 %v782
    %v858 = vpop.f32.mrb[0].mxu0
    %v859 = vadd.f32 0.0, %v858
    %v860 = vpop.f32.mrb[0].mxu0
    %v861 = vadd.f32 0.0, %v860
    %v862 = vpop.f32.mrb[0].mxu0
    %v863 = vpop.f32.mrb[0].mxu0
    %864 = vdwg.mxu0
    %v865 = vadd.f32 %v219, %v818
    %v866 = vadd.f32 %v221, %v820
    %v867 = vadd.f32 %v332, %v859
    %v868 = vadd.f32 %v334, %v861
    %v869 = vxor.u32 %v865, 2147483648
    %v870 = vmul.f32 %v869, 1.442695
    %v871 = vpow.pop %v870
    %v872 = vadd.f32 %v871, 1.0
    %v873 = vrcp.pop %v872
    %v874 = vmul.f32 1.0, %v873
    %v875 = vxor.u32 %v866, 2147483648
    %v876 = vmul.f32 %v875, 1.442695
    %v877 = vpow.pop %v876
    %v878 = vadd.f32 %v877, 1.0
    %v879 = vrcp.pop %v878
    %v880 = vmul.f32 1.0, %v879
    %v881 = vtanh.pop %v867
    %v882 = vxor.u32 %v868, 2147483648
    %v883 = vmul.f32 %v882, 1.442695
    %v884 = vpow.pop %v883
    %v885 = vadd.f32 %v884, 1.0
    %v886 = vrcp.pop %v885
    %v887 = vmul.f32 1.0, %v886
    %v888 = vmul.f32 %v880, %v779
    %v889 = vmul.f32 %v874, %v881
    %v890 = vadd.f32 %v888, %v889
    %v891 = vtanh.pop %v890
    %v892 = vmul.f32 %v887, %v891
    %v893 = vpack.c.bf16 %v892, %v892
    %894 = vmatprep.subr.bf16.mxu0 %v498
    %895 = vmatpush1.bf16.msra.mxu0 %v497
    %896 = vmatprep.subr.bf16.mxu0 %v502
    %897 = vmatpush1.bf16.msra.mxu0 %v501
    %898 = vmatprep.subr.bf16.mxu0 %v506
    %899 = vmatpush1.bf16.msra.mxu0 %v505
    %900 = vmatprep.subr.bf16.mxu0 %v510
    %901 = vmatpush1.bf16.msra.mxu0 %v509
    %902 = vmatprep.subr.bf16.mxu0 %v514
    %903 = vmatpush1.bf16.msra.mxu0 %v513
    %904 = vmatprep.subr.bf16.mxu0 %v518
    %905 = vmatpush1.bf16.msra.mxu0 %v517
    %906 = vmatprep.subr.bf16.mxu0 %v522
    %907 = vmatpush1.bf16.msra.mxu0 %v521
    %908 = vmatprep.subr.bf16.mxu0 %v526
    %909 = vmatpush1.bf16.msra.mxu0 %v525
    %910 = vmatprep.subr.bf16.mxu0 0
    %911 = vmatpush1.bf16.msra.mxu0 0
    %912 = vmatprep.subr.bf16.mxu0 0
    %913 = vmatpush1.bf16.msra.mxu0 0
    %914 = vmatprep.subr.bf16.mxu0 0
    %915 = vmatpush1.bf16.msra.mxu0 0
    %916 = vmatprep.subr.bf16.mxu0 0
    %917 = vmatpush1.bf16.msra.mxu0 0
    %918 = vmatprep.subr.bf16.mxu0 0
    %919 = vmatpush1.bf16.msra.mxu0 0
    %920 = vmatprep.subr.bf16.mxu0 0
    %921 = vmatpush1.bf16.msra.mxu0 0
    %922 = vmatprep.subr.bf16.mxu0 0
    %923 = vmatpush1.bf16.msra.mxu0 0
    %924 = vmatprep.subr.bf16.mxu0 0
    %925 = vmatpush1.bf16.msra.mxu0 0
    %926 = vmatprep.mubr.bf16.mxu0 0
    %927 = vmatmul.mubr.bf16.gmra.mrb[0].mxu0 %v893
    %v928 = vpop.f32.mrb[0].mxu0
    %v929 = vadd.f32 0.0, %v928
    %v930 = vpop.f32.mrb[0].mxu0
    %v931 = vadd.f32 0.0, %v930
    %v932 = vpop.f32.mrb[0].mxu0
    %v933 = vpop.f32.mrb[0].mxu0
    %934 = vdwg.mxu0
    %935 = vmatprep.subr.bf16.mxu0 %v500
    %936 = vmatpush1.bf16.msra.mxu0 %v499
    %937 = vmatprep.subr.bf16.mxu0 %v504
    %938 = vmatpush1.bf16.msra.mxu0 %v503
    %939 = vmatprep.subr.bf16.mxu0 %v508
    %940 = vmatpush1.bf16.msra.mxu0 %v507
    %941 = vmatprep.subr.bf16.mxu0 %v512
    %942 = vmatpush1.bf16.msra.mxu0 %v511
    %943 = vmatprep.subr.bf16.mxu0 %v516
    %944 = vmatpush1.bf16.msra.mxu0 %v515
    %945 = vmatprep.subr.bf16.mxu0 %v520
    %946 = vmatpush1.bf16.msra.mxu0 %v519
    %947 = vmatprep.subr.bf16.mxu0 %v524
    %948 = vmatpush1.bf16.msra.mxu0 %v523
    %949 = vmatprep.subr.bf16.mxu0 %v528
    %950 = vmatpush1.bf16.msra.mxu0 %v527
    %951 = vmatprep.subr.bf16.mxu0 0
    %952 = vmatpush1.bf16.msra.mxu0 0
    %953 = vmatprep.subr.bf16.mxu0 0
    %954 = vmatpush1.bf16.msra.mxu0 0
    %955 = vmatprep.subr.bf16.mxu0 0
    %956 = vmatpush1.bf16.msra.mxu0 0
    %957 = vmatprep.subr.bf16.mxu0 0
    %958 = vmatpush1.bf16.msra.mxu0 0
    %959 = vmatprep.subr.bf16.mxu0 0
    %960 = vmatpush1.bf16.msra.mxu0 0
    %961 = vmatprep.subr.bf16.mxu0 0
    %962 = vmatpush1.bf16.msra.mxu0 0
    %963 = vmatprep.subr.bf16.mxu0 0
    %964 = vmatpush1.bf16.msra.mxu0 0
    %965 = vmatprep.subr.bf16.mxu0 0
    %966 = vmatpush1.bf16.msra.mxu0 0
    %967 = vmatprep.mubr.bf16.mxu0 0
    %968 = vmatmul.mubr.bf16.gmra.mrb[0].mxu0 %v893
    %v969 = vpop.f32.mrb[0].mxu0
    %v970 = vadd.f32 0.0, %v969
    %v971 = vpop.f32.mrb[0].mxu0
    %v972 = vadd.f32 0.0, %v971
    %v973 = vpop.f32.mrb[0].mxu0
    %v974 = vpop.f32.mrb[0].mxu0
    %975 = vdwg.mxu0
    %v976 = vadd.f32 %v225, %v929
    %v977 = vadd.f32 %v227, %v931
    %v978 = vadd.f32 %v338, %v970
    %v979 = vadd.f32 %v340, %v972
    %v980 = vxor.u32 %v976, 2147483648
    %v981 = vmul.f32 %v980, 1.442695
    %v982 = vpow.pop %v981
    %v983 = vadd.f32 %v982, 1.0
    %v984 = vrcp.pop %v983
    %v985 = vmul.f32 1.0, %v984
    %v986 = vxor.u32 %v977, 2147483648
    %v987 = vmul.f32 %v986, 1.442695
    %v988 = vpow.pop %v987
    %v989 = vadd.f32 %v988, 1.0
    %v990 = vrcp.pop %v989
    %v991 = vmul.f32 1.0, %v990
    %v992 = vtanh.pop %v978
    %v993 = vxor.u32 %v979, 2147483648
    %v994 = vmul.f32 %v993, 1.442695
    %v995 = vpow.pop %v994
    %v996 = vadd.f32 %v995, 1.0
    %v997 = vrcp.pop %v996
    %v998 = vmul.f32 1.0, %v997
    %v999 = vmul.f32 %v991, %v890
    %v1000 = vmul.f32 %v985, %v992
    %v1001 = vadd.f32 %v999, %v1000
    %v1002 = vtanh.pop %v1001
    %v1003 = vmul.f32 %v998, %v1002
    %v1004 = vpack.c.bf16 %v1003, %v1003
    %1005 = vmatprep.subr.bf16.mxu0 %v498
    %1006 = vmatpush1.bf16.msra.mxu0 %v497
    %1007 = vmatprep.subr.bf16.mxu0 %v502
    %1008 = vmatpush1.bf16.msra.mxu0 %v501
    %1009 = vmatprep.subr.bf16.mxu0 %v506
    %1010 = vmatpush1.bf16.msra.mxu0 %v505
    %1011 = vmatprep.subr.bf16.mxu0 %v510
    %1012 = vmatpush1.bf16.msra.mxu0 %v509
    %1013 = vmatprep.subr.bf16.mxu0 %v514
    %1014 = vmatpush1.bf16.msra.mxu0 %v513
    %1015 = vmatprep.subr.bf16.mxu0 %v518
    %1016 = vmatpush1.bf16.msra.mxu0 %v517
    %1017 = vmatprep.subr.bf16.mxu0 %v522
    %1018 = vmatpush1.bf16.msra.mxu0 %v521
    %1019 = vmatprep.subr.bf16.mxu0 %v526
    %1020 = vmatpush1.bf16.msra.mxu0 %v525
    %1021 = vmatprep.subr.bf16.mxu0 0
    %1022 = vmatpush1.bf16.msra.mxu0 0
    %1023 = vmatprep.subr.bf16.mxu0 0
    %1024 = vmatpush1.bf16.msra.mxu0 0
    %1025 = vmatprep.subr.bf16.mxu0 0
    %1026 = vmatpush1.bf16.msra.mxu0 0
    %1027 = vmatprep.subr.bf16.mxu0 0
    %1028 = vmatpush1.bf16.msra.mxu0 0
    %1029 = vmatprep.subr.bf16.mxu0 0
    %1030 = vmatpush1.bf16.msra.mxu0 0
    %1031 = vmatprep.subr.bf16.mxu0 0
    %1032 = vmatpush1.bf16.msra.mxu0 0
    %1033 = vmatprep.subr.bf16.mxu0 0
    %1034 = vmatpush1.bf16.msra.mxu0 0
    %1035 = vmatprep.subr.bf16.mxu0 0
    %1036 = vmatpush1.bf16.msra.mxu0 0
    %1037 = vmatprep.mubr.bf16.mxu0 0
    %1038 = vmatmul.mubr.bf16.gmra.mrb[0].mxu0 %v1004
    %v1039 = vpop.f32.mrb[0].mxu0
    %v1040 = vadd.f32 0.0, %v1039
    %v1041 = vpop.f32.mrb[0].mxu0
    %v1042 = vadd.f32 0.0, %v1041
    %v1043 = vpop.f32.mrb[0].mxu0
    %v1044 = vpop.f32.mrb[0].mxu0
    %1045 = vdwg.mxu0
    %1046 = vmatprep.subr.bf16.mxu0 %v500
    %1047 = vmatpush1.bf16.msra.mxu0 %v499
    %1048 = vmatprep.subr.bf16.mxu0 %v504
    %1049 = vmatpush1.bf16.msra.mxu0 %v503
    %1050 = vmatprep.subr.bf16.mxu0 %v508
    %1051 = vmatpush1.bf16.msra.mxu0 %v507
    %1052 = vmatprep.subr.bf16.mxu0 %v512
    %1053 = vmatpush1.bf16.msra.mxu0 %v511
    %1054 = vmatprep.subr.bf16.mxu0 %v516
    %1055 = vmatpush1.bf16.msra.mxu0 %v515
    %1056 = vmatprep.subr.bf16.mxu0 %v520
    %1057 = vmatpush1.bf16.msra.mxu0 %v519
    %1058 = vmatprep.subr.bf16.mxu0 %v524
    %1059 = vmatpush1.bf16.msra.mxu0 %v523
    %1060 = vmatprep.subr.bf16.mxu0 %v528
    %1061 = vmatpush1.bf16.msra.mxu0 %v527
    %1062 = vmatprep.subr.bf16.mxu0 0
    %1063 = vmatpush1.bf16.msra.mxu0 0
    %1064 = vmatprep.subr.bf16.mxu0 0
    %1065 = vmatpush1.bf16.msra.mxu0 0
    %1066 = vmatprep.subr.bf16.mxu0 0
    %1067 = vmatpush1.bf16.msra.mxu0 0
    %1068 = vmatprep.subr.bf16.mxu0 0
    %1069 = vmatpush1.bf16.msra.mxu0 0
    %1070 = vmatprep.subr.bf16.mxu0 0
    %1071 = vmatpush1.bf16.msra.mxu0 0
    %1072 = vmatprep.subr.bf16.mxu0 0
    %1073 = vmatpush1.bf16.msra.mxu0 0
    %1074 = vmatprep.subr.bf16.mxu0 0
    %1075 = vmatpush1.bf16.msra.mxu0 0
    %1076 = vmatprep.subr.bf16.mxu0 0
    %1077 = vmatpush1.bf16.msra.mxu0 0
    %1078 = vmatprep.mubr.bf16.mxu0 0
    %1079 = vmatmul.mubr.bf16.gmra.mrb[0].mxu0 %v1004
    %v1080 = vpop.f32.mrb[0].mxu0
    %v1081 = vadd.f32 0.0, %v1080
    %v1082 = vpop.f32.mrb[0].mxu0
    %v1083 = vadd.f32 0.0, %v1082
    %v1084 = vpop.f32.mrb[0].mxu0
    %v1085 = vpop.f32.mrb[0].mxu0
    %1086 = vdwg.mxu0
    %v1087 = vadd.f32 %v231, %v1040
    %v1088 = vadd.f32 %v233, %v1042
    %v1089 = vadd.f32 %v344, %v1081
    %v1090 = vadd.f32 %v346, %v1083
    %v1091 = vxor.u32 %v1087, 2147483648
    %v1092 = vmul.f32 %v1091, 1.442695
    %v1093 = vpow.pop %v1092
    %v1094 = vadd.f32 %v1093, 1.0
    %v1095 = vrcp.pop %v1094
    %v1096 = vmul.f32 1.0, %v1095
    %v1097 = vxor.u32 %v1088, 2147483648
    %v1098 = vmul.f32 %v1097, 1.442695
    %v1099 = vpow.pop %v1098
    %v1100 = vadd.f32 %v1099, 1.0
    %v1101 = vrcp.pop %v1100
    %v1102 = vmul.f32 1.0, %v1101
    %v1103 = vtanh.pop %v1089
    %v1104 = vxor.u32 %v1090, 2147483648
    %v1105 = vmul.f32 %v1104, 1.442695
    %v1106 = vpow.pop %v1105
    %v1107 = vadd.f32 %v1106, 1.0
    %v1108 = vrcp.pop %v1107
    %v1109 = vmul.f32 1.0, %v1108
    %v1110 = vmul.f32 %v1102, %v1001
    %v1111 = vmul.f32 %v1096, %v1103
    %v1112 = vadd.f32 %v1110, %v1111
    %v1113 = vtanh.pop %v1112
    %v1114 = vmul.f32 %v1109, %v1113
    %v1115 = vpack.c.bf16 %v1114, %v1114
    %1116 = vmatprep.subr.bf16.mxu0 %v498
    %1117 = vmatpush1.bf16.msra.mxu0 %v497
    %1118 = vmatprep.subr.bf16.mxu0 %v502
    %1119 = vmatpush1.bf16.msra.mxu0 %v501
    %1120 = vmatprep.subr.bf16.mxu0 %v506
    %1121 = vmatpush1.bf16.msra.mxu0 %v505
    %1122 = vmatprep.subr.bf16.mxu0 %v510
    %1123 = vmatpush1.bf16.msra.mxu0 %v509
    %1124 = vmatprep.subr.bf16.mxu0 %v514
    %1125 = vmatpush1.bf16.msra.mxu0 %v513
    %1126 = vmatprep.subr.bf16.mxu0 %v518
    %1127 = vmatpush1.bf16.msra.mxu0 %v517
    %1128 = vmatprep.subr.bf16.mxu0 %v522
    %1129 = vmatpush1.bf16.msra.mxu0 %v521
    %1130 = vmatprep.subr.bf16.mxu0 %v526
    %1131 = vmatpush1.bf16.msra.mxu0 %v525
    %1132 = vmatprep.subr.bf16.mxu0 0
    %1133 = vmatpush1.bf16.msra.mxu0 0
    %1134 = vmatprep.subr.bf16.mxu0 0
    %1135 = vmatpush1.bf16.msra.mxu0 0
    %1136 = vmatprep.subr.bf16.mxu0 0
    %1137 = vmatpush1.bf16.msra.mxu0 0
    %1138 = vmatprep.subr.bf16.mxu0 0
    %1139 = vmatpush1.bf16.msra.mxu0 0
    %1140 = vmatprep.subr.bf16.mxu0 0
    %1141 = vmatpush1.bf16.msra.mxu0 0
    %1142 = vmatprep.subr.bf16.mxu0 0
    %1143 = vmatpush1.bf16.msra.mxu0 0
    %1144 = vmatprep.subr.bf16.mxu0 0
    %1145 = vmatpush1.bf16.msra.mxu0 0
    %1146 = vmatprep.subr.bf16.mxu0 0
    %1147 = vmatpush1.bf16.msra.mxu0 0
    %1148 = vmatprep.mubr.bf16.mxu0 0
    %1149 = vmatmul.mubr.bf16.gmra.mrb[0].mxu0 %v1115
    %v1150 = vpop.f32.mrb[0].mxu0
    %v1151 = vadd.f32 0.0, %v1150
    %v1152 = vpop.f32.mrb[0].mxu0
    %v1153 = vadd.f32 0.0, %v1152
    %v1154 = vpop.f32.mrb[0].mxu0
    %v1155 = vpop.f32.mrb[0].mxu0
    %1156 = vdwg.mxu0
    %1157 = vmatprep.subr.bf16.mxu0 %v500
    %1158 = vmatpush1.bf16.msra.mxu0 %v499
    %1159 = vmatprep.subr.bf16.mxu0 %v504
    %1160 = vmatpush1.bf16.msra.mxu0 %v503
    %1161 = vmatprep.subr.bf16.mxu0 %v508
    %1162 = vmatpush1.bf16.msra.mxu0 %v507
    %1163 = vmatprep.subr.bf16.mxu0 %v512
    %1164 = vmatpush1.bf16.msra.mxu0 %v511
    %1165 = vmatprep.subr.bf16.mxu0 %v516
    %1166 = vmatpush1.bf16.msra.mxu0 %v515
    %1167 = vmatprep.subr.bf16.mxu0 %v520
    %1168 = vmatpush1.bf16.msra.mxu0 %v519
    %1169 = vmatprep.subr.bf16.mxu0 %v524
    %1170 = vmatpush1.bf16.msra.mxu0 %v523
    %1171 = vmatprep.subr.bf16.mxu0 %v528
    %1172 = vmatpush1.bf16.msra.mxu0 %v527
    %1173 = vmatprep.subr.bf16.mxu0 0
    %1174 = vmatpush1.bf16.msra.mxu0 0
    %1175 = vmatprep.subr.bf16.mxu0 0
    %1176 = vmatpush1.bf16.msra.mxu0 0
    %1177 = vmatprep.subr.bf16.mxu0 0
    %1178 = vmatpush1.bf16.msra.mxu0 0
    %1179 = vmatprep.subr.bf16.mxu0 0
    %1180 = vmatpush1.bf16.msra.mxu0 0
    %1181 = vmatprep.subr.bf16.mxu0 0
    %1182 = vmatpush1.bf16.msra.mxu0 0
    %1183 = vmatprep.subr.bf16.mxu0 0
    %1184 = vmatpush1.bf16.msra.mxu0 0
    %1185 = vmatprep.subr.bf16.mxu0 0
    %1186 = vmatpush1.bf16.msra.mxu0 0
    %1187 = vmatprep.subr.bf16.mxu0 0
    %1188 = vmatpush1.bf16.msra.mxu0 0
    %1189 = vmatprep.mubr.bf16.mxu0 0
    %1190 = vmatmul.mubr.bf16.gmra.mrb[0].mxu0 %v1115
    %v1191 = vpop.f32.mrb[0].mxu0
    %v1192 = vadd.f32 0.0, %v1191
    %v1193 = vpop.f32.mrb[0].mxu0
    %v1194 = vadd.f32 0.0, %v1193
    %v1195 = vpop.f32.mrb[0].mxu0
    %v1196 = vpop.f32.mrb[0].mxu0
    %1197 = vdwg.mxu0
    %v1198 = vadd.f32 %v237, %v1151
    %v1199 = vadd.f32 %v239, %v1153
    %v1200 = vadd.f32 %v350, %v1192
    %v1201 = vadd.f32 %v352, %v1194
    %v1202 = vxor.u32 %v1198, 2147483648
    %v1203 = vmul.f32 %v1202, 1.442695
    %v1204 = vpow.pop %v1203
    %v1205 = vadd.f32 %v1204, 1.0
    %v1206 = vrcp.pop %v1205
    %v1207 = vmul.f32 1.0, %v1206
    %v1208 = vxor.u32 %v1199, 2147483648
    %v1209 = vmul.f32 %v1208, 1.442695
    %v1210 = vpow.pop %v1209
    %v1211 = vadd.f32 %v1210, 1.0
    %v1212 = vrcp.pop %v1211
    %v1213 = vmul.f32 1.0, %v1212
    %v1214 = vtanh.pop %v1200
    %v1215 = vxor.u32 %v1201, 2147483648
    %v1216 = vmul.f32 %v1215, 1.442695
    %v1217 = vpow.pop %v1216
    %v1218 = vadd.f32 %v1217, 1.0
    %v1219 = vrcp.pop %v1218
    %v1220 = vmul.f32 1.0, %v1219
    %v1221 = vmul.f32 %v1213, %v1112
    %v1222 = vmul.f32 %v1207, %v1214
    %v1223 = vadd.f32 %v1221, %v1222
    %v1224 = vtanh.pop %v1223
    %v1225 = vmul.f32 %v1220, %v1224
    %v1226 = vpack.c.bf16 %v1225, %v1225
    %1227 = vmatprep.subr.bf16.mxu0 %v498
    %1228 = vmatpush1.bf16.msra.mxu0 %v497
    %1229 = vmatprep.subr.bf16.mxu0 %v502
    %1230 = vmatpush1.bf16.msra.mxu0 %v501
    %1231 = vmatprep.subr.bf16.mxu0 %v506
    %1232 = vmatpush1.bf16.msra.mxu0 %v505
    %1233 = vmatprep.subr.bf16.mxu0 %v510
    %1234 = vmatpush1.bf16.msra.mxu0 %v509
    %1235 = vmatprep.subr.bf16.mxu0 %v514
    %1236 = vmatpush1.bf16.msra.mxu0 %v513
    %1237 = vmatprep.subr.bf16.mxu0 %v518
    %1238 = vmatpush1.bf16.msra.mxu0 %v517
    %1239 = vmatprep.subr.bf16.mxu0 %v522
    %1240 = vmatpush1.bf16.msra.mxu0 %v521
    %1241 = vmatprep.subr.bf16.mxu0 %v526
    %1242 = vmatpush1.bf16.msra.mxu0 %v525
    %1243 = vmatprep.subr.bf16.mxu0 0
    %1244 = vmatpush1.bf16.msra.mxu0 0
    %1245 = vmatprep.subr.bf16.mxu0 0
    %1246 = vmatpush1.bf16.msra.mxu0 0
    %1247 = vmatprep.subr.bf16.mxu0 0
    %1248 = vmatpush1.bf16.msra.mxu0 0
    %1249 = vmatprep.subr.bf16.mxu0 0
    %1250 = vmatpush1.bf16.msra.mxu0 0
    %1251 = vmatprep.subr.bf16.mxu0 0
    %1252 = vmatpush1.bf16.msra.mxu0 0
    %1253 = vmatprep.subr.bf16.mxu0 0
    %1254 = vmatpush1.bf16.msra.mxu0 0
    %1255 = vmatprep.subr.bf16.mxu0 0
    %1256 = vmatpush1.bf16.msra.mxu0 0
    %1257 = vmatprep.subr.bf16.mxu0 0
    %1258 = vmatpush1.bf16.msra.mxu0 0
    %1259 = vmatprep.mubr.bf16.mxu0 0
    %1260 = vmatmul.mubr.bf16.gmra.mrb[0].mxu0 %v1226
    %v1261 = vpop.f32.mrb[0].mxu0
    %v1262 = vadd.f32 0.0, %v1261
    %v1263 = vpop.f32.mrb[0].mxu0
    %v1264 = vadd.f32 0.0, %v1263
    %v1265 = vpop.f32.mrb[0].mxu0
    %v1266 = vpop.f32.mrb[0].mxu0
    %1267 = vdwg.mxu0
    %1268 = vmatprep.subr.bf16.mxu0 %v500
    %1269 = vmatpush1.bf16.msra.mxu0 %v499
    %1270 = vmatprep.subr.bf16.mxu0 %v504
    %1271 = vmatpush1.bf16.msra.mxu0 %v503
    %1272 = vmatprep.subr.bf16.mxu0 %v508
    %1273 = vmatpush1.bf16.msra.mxu0 %v507
    %1274 = vmatprep.subr.bf16.mxu0 %v512
    %1275 = vmatpush1.bf16.msra.mxu0 %v511
    %1276 = vmatprep.subr.bf16.mxu0 %v516
    %1277 = vmatpush1.bf16.msra.mxu0 %v515
    %1278 = vmatprep.subr.bf16.mxu0 %v520
    %1279 = vmatpush1.bf16.msra.mxu0 %v519
    %1280 = vmatprep.subr.bf16.mxu0 %v524
    %1281 = vmatpush1.bf16.msra.mxu0 %v523
    %1282 = vmatprep.subr.bf16.mxu0 %v528
    %1283 = vmatpush1.bf16.msra.mxu0 %v527
    %1284 = vmatprep.subr.bf16.mxu0 0
    %1285 = vmatpush1.bf16.msra.mxu0 0
    %1286 = vmatprep.subr.bf16.mxu0 0
    %1287 = vmatpush1.bf16.msra.mxu0 0
    %1288 = vmatprep.subr.bf16.mxu0 0
    %1289 = vmatpush1.bf16.msra.mxu0 0
    %1290 = vmatprep.subr.bf16.mxu0 0
    %1291 = vmatpush1.bf16.msra.mxu0 0
    %1292 = vmatprep.subr.bf16.mxu0 0
    %1293 = vmatpush1.bf16.msra.mxu0 0
    %1294 = vmatprep.subr.bf16.mxu0 0
    %1295 = vmatpush1.bf16.msra.mxu0 0
    %1296 = vmatprep.subr.bf16.mxu0 0
    %1297 = vmatpush1.bf16.msra.mxu0 0
    %1298 = vmatprep.subr.bf16.mxu0 0
    %1299 = vmatpush1.bf16.msra.mxu0 0
    %1300 = vmatprep.mubr.bf16.mxu0 0
    %1301 = vmatmul.mubr.bf16.gmra.mrb[0].mxu0 %v1226
    %v1302 = vpop.f32.mrb[0].mxu0
    %v1303 = vadd.f32 0.0, %v1302
    %v1304 = vpop.f32.mrb[0].mxu0
    %v1305 = vadd.f32 0.0, %v1304
    %v1306 = vpop.f32.mrb[0].mxu0
    %v1307 = vpop.f32.mrb[0].mxu0
    %1308 = vdwg.mxu0
    %v1309 = vadd.f32 %v243, %v1262
    %v1310 = vadd.f32 %v245, %v1264
    %v1311 = vadd.f32 %v356, %v1303
    %v1312 = vadd.f32 %v358, %v1305
    %v1313 = vxor.u32 %v1309, 2147483648
    %v1314 = vmul.f32 %v1313, 1.442695
    %v1315 = vpow.pop %v1314
    %v1316 = vadd.f32 %v1315, 1.0
    %v1317 = vrcp.pop %v1316
    %v1318 = vmul.f32 1.0, %v1317
    %v1319 = vxor.u32 %v1310, 2147483648
    %v1320 = vmul.f32 %v1319, 1.442695
    %v1321 = vpow.pop %v1320
    %v1322 = vadd.f32 %v1321, 1.0
    %v1323 = vrcp.pop %v1322
    %v1324 = vmul.f32 1.0, %v1323
    %v1325 = vtanh.pop %v1311
    %v1326 = vxor.u32 %v1312, 2147483648
    %v1327 = vmul.f32 %v1326, 1.442695
    %v1328 = vpow.pop %v1327
    %v1329 = vadd.f32 %v1328, 1.0
    %v1330 = vrcp.pop %v1329
    %v1331 = vmul.f32 1.0, %v1330
    %v1332 = vmul.f32 %v1324, %v1223
    %v1333 = vmul.f32 %v1318, %v1325
    %v1334 = vadd.f32 %v1332, %v1333
    %v1335 = vtanh.pop %v1334
    %v1336 = vmul.f32 %v1331, %v1335
    %v1337 = vpack.c.bf16 %v1336, %v1336
    %1338 = vmatprep.subr.bf16.mxu0 %v498
    %1339 = vmatpush1.bf16.msra.mxu0 %v497
    %1340 = vmatprep.subr.bf16.mxu0 %v502
    %1341 = vmatpush1.bf16.msra.mxu0 %v501
    %1342 = vmatprep.subr.bf16.mxu0 %v506
    %1343 = vmatpush1.bf16.msra.mxu0 %v505
    %1344 = vmatprep.subr.bf16.mxu0 %v510
    %1345 = vmatpush1.bf16.msra.mxu0 %v509
    %1346 = vmatprep.subr.bf16.mxu0 %v514
    %1347 = vmatpush1.bf16.msra.mxu0 %v513
    %1348 = vmatprep.subr.bf16.mxu0 %v518
    %1349 = vmatpush1.bf16.msra.mxu0 %v517
    %1350 = vmatprep.subr.bf16.mxu0 %v522
    %1351 = vmatpush1.bf16.msra.mxu0 %v521
    %1352 = vmatprep.subr.bf16.mxu0 %v526
    %1353 = vmatpush1.bf16.msra.mxu0 %v525
    %1354 = vmatprep.subr.bf16.mxu0 0
    %1355 = vmatpush1.bf16.msra.mxu0 0
    %1356 = vmatprep.subr.bf16.mxu0 0
    %1357 = vmatpush1.bf16.msra.mxu0 0
    %1358 = vmatprep.subr.bf16.mxu0 0
    %1359 = vmatpush1.bf16.msra.mxu0 0
    %1360 = vmatprep.subr.bf16.mxu0 0
    %1361 = vmatpush1.bf16.msra.mxu0 0
    %1362 = vmatprep.subr.bf16.mxu0 0
    %1363 = vmatpush1.bf16.msra.mxu0 0
    %1364 = vmatprep.subr.bf16.mxu0 0
    %1365 = vmatpush1.bf16.msra.mxu0 0
    %1366 = vmatprep.subr.bf16.mxu0 0
    %1367 = vmatpush1.bf16.msra.mxu0 0
    %1368 = vmatprep.subr.bf16.mxu0 0
    %1369 = vmatpush1.bf16.msra.mxu0 0
    %1370 = vmatprep.mubr.bf16.mxu0 0
    %1371 = vmatmul.mubr.bf16.gmra.mrb[0].mxu0 %v1337
    %v1372 = vpop.f32.mrb[0].mxu0
    %v1373 = vadd.f32 0.0, %v1372
    %v1374 = vpop.f32.mrb[0].mxu0
    %v1375 = vadd.f32 0.0, %v1374
    %v1376 = vpop.f32.mrb[0].mxu0
    %v1377 = vpop.f32.mrb[0].mxu0
    %1378 = vdwg.mxu0
    %1379 = vmatprep.subr.bf16.mxu0 %v500
    %1380 = vmatpush1.bf16.msra.mxu0 %v499
    %1381 = vmatprep.subr.bf16.mxu0 %v504
    %1382 = vmatpush1.bf16.msra.mxu0 %v503
    %1383 = vmatprep.subr.bf16.mxu0 %v508
    %1384 = vmatpush1.bf16.msra.mxu0 %v507
    %1385 = vmatprep.subr.bf16.mxu0 %v512
    %1386 = vmatpush1.bf16.msra.mxu0 %v511
    %1387 = vmatprep.subr.bf16.mxu0 %v516
    %1388 = vmatpush1.bf16.msra.mxu0 %v515
    %1389 = vmatprep.subr.bf16.mxu0 %v520
    %1390 = vmatpush1.bf16.msra.mxu0 %v519
    %1391 = vmatprep.subr.bf16.mxu0 %v524
    %1392 = vmatpush1.bf16.msra.mxu0 %v523
    %1393 = vmatprep.subr.bf16.mxu0 %v528
    %1394 = vmatpush1.bf16.msra.mxu0 %v527
    %1395 = vmatprep.subr.bf16.mxu0 0
    %1396 = vmatpush1.bf16.msra.mxu0 0
    %1397 = vmatprep.subr.bf16.mxu0 0
    %1398 = vmatpush1.bf16.msra.mxu0 0
    %1399 = vmatprep.subr.bf16.mxu0 0
    %1400 = vmatpush1.bf16.msra.mxu0 0
    %1401 = vmatprep.subr.bf16.mxu0 0
    %1402 = vmatpush1.bf16.msra.mxu0 0
    %1403 = vmatprep.subr.bf16.mxu0 0
    %1404 = vmatpush1.bf16.msra.mxu0 0
    %1405 = vmatprep.subr.bf16.mxu0 0
    %1406 = vmatpush1.bf16.msra.mxu0 0
    %1407 = vmatprep.subr.bf16.mxu0 0
    %1408 = vmatpush1.bf16.msra.mxu0 0
    %1409 = vmatprep.subr.bf16.mxu0 0
    %1410 = vmatpush1.bf16.msra.mxu0 0
    %1411 = vmatprep.mubr.bf16.mxu0 0
    %1412 = vmatmul.mubr.bf16.gmra.mrb[0].mxu0 %v1337
    %v1413 = vpop.f32.mrb[0].mxu0
    %v1414 = vadd.f32 0.0, %v1413
    %v1415 = vpop.f32.mrb[0].mxu0
    %v1416 = vadd.f32 0.0, %v1415
    %v1417 = vpop.f32.mrb[0].mxu0
    %v1418 = vpop.f32.mrb[0].mxu0
    %1419 = vdwg.mxu0
    %v1420 = vadd.f32 %v249, %v1373
    %v1421 = vadd.f32 %v251, %v1375
    %v1422 = vadd.f32 %v362, %v1414
    %v1423 = vadd.f32 %v364, %v1416
    %v1424 = vxor.u32 %v1420, 2147483648
    %v1425 = vmul.f32 %v1424, 1.442695
    %v1426 = vpow.pop %v1425
    %v1427 = vadd.f32 %v1426, 1.0
    %v1428 = vrcp.pop %v1427
    %v1429 = vmul.f32 1.0, %v1428
    %v1430 = vxor.u32 %v1421, 2147483648
    %v1431 = vmul.f32 %v1430, 1.442695
    %v1432 = vpow.pop %v1431
    %v1433 = vadd.f32 %v1432, 1.0
    %v1434 = vrcp.pop %v1433
    %v1435 = vmul.f32 1.0, %v1434
    %v1436 = vtanh.pop %v1422
    %v1437 = vxor.u32 %v1423, 2147483648
    %v1438 = vmul.f32 %v1437, 1.442695
    %v1439 = vpow.pop %v1438
    %v1440 = vadd.f32 %v1439, 1.0
    %v1441 = vrcp.pop %v1440
    %v1442 = vmul.f32 1.0, %v1441
    %v1443 = vmul.f32 %v1435, %v1334
    %v1444 = vmul.f32 %v1429, %v1436
    %v1445 = vadd.f32 %v1443, %v1444
    %v1446 = vtanh.pop %v1445
    %v1447 = vmul.f32 %v1442, %v1446
    %v1448 = vld [vmem:[#allocation5] sm:$0xff]
    %v1449 = vld [vmem:[#allocation5 + $0x8] sm:$0xff]
    %v1450 = vld [vmem:[#allocation5 + $0x10] sm:$0xff]
    %v1451 = vld [vmem:[#allocation5 + $0x18] sm:$0xff]
    %v1452 = vld [vmem:[#allocation5 + $0x20] sm:$0xff]
    %v1453 = vld [vmem:[#allocation5 + $0x28] sm:$0xff]
    %v1454 = vld [vmem:[#allocation5 + $0x30] sm:$0xff]
    %v1455 = vld [vmem:[#allocation5 + $0x38] sm:$0xff]
    %v1456 = vld [vmem:[#allocation5 + $0x40] sm:$0xff]
    %v1457 = vld [vmem:[#allocation5 + $0x48] sm:$0xff]
    %v1458 = vld [vmem:[#allocation5 + $0x50] sm:$0xff]
    %v1459 = vld [vmem:[#allocation5 + $0x58] sm:$0xff]
    %v1460 = vld [vmem:[#allocation5 + $0x60] sm:$0xff]
    %v1461 = vld [vmem:[#allocation5 + $0x68] sm:$0xff]
    %v1462 = vld [vmem:[#allocation5 + $0x70] sm:$0xff]
    %v1463 = vld [vmem:[#allocation5 + $0x78] sm:$0xff]
    %v1464 = vld [vmem:[#allocation5 + $0x80] sm:$0xff]
    %v1465 = vld [vmem:[#allocation5 + $0x88] sm:$0xff]
    %v1466 = vld [vmem:[#allocation5 + $0x90] sm:$0xff]
    %v1467 = vld [vmem:[#allocation5 + $0x98] sm:$0xff]
    %v1468 = vld [vmem:[#allocation5 + $0xa0] sm:$0xff]
    %v1469 = vld [vmem:[#allocation5 + $0xa8] sm:$0xff]
    %v1470 = vld [vmem:[#allocation5 + $0xb0] sm:$0xff]
    %v1471 = vld [vmem:[#allocation5 + $0xb8] sm:$0xff]
    %v1472 = vld [vmem:[#allocation5 + $0xc0] sm:$0xff]
    %v1473 = vld [vmem:[#allocation5 + $0xc8] sm:$0xff]
    %v1474 = vld [vmem:[#allocation5 + $0xd0] sm:$0xff]
    %v1475 = vld [vmem:[#allocation5 + $0xd8] sm:$0xff]
    %v1476 = vld [vmem:[#allocation5 + $0xe0] sm:$0xff]
    %v1477 = vld [vmem:[#allocation5 + $0xe8] sm:$0xff]
    %v1478 = vld [vmem:[#allocation5 + $0xf0] sm:$0xff]
    %v1479 = vld [vmem:[#allocation5 + $0xf8] sm:$0xff]
    %v1480 = vld [vmem:[#allocation5 + $0x100] sm:$0xff]
    %v1481 = vld [vmem:[#allocation5 + $0x108] sm:$0xff]
    %v1482 = vld [vmem:[#allocation5 + $0x110] sm:$0xff]
    %v1483 = vld [vmem:[#allocation5 + $0x118] sm:$0xff]
    %v1484 = vld [vmem:[#allocation5 + $0x120] sm:$0xff]
    %v1485 = vld [vmem:[#allocation5 + $0x128] sm:$0xff]
    %v1486 = vld [vmem:[#allocation5 + $0x130] sm:$0xff]
    %v1487 = vld [vmem:[#allocation5 + $0x138] sm:$0xff]
    %v1488 = vld [vmem:[#allocation5 + $0x140] sm:$0xff]
    %v1489 = vld [vmem:[#allocation5 + $0x148] sm:$0xff]
    %v1490 = vld [vmem:[#allocation5 + $0x150] sm:$0xff]
    %v1491 = vld [vmem:[#allocation5 + $0x158] sm:$0xff]
    %v1492 = vld [vmem:[#allocation5 + $0x160] sm:$0xff]
    %v1493 = vld [vmem:[#allocation5 + $0x168] sm:$0xff]
    %v1494 = vld [vmem:[#allocation5 + $0x170] sm:$0xff]
    %v1495 = vld [vmem:[#allocation5 + $0x178] sm:$0xff]
    %v1496 = vld [vmem:[#allocation5 + $0x180] sm:$0xff]
    %v1497 = vld [vmem:[#allocation5 + $0x188] sm:$0xff]
    %v1498 = vld [vmem:[#allocation5 + $0x190] sm:$0xff]
    %v1499 = vld [vmem:[#allocation5 + $0x198] sm:$0xff]
    %v1500 = vld [vmem:[#allocation5 + $0x1a0] sm:$0xff]
    %v1501 = vld [vmem:[#allocation5 + $0x1a8] sm:$0xff]
    %v1502 = vld [vmem:[#allocation5 + $0x1b0] sm:$0xff]
    %v1503 = vld [vmem:[#allocation5 + $0x1b8] sm:$0xff]
    %v1504 = vld [vmem:[#allocation5 + $0x1c0] sm:$0xff]
    %v1505 = vld [vmem:[#allocation5 + $0x1c8] sm:$0xff]
    %v1506 = vld [vmem:[#allocation5 + $0x1d0] sm:$0xff]
    %v1507 = vld [vmem:[#allocation5 + $0x1d8] sm:$0xff]
    %v1508 = vld [vmem:[#allocation5 + $0x1e0] sm:$0xff]
    %v1509 = vld [vmem:[#allocation5 + $0x1e8] sm:$0xff]
    %v1510 = vld [vmem:[#allocation5 + $0x1f0] sm:$0xff]
    %v1511 = vld [vmem:[#allocation5 + $0x1f8] sm:$0xff]
    %v1512 = vld [vmem:[%s5] sm:$0xf]
    %v1513 = vpack.c.bf16 %v1447, %v1447
    %v1515 = vlaneseq
    %v1516 = vshrl.u32 %v1515, 7
    %v1517 = vsub.s32 0, %v1516
    %v1518 = vrot.slane %v1512, %v1517
    %v1519 = vlaneseq
    %v1520 = vshrl.u32 %v1519, 7
    %v1521 = vsub.s32 1, %v1520
    %v1522 = vrot.slane %v1512, %v1521
    %v1523 = vlaneseq
    %v1524 = vshrl.u32 %v1523, 7
    %v1525 = vsub.s32 2, %v1524
    %v1526 = vrot.slane %v1512, %v1525
    %v1527 = vlaneseq
    %v1528 = vshrl.u32 %v1527, 7
    %v1529 = vsub.s32 3, %v1528
    %v1530 = vrot.slane %v1512, %v1529
    %v1599 = vunpack.c.l.b16 %v1448
    %v1600 = vunpack.c.h.b16 %v1448
    %v1601 = vunpack.c.l.b16 %v1449
    %v1602 = vunpack.c.h.b16 %v1449
    %v1603 = vunpack.c.l.b16 %v1450
    %v1604 = vunpack.c.h.b16 %v1450
    %v1605 = vunpack.c.l.b16 %v1451
    %v1606 = vunpack.c.h.b16 %v1451
    %v1607 = vunpack.c.l.b16 %v1452
    %v1608 = vunpack.c.h.b16 %v1452
    %v1609 = vunpack.c.l.b16 %v1453
    %v1610 = vunpack.c.h.b16 %v1453
    %v1611 = vunpack.c.l.b16 %v1454
    %v1612 = vunpack.c.h.b16 %v1454
    %v1613 = vunpack.c.l.b16 %v1455
    %v1614 = vunpack.c.h.b16 %v1455
    %v1615 = vunpack.c.l.b16 %v1456
    %v1616 = vunpack.c.h.b16 %v1456
    %v1617 = vunpack.c.l.b16 %v1457
    %v1618 = vunpack.c.h.b16 %v1457
    %v1619 = vunpack.c.l.b16 %v1458
    %v1620 = vunpack.c.h.b16 %v1458
    %v1621 = vunpack.c.l.b16 %v1459
    %v1622 = vunpack.c.h.b16 %v1459
    %v1623 = vunpack.c.l.b16 %v1460
    %v1624 = vunpack.c.h.b16 %v1460
    %v1625 = vunpack.c.l.b16 %v1461
    %v1626 = vunpack.c.h.b16 %v1461
    %v1627 = vunpack.c.l.b16 %v1462
    %v1628 = vunpack.c.h.b16 %v1462
    %v1629 = vunpack.c.l.b16 %v1463
    %v1630 = vunpack.c.h.b16 %v1463
    %v1631 = vunpack.c.l.b16 %v1464
    %v1632 = vunpack.c.h.b16 %v1464
    %v1633 = vunpack.c.l.b16 %v1465
    %v1634 = vunpack.c.h.b16 %v1465
    %v1635 = vunpack.c.l.b16 %v1466
    %v1636 = vunpack.c.h.b16 %v1466
    %v1637 = vunpack.c.l.b16 %v1467
    %v1638 = vunpack.c.h.b16 %v1467
    %v1639 = vunpack.c.l.b16 %v1468
    %v1640 = vunpack.c.h.b16 %v1468
    %v1641 = vunpack.c.l.b16 %v1469
    %v1642 = vunpack.c.h.b16 %v1469
    %v1643 = vunpack.c.l.b16 %v1470
    %v1644 = vunpack.c.h.b16 %v1470
    %v1645 = vunpack.c.l.b16 %v1471
    %v1646 = vunpack.c.h.b16 %v1471
    %v1647 = vunpack.c.l.b16 %v1472
    %v1648 = vunpack.c.h.b16 %v1472
    %v1649 = vunpack.c.l.b16 %v1473
    %v1650 = vunpack.c.h.b16 %v1473
    %v1651 = vunpack.c.l.b16 %v1474
    %v1652 = vunpack.c.h.b16 %v1474
    %v1653 = vunpack.c.l.b16 %v1475
    %v1654 = vunpack.c.h.b16 %v1475
    %v1655 = vunpack.c.l.b16 %v1476
    %v1656 = vunpack.c.h.b16 %v1476
    %v1657 = vunpack.c.l.b16 %v1477
    %v1658 = vunpack.c.h.b16 %v1477
    %v1659 = vunpack.c.l.b16 %v1478
    %v1660 = vunpack.c.h.b16 %v1478
    %v1661 = vunpack.c.l.b16 %v1479
    %v1662 = vunpack.c.h.b16 %v1479
    %v1663 = vunpack.c.l.b16 %v1480
    %v1664 = vunpack.c.h.b16 %v1480
    %v1665 = vunpack.c.l.b16 %v1481
    %v1666 = vunpack.c.h.b16 %v1481
    %v1667 = vunpack.c.l.b16 %v1482
    %v1668 = vunpack.c.h.b16 %v1482
    %v1669 = vunpack.c.l.b16 %v1483
    %v1670 = vunpack.c.h.b16 %v1483
    %v1671 = vunpack.c.l.b16 %v1484
    %v1672 = vunpack.c.h.b16 %v1484
    %v1673 = vunpack.c.l.b16 %v1485
    %v1674 = vunpack.c.h.b16 %v1485
    %v1675 = vunpack.c.l.b16 %v1486
    %v1676 = vunpack.c.h.b16 %v1486
    %v1677 = vunpack.c.l.b16 %v1487
    %v1678 = vunpack.c.h.b16 %v1487
    %v1679 = vunpack.c.l.b16 %v1488
    %v1680 = vunpack.c.h.b16 %v1488
    %v1681 = vunpack.c.l.b16 %v1489
    %v1682 = vunpack.c.h.b16 %v1489
    %v1683 = vunpack.c.l.b16 %v1490
    %v1684 = vunpack.c.h.b16 %v1490
    %v1685 = vunpack.c.l.b16 %v1491
    %v1686 = vunpack.c.h.b16 %v1491
    %v1687 = vunpack.c.l.b16 %v1492
    %v1688 = vunpack.c.h.b16 %v1492
    %v1689 = vunpack.c.l.b16 %v1493
    %v1690 = vunpack.c.h.b16 %v1493
    %v1691 = vunpack.c.l.b16 %v1494
    %v1692 = vunpack.c.h.b16 %v1494
    %v1693 = vunpack.c.l.b16 %v1495
    %v1694 = vunpack.c.h.b16 %v1495
    %v1695 = vunpack.c.l.b16 %v1496
    %v1696 = vunpack.c.h.b16 %v1496
    %v1697 = vunpack.c.l.b16 %v1497
    %v1698 = vunpack.c.h.b16 %v1497
    %v1699 = vunpack.c.l.b16 %v1498
    %v1700 = vunpack.c.h.b16 %v1498
    %v1701 = vunpack.c.l.b16 %v1499
    %v1702 = vunpack.c.h.b16 %v1499
    %v1703 = vunpack.c.l.b16 %v1500
    %v1704 = vunpack.c.h.b16 %v1500
    %v1705 = vunpack.c.l.b16 %v1501
    %v1706 = vunpack.c.h.b16 %v1501
    %v1707 = vunpack.c.l.b16 %v1502
    %v1708 = vunpack.c.h.b16 %v1502
    %v1709 = vunpack.c.l.b16 %v1503
    %v1710 = vunpack.c.h.b16 %v1503
    %v1711 = vunpack.c.l.b16 %v1504
    %v1712 = vunpack.c.h.b16 %v1504
    %v1713 = vunpack.c.l.b16 %v1505
    %v1714 = vunpack.c.h.b16 %v1505
    %v1715 = vunpack.c.l.b16 %v1506
    %v1716 = vunpack.c.h.b16 %v1506
    %v1717 = vunpack.c.l.b16 %v1507
    %v1718 = vunpack.c.h.b16 %v1507
    %v1719 = vunpack.c.l.b16 %v1508
    %v1720 = vunpack.c.h.b16 %v1508
    %v1721 = vunpack.c.l.b16 %v1509
    %v1722 = vunpack.c.h.b16 %v1509
    %v1723 = vunpack.c.l.b16 %v1510
    %v1724 = vunpack.c.h.b16 %v1510
    %v1725 = vunpack.c.l.b16 %v1511
    %v1726 = vunpack.c.h.b16 %v1511
    %v1727 = vpack.c.b16 %v1603, %v1599
    %v1728 = vpack.c.b16 %v1604, %v1600
    %v1729 = vpack.c.b16 %v1605, %v1601
    %v1730 = vpack.c.b16 %v1606, %v1602
    %v1731 = vpack.c.b16 %v1611, %v1607
    %v1732 = vpack.c.b16 %v1612, %v1608
    %v1733 = vpack.c.b16 %v1613, %v1609
    %v1734 = vpack.c.b16 %v1614, %v1610
    %v1735 = vpack.c.b16 %v1619, %v1615
    %v1736 = vpack.c.b16 %v1620, %v1616
    %v1737 = vpack.c.b16 %v1621, %v1617
    %v1738 = vpack.c.b16 %v1622, %v1618
    %v1739 = vpack.c.b16 %v1627, %v1623
    %v1740 = vpack.c.b16 %v1628, %v1624
    %v1741 = vpack.c.b16 %v1629, %v1625
    %v1742 = vpack.c.b16 %v1630, %v1626
    %v1743 = vpack.c.b16 %v1635, %v1631
    %v1744 = vpack.c.b16 %v1636, %v1632
    %v1745 = vpack.c.b16 %v1637, %v1633
    %v1746 = vpack.c.b16 %v1638, %v1634
    %v1747 = vpack.c.b16 %v1643, %v1639
    %v1748 = vpack.c.b16 %v1644, %v1640
    %v1749 = vpack.c.b16 %v1645, %v1641
    %v1750 = vpack.c.b16 %v1646, %v1642
    %v1751 = vpack.c.b16 %v1651, %v1647
    %v1752 = vpack.c.b16 %v1652, %v1648
    %v1753 = vpack.c.b16 %v1653, %v1649
    %v1754 = vpack.c.b16 %v1654, %v1650
    %v1755 = vpack.c.b16 %v1659, %v1655
    %v1756 = vpack.c.b16 %v1660, %v1656
    %v1757 = vpack.c.b16 %v1661, %v1657
    %v1758 = vpack.c.b16 %v1662, %v1658
    %v1759 = vpack.c.b16 %v1667, %v1663
    %v1760 = vpack.c.b16 %v1668, %v1664
    %v1761 = vpack.c.b16 %v1669, %v1665
    %v1762 = vpack.c.b16 %v1670, %v1666
    %v1763 = vpack.c.b16 %v1675, %v1671
    %v1764 = vpack.c.b16 %v1676, %v1672
    %v1765 = vpack.c.b16 %v1677, %v1673
    %v1766 = vpack.c.b16 %v1678, %v1674
    %v1767 = vpack.c.b16 %v1683, %v1679
    %v1768 = vpack.c.b16 %v1684, %v1680
    %v1769 = vpack.c.b16 %v1685, %v1681
    %v1770 = vpack.c.b16 %v1686, %v1682
    %v1771 = vpack.c.b16 %v1691, %v1687
    %v1772 = vpack.c.b16 %v1692, %v1688
    %v1773 = vpack.c.b16 %v1693, %v1689
    %v1774 = vpack.c.b16 %v1694, %v1690
    %v1775 = vpack.c.b16 %v1699, %v1695
    %v1776 = vpack.c.b16 %v1700, %v1696
    %v1777 = vpack.c.b16 %v1701, %v1697
    %v1778 = vpack.c.b16 %v1702, %v1698
    %v1779 = vpack.c.b16 %v1707, %v1703
    %v1780 = vpack.c.b16 %v1708, %v1704
    %v1781 = vpack.c.b16 %v1709, %v1705
    %v1782 = vpack.c.b16 %v1710, %v1706
    %v1783 = vpack.c.b16 %v1715, %v1711
    %v1784 = vpack.c.b16 %v1716, %v1712
    %v1785 = vpack.c.b16 %v1717, %v1713
    %v1786 = vpack.c.b16 %v1718, %v1714
    %v1787 = vpack.c.b16 %v1723, %v1719
    %v1788 = vpack.c.b16 %v1724, %v1720
    %v1789 = vpack.c.b16 %v1725, %v1721
    %v1790 = vpack.c.b16 %v1726, %v1722
    %1855 = vmatprep.subr.bf16.mxu0 %v1728
    %1856 = vmatpush1.bf16.msra.mxu0 %v1727
    %1857 = vmatprep.subr.bf16.mxu0 %v1732
    %1858 = vmatpush1.bf16.msra.mxu0 %v1731
    %1859 = vmatprep.subr.bf16.mxu0 %v1736
    %1860 = vmatpush1.bf16.msra.mxu0 %v1735
    %1861 = vmatprep.subr.bf16.mxu0 %v1740
    %1862 = vmatpush1.bf16.msra.mxu0 %v1739
    %1863 = vmatprep.subr.bf16.mxu0 %v1744
    %1864 = vmatpush1.bf16.msra.mxu0 %v1743
    %1865 = vmatprep.subr.bf16.mxu0 %v1748
    %1866 = vmatpush1.bf16.msra.mxu0 %v1747
    %1867 = vmatprep.subr.bf16.mxu0 %v1752
    %1868 = vmatpush1.bf16.msra.mxu0 %v1751
    %1869 = vmatprep.subr.bf16.mxu0 %v1756
    %1870 = vmatpush1.bf16.msra.mxu0 %v1755
    %1871 = vmatprep.subr.bf16.mxu0 %v1760
    %1872 = vmatpush1.bf16.msra.mxu0 %v1759
    %1873 = vmatprep.subr.bf16.mxu0 %v1764
    %1874 = vmatpush1.bf16.msra.mxu0 %v1763
    %1875 = vmatprep.subr.bf16.mxu0 %v1768
    %1876 = vmatpush1.bf16.msra.mxu0 %v1767
    %1877 = vmatprep.subr.bf16.mxu0 %v1772
    %1878 = vmatpush1.bf16.msra.mxu0 %v1771
    %1879 = vmatprep.subr.bf16.mxu0 %v1776
    %1880 = vmatpush1.bf16.msra.mxu0 %v1775
    %1881 = vmatprep.subr.bf16.mxu0 %v1780
    %1882 = vmatpush1.bf16.msra.mxu0 %v1779
    %1883 = vmatprep.subr.bf16.mxu0 %v1784
    %1884 = vmatpush1.bf16.msra.mxu0 %v1783
    %1885 = vmatprep.subr.bf16.mxu0 %v1788
    %1886 = vmatpush1.bf16.msra.mxu0 %v1787
    %1887 = vmatprep.mubr.bf16.mxu0 %v1513
    %1888 = vmatmul.mubr.bf16.gmra.mrb[0].mxu0 %v671
    %v1889 = vpop.f32.mrb[0].mxu0
    %v1890 = vadd.f32 %v1518, %v1889
    %v1891 = vpop.f32.mrb[0].mxu0
    %v1892 = vadd.f32 %v1522, %v1891
    %v1893 = vpop.f32.mrb[0].mxu0
    %v1894 = vpop.f32.mrb[0].mxu0
    %1895 = vdwg.mxu0
    %1896 = vmatprep.subr.bf16.mxu0 %v1730
    %1897 = vmatpush1.bf16.msra.mxu0 %v1729
    %1898 = vmatprep.subr.bf16.mxu0 %v1734
    %1899 = vmatpush1.bf16.msra.mxu0 %v1733
    %1900 = vmatprep.subr.bf16.mxu0 %v1738
    %1901 = vmatpush1.bf16.msra.mxu0 %v1737
    %1902 = vmatprep.subr.bf16.mxu0 %v1742
    %1903 = vmatpush1.bf16.msra.mxu0 %v1741
    %1904 = vmatprep.subr.bf16.mxu0 %v1746
    %1905 = vmatpush1.bf16.msra.mxu0 %v1745
    %1906 = vmatprep.subr.bf16.mxu0 %v1750
    %1907 = vmatpush1.bf16.msra.mxu0 %v1749
    %1908 = vmatprep.subr.bf16.mxu0 %v1754
    %1909 = vmatpush1.bf16.msra.mxu0 %v1753
    %1910 = vmatprep.subr.bf16.mxu0 %v1758
    %1911 = vmatpush1.bf16.msra.mxu0 %v1757
    %1912 = vmatprep.subr.bf16.mxu0 %v1762
    %1913 = vmatpush1.bf16.msra.mxu0 %v1761
    %1914 = vmatprep.subr.bf16.mxu0 %v1766
    %1915 = vmatpush1.bf16.msra.mxu0 %v1765
    %1916 = vmatprep.subr.bf16.mxu0 %v1770
    %1917 = vmatpush1.bf16.msra.mxu0 %v1769
    %1918 = vmatprep.subr.bf16.mxu0 %v1774
    %1919 = vmatpush1.bf16.msra.mxu0 %v1773
    %1920 = vmatprep.subr.bf16.mxu0 %v1778
    %1921 = vmatpush1.bf16.msra.mxu0 %v1777
    %1922 = vmatprep.subr.bf16.mxu0 %v1782
    %1923 = vmatpush1.bf16.msra.mxu0 %v1781
    %1924 = vmatprep.subr.bf16.mxu0 %v1786
    %1925 = vmatpush1.bf16.msra.mxu0 %v1785
    %1926 = vmatprep.subr.bf16.mxu0 %v1790
    %1927 = vmatpush1.bf16.msra.mxu0 %v1789
    %1928 = vmatprep.mubr.bf16.mxu0 %v1513
    %1929 = vmatmul.mubr.bf16.gmra.mrb[0].mxu0 %v671
    %v1930 = vpop.f32.mrb[0].mxu0
    %v1931 = vadd.f32 %v1526, %v1930
    %v1932 = vpop.f32.mrb[0].mxu0
    %v1933 = vadd.f32 %v1530, %v1932
    %v1934 = vpop.f32.mrb[0].mxu0
    %v1935 = vpop.f32.mrb[0].mxu0
    %1936 = vdwg.mxu0
    %v1937 = vxor.u32 %v1890, 2147483648
    %v1938 = vmul.f32 %v1937, 1.442695
    %v1939 = vpow.pop %v1938
    %v1940 = vadd.f32 %v1939, 1.0
    %v1941 = vrcp.pop %v1940
    %v1942 = vmul.f32 1.0, %v1941
    %v1943 = vxor.u32 %v1892, 2147483648
    %v1944 = vmul.f32 %v1943, 1.442695
    %v1945 = vpow.pop %v1944
    %v1946 = vadd.f32 %v1945, 1.0
    %v1947 = vrcp.pop %v1946
    %v1948 = vmul.f32 1.0, %v1947
    %v1949 = vtanh.pop %v1931
    %v1950 = vxor.u32 %v1933, 2147483648
    %v1951 = vmul.f32 %v1950, 1.442695
    %v1952 = vpow.pop %v1951
    %v1953 = vadd.f32 %v1952, 1.0
    %v1954 = vrcp.pop %v1953
    %v1955 = vmul.f32 1.0, %v1954
    %v1956 = vmul.f32 %v1948, %v1445
    %v1957 = vmul.f32 %v1942, %v1949
    %v1958 = vadd.f32 %v1956, %v1957
    %v1959 = vtanh.pop %v1958
    %v1960 = vmul.f32 %v1955, %v1959
    %v1961 = vpack.c.bf16 %v1960, %v1960
    %1962 = vmatprep.subr.bf16.mxu0 %v1728
    %1963 = vmatpush1.bf16.msra.mxu0 %v1727
    %1964 = vmatprep.subr.bf16.mxu0 %v1732
    %1965 = vmatpush1.bf16.msra.mxu0 %v1731
    %1966 = vmatprep.subr.bf16.mxu0 %v1736
    %1967 = vmatpush1.bf16.msra.mxu0 %v1735
    %1968 = vmatprep.subr.bf16.mxu0 %v1740
    %1969 = vmatpush1.bf16.msra.mxu0 %v1739
    %1970 = vmatprep.subr.bf16.mxu0 %v1744
    %1971 = vmatpush1.bf16.msra.mxu0 %v1743
    %1972 = vmatprep.subr.bf16.mxu0 %v1748
    %1973 = vmatpush1.bf16.msra.mxu0 %v1747
    %1974 = vmatprep.subr.bf16.mxu0 %v1752
    %1975 = vmatpush1.bf16.msra.mxu0 %v1751
    %1976 = vmatprep.subr.bf16.mxu0 %v1756
    %1977 = vmatpush1.bf16.msra.mxu0 %v1755
    %1978 = vmatprep.subr.bf16.mxu0 %v1760
    %1979 = vmatpush1.bf16.msra.mxu0 %v1759
    %1980 = vmatprep.subr.bf16.mxu0 %v1764
    %1981 = vmatpush1.bf16.msra.mxu0 %v1763
    %1982 = vmatprep.subr.bf16.mxu0 %v1768
    %1983 = vmatpush1.bf16.msra.mxu0 %v1767
    %1984 = vmatprep.subr.bf16.mxu0 %v1772
    %1985 = vmatpush1.bf16.msra.mxu0 %v1771
    %1986 = vmatprep.subr.bf16.mxu0 %v1776
    %1987 = vmatpush1.bf16.msra.mxu0 %v1775
    %1988 = vmatprep.subr.bf16.mxu0 %v1780
    %1989 = vmatpush1.bf16.msra.mxu0 %v1779
    %1990 = vmatprep.subr.bf16.mxu0 %v1784
    %1991 = vmatpush1.bf16.msra.mxu0 %v1783
    %1992 = vmatprep.subr.bf16.mxu0 %v1788
    %1993 = vmatpush1.bf16.msra.mxu0 %v1787
    %1994 = vmatprep.mubr.bf16.mxu0 %v1961
    %1995 = vmatmul.mubr.bf16.gmra.mrb[0].mxu0 %v782
    %v1996 = vpop.f32.mrb[0].mxu0
    %v1997 = vadd.f32 %v1518, %v1996
    %v1998 = vpop.f32.mrb[0].mxu0
    %v1999 = vadd.f32 %v1522, %v1998
    %v2000 = vpop.f32.mrb[0].mxu0
    %v2001 = vpop.f32.mrb[0].mxu0
    %2002 = vdwg.mxu0
    %2003 = vmatprep.subr.bf16.mxu0 %v1730
    %2004 = vmatpush1.bf16.msra.mxu0 %v1729
    %2005 = vmatprep.subr.bf16.mxu0 %v1734
    %2006 = vmatpush1.bf16.msra.mxu0 %v1733
    %2007 = vmatprep.subr.bf16.mxu0 %v1738
    %2008 = vmatpush1.bf16.msra.mxu0 %v1737
    %2009 = vmatprep.subr.bf16.mxu0 %v1742
    %2010 = vmatpush1.bf16.msra.mxu0 %v1741
    %2011 = vmatprep.subr.bf16.mxu0 %v1746
    %2012 = vmatpush1.bf16.msra.mxu0 %v1745
    %2013 = vmatprep.subr.bf16.mxu0 %v1750
    %2014 = vmatpush1.bf16.msra.mxu0 %v1749
    %2015 = vmatprep.subr.bf16.mxu0 %v1754
    %2016 = vmatpush1.bf16.msra.mxu0 %v1753
    %2017 = vmatprep.subr.bf16.mxu0 %v1758
    %2018 = vmatpush1.bf16.msra.mxu0 %v1757
    %2019 = vmatprep.subr.bf16.mxu0 %v1762
    %2020 = vmatpush1.bf16.msra.mxu0 %v1761
    %2021 = vmatprep.subr.bf16.mxu0 %v1766
    %2022 = vmatpush1.bf16.msra.mxu0 %v1765
    %2023 = vmatprep.subr.bf16.mxu0 %v1770
    %2024 = vmatpush1.bf16.msra.mxu0 %v1769
    %2025 = vmatprep.subr.bf16.mxu0 %v1774
    %2026 = vmatpush1.bf16.msra.mxu0 %v1773
    %2027 = vmatprep.subr.bf16.mxu0 %v1778
    %2028 = vmatpush1.bf16.msra.mxu0 %v1777
    %2029 = vmatprep.subr.bf16.mxu0 %v1782
    %2030 = vmatpush1.bf16.msra.mxu0 %v1781
    %2031 = vmatprep.subr.bf16.mxu0 %v1786
    %2032 = vmatpush1.bf16.msra.mxu0 %v1785
    %2033 = vmatprep.subr.bf16.mxu0 %v1790
    %2034 = vmatpush1.bf16.msra.mxu0 %v1789
    %2035 = vmatprep.mubr.bf16.mxu0 %v1961
    %2036 = vmatmul.mubr.bf16.gmra.mrb[0].mxu0 %v782
    %v2037 = vpop.f32.mrb[0].mxu0
    %v2038 = vadd.f32 %v1526, %v2037
    %v2039 = vpop.f32.mrb[0].mxu0
    %v2040 = vadd.f32 %v1530, %v2039
    %v2041 = vpop.f32.mrb[0].mxu0
    %v2042 = vpop.f32.mrb[0].mxu0
    %2043 = vdwg.mxu0
    %v2044 = vxor.u32 %v1997, 2147483648
    %v2045 = vmul.f32 %v2044, 1.442695
    %v2046 = vpow.pop %v2045
    %v2047 = vadd.f32 %v2046, 1.0
    %v2048 = vrcp.pop %v2047
    %v2049 = vmul.f32 1.0, %v2048
    %v2050 = vxor.u32 %v1999, 2147483648
    %v2051 = vmul.f32 %v2050, 1.442695
    %v2052 = vpow.pop %v2051
    %v2053 = vadd.f32 %v2052, 1.0
    %v2054 = vrcp.pop %v2053
    %v2055 = vmul.f32 1.0, %v2054
    %v2056 = vtanh.pop %v2038
    %v2057 = vxor.u32 %v2040, 2147483648
    %v2058 = vmul.f32 %v2057, 1.442695
    %v2059 = vpow.pop %v2058
    %v2060 = vadd.f32 %v2059, 1.0
    %v2061 = vrcp.pop %v2060
    %v2062 = vmul.f32 1.0, %v2061
    %v2063 = vmul.f32 %v2055, %v1958
    %v2064 = vmul.f32 %v2049, %v2056
    %v2065 = vadd.f32 %v2063, %v2064
    %v2066 = vtanh.pop %v2065
    %v2067 = vmul.f32 %v2062, %v2066
    %v2068 = vpack.c.bf16 %v2067, %v2067
    %2069 = vmatprep.subr.bf16.mxu0 %v1728
    %2070 = vmatpush1.bf16.msra.mxu0 %v1727
    %2071 = vmatprep.subr.bf16.mxu0 %v1732
    %2072 = vmatpush1.bf16.msra.mxu0 %v1731
    %2073 = vmatprep.subr.bf16.mxu0 %v1736
    %2074 = vmatpush1.bf16.msra.mxu0 %v1735
    %2075 = vmatprep.subr.bf16.mxu0 %v1740
    %2076 = vmatpush1.bf16.msra.mxu0 %v1739
    %2077 = vmatprep.subr.bf16.mxu0 %v1744
    %2078 = vmatpush1.bf16.msra.mxu0 %v1743
    %2079 = vmatprep.subr.bf16.mxu0 %v1748
    %2080 = vmatpush1.bf16.msra.mxu0 %v1747
    %2081 = vmatprep.subr.bf16.mxu0 %v1752
    %2082 = vmatpush1.bf16.msra.mxu0 %v1751
    %2083 = vmatprep.subr.bf16.mxu0 %v1756
    %2084 = vmatpush1.bf16.msra.mxu0 %v1755
    %2085 = vmatprep.subr.bf16.mxu0 %v1760
    %2086 = vmatpush1.bf16.msra.mxu0 %v1759
    %2087 = vmatprep.subr.bf16.mxu0 %v1764
    %2088 = vmatpush1.bf16.msra.mxu0 %v1763
    %2089 = vmatprep.subr.bf16.mxu0 %v1768
    %2090 = vmatpush1.bf16.msra.mxu0 %v1767
    %2091 = vmatprep.subr.bf16.mxu0 %v1772
    %2092 = vmatpush1.bf16.msra.mxu0 %v1771
    %2093 = vmatprep.subr.bf16.mxu0 %v1776
    %2094 = vmatpush1.bf16.msra.mxu0 %v1775
    %2095 = vmatprep.subr.bf16.mxu0 %v1780
    %2096 = vmatpush1.bf16.msra.mxu0 %v1779
    %2097 = vmatprep.subr.bf16.mxu0 %v1784
    %2098 = vmatpush1.bf16.msra.mxu0 %v1783
    %2099 = vmatprep.subr.bf16.mxu0 %v1788
    %2100 = vmatpush1.bf16.msra.mxu0 %v1787
    %2101 = vmatprep.mubr.bf16.mxu0 %v2068
    %2102 = vmatmul.mubr.bf16.gmra.mrb[0].mxu0 %v893
    %v2103 = vpop.f32.mrb[0].mxu0
    %v2104 = vadd.f32 %v1518, %v2103
    %v2105 = vpop.f32.mrb[0].mxu0
    %v2106 = vadd.f32 %v1522, %v2105
    %v2107 = vpop.f32.mrb[0].mxu0
    %v2108 = vpop.f32.mrb[0].mxu0
    %2109 = vdwg.mxu0
    %2110 = vmatprep.subr.bf16.mxu0 %v1730
    %2111 = vmatpush1.bf16.msra.mxu0 %v1729
    %2112 = vmatprep.subr.bf16.mxu0 %v1734
    %2113 = vmatpush1.bf16.msra.mxu0 %v1733
    %2114 = vmatprep.subr.bf16.mxu0 %v1738
    %2115 = vmatpush1.bf16.msra.mxu0 %v1737
    %2116 = vmatprep.subr.bf16.mxu0 %v1742
    %2117 = vmatpush1.bf16.msra.mxu0 %v1741
    %2118 = vmatprep.subr.bf16.mxu0 %v1746
    %2119 = vmatpush1.bf16.msra.mxu0 %v1745
    %2120 = vmatprep.subr.bf16.mxu0 %v1750
    %2121 = vmatpush1.bf16.msra.mxu0 %v1749
    %2122 = vmatprep.subr.bf16.mxu0 %v1754
    %2123 = vmatpush1.bf16.msra.mxu0 %v1753
    %2124 = vmatprep.subr.bf16.mxu0 %v1758
    %2125 = vmatpush1.bf16.msra.mxu0 %v1757
    %2126 = vmatprep.subr.bf16.mxu0 %v1762
    %2127 = vmatpush1.bf16.msra.mxu0 %v1761
    %2128 = vmatprep.subr.bf16.mxu0 %v1766
    %2129 = vmatpush1.bf16.msra.mxu0 %v1765
    %2130 = vmatprep.subr.bf16.mxu0 %v1770
    %2131 = vmatpush1.bf16.msra.mxu0 %v1769
    %2132 = vmatprep.subr.bf16.mxu0 %v1774
    %2133 = vmatpush1.bf16.msra.mxu0 %v1773
    %2134 = vmatprep.subr.bf16.mxu0 %v1778
    %2135 = vmatpush1.bf16.msra.mxu0 %v1777
    %2136 = vmatprep.subr.bf16.mxu0 %v1782
    %2137 = vmatpush1.bf16.msra.mxu0 %v1781
    %2138 = vmatprep.subr.bf16.mxu0 %v1786
    %2139 = vmatpush1.bf16.msra.mxu0 %v1785
    %2140 = vmatprep.subr.bf16.mxu0 %v1790
    %2141 = vmatpush1.bf16.msra.mxu0 %v1789
    %2142 = vmatprep.mubr.bf16.mxu0 %v2068
    %2143 = vmatmul.mubr.bf16.gmra.mrb[0].mxu0 %v893
    %v2144 = vpop.f32.mrb[0].mxu0
    %v2145 = vadd.f32 %v1526, %v2144
    %v2146 = vpop.f32.mrb[0].mxu0
    %v2147 = vadd.f32 %v1530, %v2146
    %v2148 = vpop.f32.mrb[0].mxu0
    %v2149 = vpop.f32.mrb[0].mxu0
    %2150 = vdwg.mxu0
    %v2151 = vxor.u32 %v2104, 2147483648
    %v2152 = vmul.f32 %v2151, 1.442695
    %v2153 = vpow.pop %v2152
    %v2154 = vadd.f32 %v2153, 1.0
    %v2155 = vrcp.pop %v2154
    %v2156 = vmul.f32 1.0, %v2155
    %v2157 = vxor.u32 %v2106, 2147483648
    %v2158 = vmul.f32 %v2157, 1.442695
    %v2159 = vpow.pop %v2158
    %v2160 = vadd.f32 %v2159, 1.0
    %v2161 = vrcp.pop %v2160
    %v2162 = vmul.f32 1.0, %v2161
    %v2163 = vtanh.pop %v2145
    %v2164 = vxor.u32 %v2147, 2147483648
    %v2165 = vmul.f32 %v2164, 1.442695
    %v2166 = vpow.pop %v2165
    %v2167 = vadd.f32 %v2166, 1.0
    %v2168 = vrcp.pop %v2167
    %v2169 = vmul.f32 1.0, %v2168
    %v2170 = vmul.f32 %v2162, %v2065
    %v2171 = vmul.f32 %v2156, %v2163
    %v2172 = vadd.f32 %v2170, %v2171
    %v2173 = vtanh.pop %v2172
    %v2174 = vmul.f32 %v2169, %v2173
    %v2175 = vpack.c.bf16 %v2174, %v2174
    %2176 = vmatprep.subr.bf16.mxu0 %v1728
    %2177 = vmatpush1.bf16.msra.mxu0 %v1727
    %2178 = vmatprep.subr.bf16.mxu0 %v1732
    %2179 = vmatpush1.bf16.msra.mxu0 %v1731
    %2180 = vmatprep.subr.bf16.mxu0 %v1736
    %2181 = vmatpush1.bf16.msra.mxu0 %v1735
    %2182 = vmatprep.subr.bf16.mxu0 %v1740
    %2183 = vmatpush1.bf16.msra.mxu0 %v1739
    %2184 = vmatprep.subr.bf16.mxu0 %v1744
    %2185 = vmatpush1.bf16.msra.mxu0 %v1743
    %2186 = vmatprep.subr.bf16.mxu0 %v1748
    %2187 = vmatpush1.bf16.msra.mxu0 %v1747
    %2188 = vmatprep.subr.bf16.mxu0 %v1752
    %2189 = vmatpush1.bf16.msra.mxu0 %v1751
    %2190 = vmatprep.subr.bf16.mxu0 %v1756
    %2191 = vmatpush1.bf16.msra.mxu0 %v1755
    %2192 = vmatprep.subr.bf16.mxu0 %v1760
    %2193 = vmatpush1.bf16.msra.mxu0 %v1759
    %2194 = vmatprep.subr.bf16.mxu0 %v1764
    %2195 = vmatpush1.bf16.msra.mxu0 %v1763
    %2196 = vmatprep.subr.bf16.mxu0 %v1768
    %2197 = vmatpush1.bf16.msra.mxu0 %v1767
    %2198 = vmatprep.subr.bf16.mxu0 %v1772
    %2199 = vmatpush1.bf16.msra.mxu0 %v1771
    %2200 = vmatprep.subr.bf16.mxu0 %v1776
    %2201 = vmatpush1.bf16.msra.mxu0 %v1775
    %2202 = vmatprep.subr.bf16.mxu0 %v1780
    %2203 = vmatpush1.bf16.msra.mxu0 %v1779
    %2204 = vmatprep.subr.bf16.mxu0 %v1784
    %2205 = vmatpush1.bf16.msra.mxu0 %v1783
    %2206 = vmatprep.subr.bf16.mxu0 %v1788
    %2207 = vmatpush1.bf16.msra.mxu0 %v1787
    %2208 = vmatprep.mubr.bf16.mxu0 %v2175
    %2209 = vmatmul.mubr.bf16.gmra.mrb[0].mxu0 %v1004
    %v2210 = vpop.f32.mrb[0].mxu0
    %v2211 = vadd.f32 %v1518, %v2210
    %v2212 = vpop.f32.mrb[0].mxu0
    %v2213 = vadd.f32 %v1522, %v2212
    %v2214 = vpop.f32.mrb[0].mxu0
    %v2215 = vpop.f32.mrb[0].mxu0
    %2216 = vdwg.mxu0
    %2217 = vmatprep.subr.bf16.mxu0 %v1730
    %2218 = vmatpush1.bf16.msra.mxu0 %v1729
    %2219 = vmatprep.subr.bf16.mxu0 %v1734
    %2220 = vmatpush1.bf16.msra.mxu0 %v1733
    %2221 = vmatprep.subr.bf16.mxu0 %v1738
    %2222 = vmatpush1.bf16.msra.mxu0 %v1737
    %2223 = vmatprep.subr.bf16.mxu0 %v1742
    %2224 = vmatpush1.bf16.msra.mxu0 %v1741
    %2225 = vmatprep.subr.bf16.mxu0 %v1746
    %2226 = vmatpush1.bf16.msra.mxu0 %v1745
    %2227 = vmatprep.subr.bf16.mxu0 %v1750
    %2228 = vmatpush1.bf16.msra.mxu0 %v1749
    %2229 = vmatprep.subr.bf16.mxu0 %v1754
    %2230 = vmatpush1.bf16.msra.mxu0 %v1753
    %2231 = vmatprep.subr.bf16.mxu0 %v1758
    %2232 = vmatpush1.bf16.msra.mxu0 %v1757
    %2233 = vmatprep.subr.bf16.mxu0 %v1762
    %2234 = vmatpush1.bf16.msra.mxu0 %v1761
    %2235 = vmatprep.subr.bf16.mxu0 %v1766
    %2236 = vmatpush1.bf16.msra.mxu0 %v1765
    %2237 = vmatprep.subr.bf16.mxu0 %v1770
    %2238 = vmatpush1.bf16.msra.mxu0 %v1769
    %2239 = vmatprep.subr.bf16.mxu0 %v1774
    %2240 = vmatpush1.bf16.msra.mxu0 %v1773
    %2241 = vmatprep.subr.bf16.mxu0 %v1778
    %2242 = vmatpush1.bf16.msra.mxu0 %v1777
    %2243 = vmatprep.subr.bf16.mxu0 %v1782
    %2244 = vmatpush1.bf16.msra.mxu0 %v1781
    %2245 = vmatprep.subr.bf16.mxu0 %v1786
    %2246 = vmatpush1.bf16.msra.mxu0 %v1785
    %2247 = vmatprep.subr.bf16.mxu0 %v1790
    %2248 = vmatpush1.bf16.msra.mxu0 %v1789
    %2249 = vmatprep.mubr.bf16.mxu0 %v2175
    %2250 = vmatmul.mubr.bf16.gmra.mrb[0].mxu0 %v1004
    %v2251 = vpop.f32.mrb[0].mxu0
    %v2252 = vadd.f32 %v1526, %v2251
    %v2253 = vpop.f32.mrb[0].mxu0
    %v2254 = vadd.f32 %v1530, %v2253
    %v2255 = vpop.f32.mrb[0].mxu0
    %v2256 = vpop.f32.mrb[0].mxu0
    %2257 = vdwg.mxu0
    %v2258 = vxor.u32 %v2211, 2147483648
    %v2259 = vmul.f32 %v2258, 1.442695
    %v2260 = vpow.pop %v2259
    %v2261 = vadd.f32 %v2260, 1.0
    %v2262 = vrcp.pop %v2261
    %v2263 = vmul.f32 1.0, %v2262
    %v2264 = vxor.u32 %v2213, 2147483648
    %v2265 = vmul.f32 %v2264, 1.442695
    %v2266 = vpow.pop %v2265
    %v2267 = vadd.f32 %v2266, 1.0
    %v2268 = vrcp.pop %v2267
    %v2269 = vmul.f32 1.0, %v2268
    %v2270 = vtanh.pop %v2252
    %v2271 = vxor.u32 %v2254, 2147483648
    %v2272 = vmul.f32 %v2271, 1.442695
    %v2273 = vpow.pop %v2272
    %v2274 = vadd.f32 %v2273, 1.0
    %v2275 = vrcp.pop %v2274
    %v2276 = vmul.f32 1.0, %v2275
    %v2277 = vmul.f32 %v2269, %v2172
    %v2278 = vmul.f32 %v2263, %v2270
    %v2279 = vadd.f32 %v2277, %v2278
    %v2280 = vtanh.pop %v2279
    %v2281 = vmul.f32 %v2276, %v2280
    %v2282 = vpack.c.bf16 %v2281, %v2281
    %2283 = vmatprep.subr.bf16.mxu0 %v1728
    %2284 = vmatpush1.bf16.msra.mxu0 %v1727
    %2285 = vmatprep.subr.bf16.mxu0 %v1732
    %2286 = vmatpush1.bf16.msra.mxu0 %v1731
    %2287 = vmatprep.subr.bf16.mxu0 %v1736
    %2288 = vmatpush1.bf16.msra.mxu0 %v1735
    %2289 = vmatprep.subr.bf16.mxu0 %v1740
    %2290 = vmatpush1.bf16.msra.mxu0 %v1739
    %2291 = vmatprep.subr.bf16.mxu0 %v1744
    %2292 = vmatpush1.bf16.msra.mxu0 %v1743
    %2293 = vmatprep.subr.bf16.mxu0 %v1748
    %2294 = vmatpush1.bf16.msra.mxu0 %v1747
    %2295 = vmatprep.subr.bf16.mxu0 %v1752
    %2296 = vmatpush1.bf16.msra.mxu0 %v1751
    %2297 = vmatprep.subr.bf16.mxu0 %v1756
    %2298 = vmatpush1.bf16.msra.mxu0 %v1755
    %2299 = vmatprep.subr.bf16.mxu0 %v1760
    %2300 = vmatpush1.bf16.msra.mxu0 %v1759
    %2301 = vmatprep.subr.bf16.mxu0 %v1764
    %2302 = vmatpush1.bf16.msra.mxu0 %v1763
    %2303 = vmatprep.subr.bf16.mxu0 %v1768
    %2304 = vmatpush1.bf16.msra.mxu0 %v1767
    %2305 = vmatprep.subr.bf16.mxu0 %v1772
    %2306 = vmatpush1.bf16.msra.mxu0 %v1771
    %2307 = vmatprep.subr.bf16.mxu0 %v1776
    %2308 = vmatpush1.bf16.msra.mxu0 %v1775
    %2309 = vmatprep.subr.bf16.mxu0 %v1780
    %2310 = vmatpush1.bf16.msra.mxu0 %v1779
    %2311 = vmatprep.subr.bf16.mxu0 %v1784
    %2312 = vmatpush1.bf16.msra.mxu0 %v1783
    %2313 = vmatprep.subr.bf16.mxu0 %v1788
    %2314 = vmatpush1.bf16.msra.mxu0 %v1787
    %2315 = vmatprep.mubr.bf16.mxu0 %v2282
    %2316 = vmatmul.mubr.bf16.gmra.mrb[0].mxu0 %v1115
    %v2317 = vpop.f32.mrb[0].mxu0
    %v2318 = vadd.f32 %v1518, %v2317
    %v2319 = vpop.f32.mrb[0].mxu0
    %v2320 = vadd.f32 %v1522, %v2319
    %v2321 = vpop.f32.mrb[0].mxu0
    %v2322 = vpop.f32.mrb[0].mxu0
    %2323 = vdwg.mxu0
    %2324 = vmatprep.subr.bf16.mxu0 %v1730
    %2325 = vmatpush1.bf16.msra.mxu0 %v1729
    %2326 = vmatprep.subr.bf16.mxu0 %v1734
    %2327 = vmatpush1.bf16.msra.mxu0 %v1733
    %2328 = vmatprep.subr.bf16.mxu0 %v1738
    %2329 = vmatpush1.bf16.msra.mxu0 %v1737
    %2330 = vmatprep.subr.bf16.mxu0 %v1742
    %2331 = vmatpush1.bf16.msra.mxu0 %v1741
    %2332 = vmatprep.subr.bf16.mxu0 %v1746
    %2333 = vmatpush1.bf16.msra.mxu0 %v1745
    %2334 = vmatprep.subr.bf16.mxu0 %v1750
    %2335 = vmatpush1.bf16.msra.mxu0 %v1749
    %2336 = vmatprep.subr.bf16.mxu0 %v1754
    %2337 = vmatpush1.bf16.msra.mxu0 %v1753
    %2338 = vmatprep.subr.bf16.mxu0 %v1758
    %2339 = vmatpush1.bf16.msra.mxu0 %v1757
    %2340 = vmatprep.subr.bf16.mxu0 %v1762
    %2341 = vmatpush1.bf16.msra.mxu0 %v1761
    %2342 = vmatprep.subr.bf16.mxu0 %v1766
    %2343 = vmatpush1.bf16.msra.mxu0 %v1765
    %2344 = vmatprep.subr.bf16.mxu0 %v1770
    %2345 = vmatpush1.bf16.msra.mxu0 %v1769
    %2346 = vmatprep.subr.bf16.mxu0 %v1774
    %2347 = vmatpush1.bf16.msra.mxu0 %v1773
    %2348 = vmatprep.subr.bf16.mxu0 %v1778
    %2349 = vmatpush1.bf16.msra.mxu0 %v1777
    %2350 = vmatprep.subr.bf16.mxu0 %v1782
    %2351 = vmatpush1.bf16.msra.mxu0 %v1781
    %2352 = vmatprep.subr.bf16.mxu0 %v1786
    %2353 = vmatpush1.bf16.msra.mxu0 %v1785
    %2354 = vmatprep.subr.bf16.mxu0 %v1790
    %2355 = vmatpush1.bf16.msra.mxu0 %v1789
    %2356 = vmatprep.mubr.bf16.mxu0 %v2282
    %2357 = vmatmul.mubr.bf16.gmra.mrb[0].mxu0 %v1115
    %v2358 = vpop.f32.mrb[0].mxu0
    %v2359 = vadd.f32 %v1526, %v2358
    %v2360 = vpop.f32.mrb[0].mxu0
    %v2361 = vadd.f32 %v1530, %v2360
    %v2362 = vpop.f32.mrb[0].mxu0
    %v2363 = vpop.f32.mrb[0].mxu0
    %2364 = vdwg.mxu0
    %v2365 = vxor.u32 %v2318, 2147483648
    %v2366 = vmul.f32 %v2365, 1.442695
    %v2367 = vpow.pop %v2366
    %v2368 = vadd.f32 %v2367, 1.0
    %v2369 = vrcp.pop %v2368
    %v2370 = vmul.f32 1.0, %v2369
    %v2371 = vxor.u32 %v2320, 2147483648
    %v2372 = vmul.f32 %v2371, 1.442695
    %v2373 = vpow.pop %v2372
    %v2374 = vadd.f32 %v2373, 1.0
    %v2375 = vrcp.pop %v2374
    %v2376 = vmul.f32 1.0, %v2375
    %v2377 = vtanh.pop %v2359
    %v2378 = vxor.u32 %v2361, 2147483648
    %v2379 = vmul.f32 %v2378, 1.442695
    %v2380 = vpow.pop %v2379
    %v2381 = vadd.f32 %v2380, 1.0
    %v2382 = vrcp.pop %v2381
    %v2383 = vmul.f32 1.0, %v2382
    %v2384 = vmul.f32 %v2376, %v2279
    %v2385 = vmul.f32 %v2370, %v2377
    %v2386 = vadd.f32 %v2384, %v2385
    %v2387 = vtanh.pop %v2386
    %v2388 = vmul.f32 %v2383, %v2387
    %v2389 = vpack.c.bf16 %v2388, %v2388
    %2390 = vmatprep.subr.bf16.mxu0 %v1728
    %2391 = vmatpush1.bf16.msra.mxu0 %v1727
    %2392 = vmatprep.subr.bf16.mxu0 %v1732
    %2393 = vmatpush1.bf16.msra.mxu0 %v1731
    %2394 = vmatprep.subr.bf16.mxu0 %v1736
    %2395 = vmatpush1.bf16.msra.mxu0 %v1735
    %2396 = vmatprep.subr.bf16.mxu0 %v1740
    %2397 = vmatpush1.bf16.msra.mxu0 %v1739
    %2398 = vmatprep.subr.bf16.mxu0 %v1744
    %2399 = vmatpush1.bf16.msra.mxu0 %v1743
    %2400 = vmatprep.subr.bf16.mxu0 %v1748
    %2401 = vmatpush1.bf16.msra.mxu0 %v1747
    %2402 = vmatprep.subr.bf16.mxu0 %v1752
    %2403 = vmatpush1.bf16.msra.mxu0 %v1751
    %2404 = vmatprep.subr.bf16.mxu0 %v1756
    %2405 = vmatpush1.bf16.msra.mxu0 %v1755
    %2406 = vmatprep.subr.bf16.mxu0 %v1760
    %2407 = vmatpush1.bf16.msra.mxu0 %v1759
    %2408 = vmatprep.subr.bf16.mxu0 %v1764
    %2409 = vmatpush1.bf16.msra.mxu0 %v1763
    %2410 = vmatprep.subr.bf16.mxu0 %v1768
    %2411 = vmatpush1.bf16.msra.mxu0 %v1767
    %2412 = vmatprep.subr.bf16.mxu0 %v1772
    %2413 = vmatpush1.bf16.msra.mxu0 %v1771
    %2414 = vmatprep.subr.bf16.mxu0 %v1776
    %2415 = vmatpush1.bf16.msra.mxu0 %v1775
    %2416 = vmatprep.subr.bf16.mxu0 %v1780
    %2417 = vmatpush1.bf16.msra.mxu0 %v1779
    %2418 = vmatprep.subr.bf16.mxu0 %v1784
    %2419 = vmatpush1.bf16.msra.mxu0 %v1783
    %2420 = vmatprep.subr.bf16.mxu0 %v1788
    %2421 = vmatpush1.bf16.msra.mxu0 %v1787
    %2422 = vmatprep.mubr.bf16.mxu0 %v2389
    %2423 = vmatmul.mubr.bf16.gmra.mrb[0].mxu0 %v1226
    %v2424 = vpop.f32.mrb[0].mxu0
    %v2425 = vadd.f32 %v1518, %v2424
    %v2426 = vpop.f32.mrb[0].mxu0
    %v2427 = vadd.f32 %v1522, %v2426
    %v2428 = vpop.f32.mrb[0].mxu0
    %v2429 = vpop.f32.mrb[0].mxu0
    %2430 = vdwg.mxu0
    %2431 = vmatprep.subr.bf16.mxu0 %v1730
    %2432 = vmatpush1.bf16.msra.mxu0 %v1729
    %2433 = vmatprep.subr.bf16.mxu0 %v1734
    %2434 = vmatpush1.bf16.msra.mxu0 %v1733
    %2435 = vmatprep.subr.bf16.mxu0 %v1738
    %2436 = vmatpush1.bf16.msra.mxu0 %v1737
    %2437 = vmatprep.subr.bf16.mxu0 %v1742
    %2438 = vmatpush1.bf16.msra.mxu0 %v1741
    %2439 = vmatprep.subr.bf16.mxu0 %v1746
    %2440 = vmatpush1.bf16.msra.mxu0 %v1745
    %2441 = vmatprep.subr.bf16.mxu0 %v1750
    %2442 = vmatpush1.bf16.msra.mxu0 %v1749
    %2443 = vmatprep.subr.bf16.mxu0 %v1754
    %2444 = vmatpush1.bf16.msra.mxu0 %v1753
    %2445 = vmatprep.subr.bf16.mxu0 %v1758
    %2446 = vmatpush1.bf16.msra.mxu0 %v1757
    %2447 = vmatprep.subr.bf16.mxu0 %v1762
    %2448 = vmatpush1.bf16.msra.mxu0 %v1761
    %2449 = vmatprep.subr.bf16.mxu0 %v1766
    %2450 = vmatpush1.bf16.msra.mxu0 %v1765
    %2451 = vmatprep.subr.bf16.mxu0 %v1770
    %2452 = vmatpush1.bf16.msra.mxu0 %v1769
    %2453 = vmatprep.subr.bf16.mxu0 %v1774
    %2454 = vmatpush1.bf16.msra.mxu0 %v1773
    %2455 = vmatprep.subr.bf16.mxu0 %v1778
    %2456 = vmatpush1.bf16.msra.mxu0 %v1777
    %2457 = vmatprep.subr.bf16.mxu0 %v1782
    %2458 = vmatpush1.bf16.msra.mxu0 %v1781
    %2459 = vmatprep.subr.bf16.mxu0 %v1786
    %2460 = vmatpush1.bf16.msra.mxu0 %v1785
    %2461 = vmatprep.subr.bf16.mxu0 %v1790
    %2462 = vmatpush1.bf16.msra.mxu0 %v1789
    %2463 = vmatprep.mubr.bf16.mxu0 %v2389
    %2464 = vmatmul.mubr.bf16.gmra.mrb[0].mxu0 %v1226
    %v2465 = vpop.f32.mrb[0].mxu0
    %v2466 = vadd.f32 %v1526, %v2465
    %v2467 = vpop.f32.mrb[0].mxu0
    %v2468 = vadd.f32 %v1530, %v2467
    %v2469 = vpop.f32.mrb[0].mxu0
    %v2470 = vpop.f32.mrb[0].mxu0
    %2471 = vdwg.mxu0
    %v2472 = vxor.u32 %v2425, 2147483648
    %v2473 = vmul.f32 %v2472, 1.442695
    %v2474 = vpow.pop %v2473
    %v2475 = vadd.f32 %v2474, 1.0
    %v2476 = vrcp.pop %v2475
    %v2477 = vmul.f32 1.0, %v2476
    %v2478 = vxor.u32 %v2427, 2147483648
    %v2479 = vmul.f32 %v2478, 1.442695
    %v2480 = vpow.pop %v2479
    %v2481 = vadd.f32 %v2480, 1.0
    %v2482 = vrcp.pop %v2481
    %v2483 = vmul.f32 1.0, %v2482
    %v2484 = vtanh.pop %v2466
    %v2485 = vxor.u32 %v2468, 2147483648
    %v2486 = vmul.f32 %v2485, 1.442695
    %v2487 = vpow.pop %v2486
    %v2488 = vadd.f32 %v2487, 1.0
    %v2489 = vrcp.pop %v2488
    %v2490 = vmul.f32 1.0, %v2489
    %v2491 = vmul.f32 %v2483, %v2386
    %v2492 = vmul.f32 %v2477, %v2484
    %v2493 = vadd.f32 %v2491, %v2492
    %v2494 = vtanh.pop %v2493
    %v2495 = vmul.f32 %v2490, %v2494
    %v2496 = vpack.c.bf16 %v2495, %v2495
    %2497 = vmatprep.subr.bf16.mxu0 %v1728
    %2498 = vmatpush1.bf16.msra.mxu0 %v1727
    %2499 = vmatprep.subr.bf16.mxu0 %v1732
    %2500 = vmatpush1.bf16.msra.mxu0 %v1731
    %2501 = vmatprep.subr.bf16.mxu0 %v1736
    %2502 = vmatpush1.bf16.msra.mxu0 %v1735
    %2503 = vmatprep.subr.bf16.mxu0 %v1740
    %2504 = vmatpush1.bf16.msra.mxu0 %v1739
    %2505 = vmatprep.subr.bf16.mxu0 %v1744
    %2506 = vmatpush1.bf16.msra.mxu0 %v1743
    %2507 = vmatprep.subr.bf16.mxu0 %v1748
    %2508 = vmatpush1.bf16.msra.mxu0 %v1747
    %2509 = vmatprep.subr.bf16.mxu0 %v1752
    %2510 = vmatpush1.bf16.msra.mxu0 %v1751
    %2511 = vmatprep.subr.bf16.mxu0 %v1756
    %2512 = vmatpush1.bf16.msra.mxu0 %v1755
    %2513 = vmatprep.subr.bf16.mxu0 %v1760
    %2514 = vmatpush1.bf16.msra.mxu0 %v1759
    %2515 = vmatprep.subr.bf16.mxu0 %v1764
    %2516 = vmatpush1.bf16.msra.mxu0 %v1763
    %2517 = vmatprep.subr.bf16.mxu0 %v1768
    %2518 = vmatpush1.bf16.msra.mxu0 %v1767
    %2519 = vmatprep.subr.bf16.mxu0 %v1772
    %2520 = vmatpush1.bf16.msra.mxu0 %v1771
    %2521 = vmatprep.subr.bf16.mxu0 %v1776
    %2522 = vmatpush1.bf16.msra.mxu0 %v1775
    %2523 = vmatprep.subr.bf16.mxu0 %v1780
    %2524 = vmatpush1.bf16.msra.mxu0 %v1779
    %2525 = vmatprep.subr.bf16.mxu0 %v1784
    %2526 = vmatpush1.bf16.msra.mxu0 %v1783
    %2527 = vmatprep.subr.bf16.mxu0 %v1788
    %2528 = vmatpush1.bf16.msra.mxu0 %v1787
    %2529 = vmatprep.mubr.bf16.mxu0 %v2496
    %2530 = vmatmul.mubr.bf16.gmra.mrb[0].mxu0 %v1337
    %v2531 = vpop.f32.mrb[0].mxu0
    %v2532 = vadd.f32 %v1518, %v2531
    %v2533 = vpop.f32.mrb[0].mxu0
    %v2534 = vadd.f32 %v1522, %v2533
    %v2535 = vpop.f32.mrb[0].mxu0
    %v2536 = vpop.f32.mrb[0].mxu0
    %2537 = vdwg.mxu0
    %2538 = vmatprep.subr.bf16.mxu0 %v1730
    %2539 = vmatpush1.bf16.msra.mxu0 %v1729
    %2540 = vmatprep.subr.bf16.mxu0 %v1734
    %2541 = vmatpush1.bf16.msra.mxu0 %v1733
    %2542 = vmatprep.subr.bf16.mxu0 %v1738
    %2543 = vmatpush1.bf16.msra.mxu0 %v1737
    %2544 = vmatprep.subr.bf16.mxu0 %v1742
    %2545 = vmatpush1.bf16.msra.mxu0 %v1741
    %2546 = vmatprep.subr.bf16.mxu0 %v1746
    %2547 = vmatpush1.bf16.msra.mxu0 %v1745
    %2548 = vmatprep.subr.bf16.mxu0 %v1750
    %2549 = vmatpush1.bf16.msra.mxu0 %v1749
    %2550 = vmatprep.subr.bf16.mxu0 %v1754
    %2551 = vmatpush1.bf16.msra.mxu0 %v1753
    %2552 = vmatprep.subr.bf16.mxu0 %v1758
    %2553 = vmatpush1.bf16.msra.mxu0 %v1757
    %2554 = vmatprep.subr.bf16.mxu0 %v1762
    %2555 = vmatpush1.bf16.msra.mxu0 %v1761
    %2556 = vmatprep.subr.bf16.mxu0 %v1766
    %2557 = vmatpush1.bf16.msra.mxu0 %v1765
    %2558 = vmatprep.subr.bf16.mxu0 %v1770
    %2559 = vmatpush1.bf16.msra.mxu0 %v1769
    %2560 = vmatprep.subr.bf16.mxu0 %v1774
    %2561 = vmatpush1.bf16.msra.mxu0 %v1773
    %2562 = vmatprep.subr.bf16.mxu0 %v1778
    %2563 = vmatpush1.bf16.msra.mxu0 %v1777
    %2564 = vmatprep.subr.bf16.mxu0 %v1782
    %2565 = vmatpush1.bf16.msra.mxu0 %v1781
    %2566 = vmatprep.subr.bf16.mxu0 %v1786
    %2567 = vmatpush1.bf16.msra.mxu0 %v1785
    %2568 = vmatprep.subr.bf16.mxu0 %v1790
    %2569 = vmatpush1.bf16.msra.mxu0 %v1789
    %2570 = vmatprep.mubr.bf16.mxu0 %v2496
    %2571 = vmatmul.mubr.bf16.gmra.mrb[0].mxu0 %v1337
    %v2572 = vpop.f32.mrb[0].mxu0
    %v2573 = vadd.f32 %v1526, %v2572
    %v2574 = vpop.f32.mrb[0].mxu0
    %v2575 = vadd.f32 %v1530, %v2574
    %v2576 = vpop.f32.mrb[0].mxu0
    %v2577 = vpop.f32.mrb[0].mxu0
    %2578 = vdwg.mxu0
    %v2579 = vxor.u32 %v2532, 2147483648
    %v2580 = vmul.f32 %v2579, 1.442695
    %v2581 = vpow.pop %v2580
    %v2582 = vadd.f32 %v2581, 1.0
    %v2583 = vrcp.pop %v2582
    %v2584 = vmul.f32 1.0, %v2583
    %v2585 = vxor.u32 %v2534, 2147483648
    %v2586 = vmul.f32 %v2585, 1.442695
    %v2587 = vpow.pop %v2586
    %v2588 = vadd.f32 %v2587, 1.0
    %v2589 = vrcp.pop %v2588
    %v2590 = vmul.f32 1.0, %v2589
    %v2591 = vtanh.pop %v2573
    %v2592 = vxor.u32 %v2575, 2147483648
    %v2593 = vmul.f32 %v2592, 1.442695
    %v2594 = vpow.pop %v2593
    %v2595 = vadd.f32 %v2594, 1.0
    %v2596 = vrcp.pop %v2595
    %v2597 = vmul.f32 1.0, %v2596
    %v2598 = vmul.f32 %v2590, %v2493
    %v2599 = vmul.f32 %v2584, %v2591
    %v2600 = vadd.f32 %v2598, %v2599
    %v2601 = vtanh.pop %v2600
    %v2602 = vmul.f32 %v2597, %v2601
    %v2603 = vpack.c.bf16 %v2602, %v2602
    %2604 = vmatprep.subr.bf16.mxu0 %v1728
    %2605 = vmatpush1.bf16.msra.mxu0 %v1727
    %2606 = vmatprep.subr.bf16.mxu0 %v1732
    %2607 = vmatpush1.bf16.msra.mxu0 %v1731
    %2608 = vmatprep.subr.bf16.mxu0 %v1736
    %2609 = vmatpush1.bf16.msra.mxu0 %v1735
    %2610 = vmatprep.subr.bf16.mxu0 %v1740
    %2611 = vmatpush1.bf16.msra.mxu0 %v1739
    %2612 = vmatprep.subr.bf16.mxu0 %v1744
    %2613 = vmatpush1.bf16.msra.mxu0 %v1743
    %2614 = vmatprep.subr.bf16.mxu0 %v1748
    %2615 = vmatpush1.bf16.msra.mxu0 %v1747
    %2616 = vmatprep.subr.bf16.mxu0 %v1752
    %2617 = vmatpush1.bf16.msra.mxu0 %v1751
    %2618 = vmatprep.subr.bf16.mxu0 %v1756
    %2619 = vmatpush1.bf16.msra.mxu0 %v1755
    %2620 = vmatprep.subr.bf16.mxu0 %v1760
    %2621 = vmatpush1.bf16.msra.mxu0 %v1759
    %2622 = vmatprep.subr.bf16.mxu0 %v1764
    %2623 = vmatpush1.bf16.msra.mxu0 %v1763
    %2624 = vmatprep.subr.bf16.mxu0 %v1768
    %2625 = vmatpush1.bf16.msra.mxu0 %v1767
    %2626 = vmatprep.subr.bf16.mxu0 %v1772
    %2627 = vmatpush1.bf16.msra.mxu0 %v1771
    %2628 = vmatprep.subr.bf16.mxu0 %v1776
    %2629 = vmatpush1.bf16.msra.mxu0 %v1775
    %2630 = vmatprep.subr.bf16.mxu0 %v1780
    %2631 = vmatpush1.bf16.msra.mxu0 %v1779
    %2632 = vmatprep.subr.bf16.mxu0 %v1784
    %2633 = vmatpush1.bf16.msra.mxu0 %v1783
    %2634 = vmatprep.subr.bf16.mxu0 %v1788
    %2635 = vmatpush1.bf16.msra.mxu0 %v1787
    %2636 = vmatprep.mubr.bf16.mxu0 %v2603
    %2637 = vmatmul.mubr.bf16.gmra.mrb[0].mxu0 %v1513
    %v2638 = vpop.f32.mrb[0].mxu0
    %v2639 = vadd.f32 %v1518, %v2638
    %v2640 = vpop.f32.mrb[0].mxu0
    %v2641 = vadd.f32 %v1522, %v2640
    %v2642 = vpop.f32.mrb[0].mxu0
    %v2643 = vpop.f32.mrb[0].mxu0
    %2644 = vdwg.mxu0
    %2645 = vmatprep.subr.bf16.mxu0 %v1730
    %2646 = vmatpush1.bf16.msra.mxu0 %v1729
    %2647 = vmatprep.subr.bf16.mxu0 %v1734
    %2648 = vmatpush1.bf16.msra.mxu0 %v1733
    %2649 = vmatprep.subr.bf16.mxu0 %v1738
    %2650 = vmatpush1.bf16.msra.mxu0 %v1737
    %2651 = vmatprep.subr.bf16.mxu0 %v1742
    %2652 = vmatpush1.bf16.msra.mxu0 %v1741
    %2653 = vmatprep.subr.bf16.mxu0 %v1746
    %2654 = vmatpush1.bf16.msra.mxu0 %v1745
    %2655 = vmatprep.subr.bf16.mxu0 %v1750
    %2656 = vmatpush1.bf16.msra.mxu0 %v1749
    %2657 = vmatprep.subr.bf16.mxu0 %v1754
    %2658 = vmatpush1.bf16.msra.mxu0 %v1753
    %2659 = vmatprep.subr.bf16.mxu0 %v1758
    %2660 = vmatpush1.bf16.msra.mxu0 %v1757
    %2661 = vmatprep.subr.bf16.mxu0 %v1762
    %2662 = vmatpush1.bf16.msra.mxu0 %v1761
    %2663 = vmatprep.subr.bf16.mxu0 %v1766
    %2664 = vmatpush1.bf16.msra.mxu0 %v1765
    %2665 = vmatprep.subr.bf16.mxu0 %v1770
    %2666 = vmatpush1.bf16.msra.mxu0 %v1769
    %2667 = vmatprep.subr.bf16.mxu0 %v1774
    %2668 = vmatpush1.bf16.msra.mxu0 %v1773
    %2669 = vmatprep.subr.bf16.mxu0 %v1778
    %2670 = vmatpush1.bf16.msra.mxu0 %v1777
    %2671 = vmatprep.subr.bf16.mxu0 %v1782
    %2672 = vmatpush1.bf16.msra.mxu0 %v1781
    %2673 = vmatprep.subr.bf16.mxu0 %v1786
    %2674 = vmatpush1.bf16.msra.mxu0 %v1785
    %2675 = vmatprep.subr.bf16.mxu0 %v1790
    %2676 = vmatpush1.bf16.msra.mxu0 %v1789
    %2677 = vmatprep.mubr.bf16.mxu0 %v2603
    %2678 = vmatmul.mubr.bf16.gmra.mrb[0].mxu0 %v1513
    %v2679 = vpop.f32.mrb[0].mxu0
    %v2680 = vadd.f32 %v1526, %v2679
    %v2681 = vpop.f32.mrb[0].mxu0
    %v2682 = vadd.f32 %v1530, %v2681
    %v2683 = vpop.f32.mrb[0].mxu0
    %v2684 = vpop.f32.mrb[0].mxu0
    %2685 = vdwg.mxu0
    %v2686 = vxor.u32 %v2639, 2147483648
    %v2687 = vmul.f32 %v2686, 1.442695
    %v2688 = vpow.pop %v2687
    %v2689 = vadd.f32 %v2688, 1.0
    %v2690 = vrcp.pop %v2689
    %v2691 = vmul.f32 1.0, %v2690
    %v2692 = vxor.u32 %v2641, 2147483648
    %v2693 = vmul.f32 %v2692, 1.442695
    %v2694 = vpow.pop %v2693
    %v2695 = vadd.f32 %v2694, 1.0
    %v2696 = vrcp.pop %v2695
    %v2697 = vmul.f32 1.0, %v2696
    %v2698 = vtanh.pop %v2680
    %v2699 = vxor.u32 %v2682, 2147483648
    %v2700 = vmul.f32 %v2699, 1.442695
    %v2701 = vpow.pop %v2700
    %v2702 = vadd.f32 %v2701, 1.0
    %v2703 = vrcp.pop %v2702
    %v2704 = vmul.f32 1.0, %v2703
    %v2705 = vmul.f32 %v2697, %v2600
    %v2706 = vmul.f32 %v2691, %v2698
    %v2707 = vadd.f32 %v2705, %v2706
    %v2708 = vtanh.pop %v2707
    %v2709 = vmul.f32 %v2704, %v2708
    %v2710 = vld [vmem:[%s10] sm:$0xff]
    %v2711 = vmul.f32 %v2709, %v2710
    %v2712 = vld [vmem:[#allocation7] sm:$0xff]
    %v2713 = vld [vmem:[#allocation7 + $0x8] sm:$0xff]
    %v2714 = vld [vmem:[#allocation7 + $0x10] sm:$0xff]
    %v2715 = vld [vmem:[#allocation7 + $0x18] sm:$0xff]
    %v2716 = vld [vmem:[#allocation7 + $0x20] sm:$0xff]
    %v2717 = vld [vmem:[#allocation7 + $0x28] sm:$0xff]
    %v2718 = vld [vmem:[#allocation7 + $0x30] sm:$0xff]
    %v2719 = vld [vmem:[#allocation7 + $0x38] sm:$0xff]
    %v2720 = vld [vmem:[#allocation7 + $0x40] sm:$0xff]
    %v2721 = vld [vmem:[#allocation7 + $0x48] sm:$0xff]
    %v2722 = vld [vmem:[#allocation7 + $0x50] sm:$0xff]
    %v2723 = vld [vmem:[#allocation7 + $0x58] sm:$0xff]
    %v2724 = vld [vmem:[#allocation7 + $0x60] sm:$0xff]
    %v2725 = vld [vmem:[#allocation7 + $0x68] sm:$0xff]
    %v2726 = vld [vmem:[#allocation7 + $0x70] sm:$0xff]
    %v2727 = vld [vmem:[#allocation7 + $0x78] sm:$0xff]
    %v2728 = vld [vmem:[%s7] sm:$0x1]
    %v2730 = vlaneseq
    %v2731 = vshrl.u32 %v2730, 7
    %v2732 = vsub.s32 0, %v2731
    %v2733 = vrot.slane %v2728, %v2732
    %2735 = vmatprep.subr.mxu0 0.0
    %2736 = vmatpush1.msra.mxu0 %v2712
    %2737 = vmatprep.subr.mxu0 0.0
    %2738 = vmatpush1.msra.mxu0 %v2713
    %2739 = vmatprep.subr.mxu0 0.0
    %2740 = vmatpush1.msra.mxu0 %v2714
    %2741 = vmatprep.subr.mxu0 0.0
    %2742 = vmatpush1.msra.mxu0 %v2715
    %2743 = vmatprep.subr.mxu0 0.0
    %2744 = vmatpush1.msra.mxu0 %v2716
    %2745 = vmatprep.subr.mxu0 0.0
    %2746 = vmatpush1.msra.mxu0 %v2717
    %2747 = vmatprep.subr.mxu0 0.0
    %2748 = vmatpush1.msra.mxu0 %v2718
    %2749 = vmatprep.subr.mxu0 0.0
    %2750 = vmatpush1.msra.mxu0 %v2719
    %2751 = vmatprep.subr.mxu0 0.0
    %2752 = vmatpush1.msra.mxu0 %v2720
    %2753 = vmatprep.subr.mxu0 0.0
    %2754 = vmatpush1.msra.mxu0 %v2721
    %2755 = vmatprep.subr.mxu0 0.0
    %2756 = vmatpush1.msra.mxu0 %v2722
    %2757 = vmatprep.subr.mxu0 0.0
    %2758 = vmatpush1.msra.mxu0 %v2723
    %2759 = vmatprep.subr.mxu0 0.0
    %2760 = vmatpush1.msra.mxu0 %v2724
    %2761 = vmatprep.subr.mxu0 0.0
    %2762 = vmatpush1.msra.mxu0 %v2725
    %2763 = vmatprep.subr.mxu0 0.0
    %2764 = vmatpush1.msra.mxu0 %v2726
    %2765 = vmatprep.subr.mxu0 0.0
    %2766 = vmatpush1.msra.mxu0 %v2727
    %2767 = vmatprep.subr.mxu0 0.0
    %2768 = vmatpush1.msra.mxu0 0.0
    %2769 = vmatprep.subr.mxu0 0.0
    %2770 = vmatpush1.msra.mxu0 0.0
    %2771 = vmatprep.subr.mxu0 0.0
    %2772 = vmatpush1.msra.mxu0 0.0
    %2773 = vmatprep.subr.mxu0 0.0
    %2774 = vmatpush1.msra.mxu0 0.0
    %2775 = vmatprep.subr.mxu0 0.0
    %2776 = vmatpush1.msra.mxu0 0.0
    %2777 = vmatprep.subr.mxu0 0.0
    %2778 = vmatpush1.msra.mxu0 0.0
    %2779 = vmatprep.subr.mxu0 0.0
    %2780 = vmatpush1.msra.mxu0 0.0
    %2781 = vmatprep.subr.mxu0 0.0
    %2782 = vmatpush1.msra.mxu0 0.0
    %2783 = vmatprep.subr.mxu0 0.0
    %2784 = vmatpush1.msra.mxu0 0.0
    %2785 = vmatprep.subr.mxu0 0.0
    %2786 = vmatpush1.msra.mxu0 0.0
    %2787 = vmatprep.subr.mxu0 0.0
    %2788 = vmatpush1.msra.mxu0 0.0
    %2789 = vmatprep.subr.mxu0 0.0
    %2790 = vmatpush1.msra.mxu0 0.0
    %2791 = vmatprep.subr.mxu0 0.0
    %2792 = vmatpush1.msra.mxu0 0.0
    %2793 = vmatprep.subr.mxu0 0.0
    %2794 = vmatpush1.msra.mxu0 0.0
    %2795 = vmatprep.subr.mxu0 0.0
    %2796 = vmatpush1.msra.mxu0 0.0
    %2797 = vmatprep.subr.mxu0 0.0
    %2798 = vmatpush1.msra.mxu0 0.0
    %2799 = vmatprep.mubr.f32.mxu0 0.0
    %2800 = vmatmul.mubr.f32.gmra.mrb[0].mxu0 %v2711
    %v2801 = vpop.f32.mrb[0].mxu0
    %v2802 = vadd.f32 %v2733, %v2801
    %v2803 = vpop.f32.mrb[0].mxu0
    %2804 = vdwg.mxu0
    %2805 = vmax.xlane.f32.xlu0 %v2802
    %v2806 = vpop.xlane.xlu0 %2805
    %v2807 = vsub.f32 %v2802, %v2806
    %v2808 = vmul.f32 %v2807, 1.442695
    %v2809 = vpow.pop %v2808
    %2810 = vadd.xlane.f32.xlu0 %v2809
    %v2811 = vpop.xlane.xlu0 %2810
    %v2812 = vrcp.pop %v2811
    %v2813 = vmul.f32 %v2809, %v2812
    %2814 = vst [vmem:[#allocation8] sm:$0xff] %v2813
    // Predicated region
    $region58: #{tpu_custom_call.1} parent=1 // pred_check
      _
    $region59: #{tpu_custom_call.1} parent=1 // pred_check_branch
      %2816 = sbr.rel (0) target = $region61
    $region60: #{tpu_custom_call.1} parent=1 // pred_region
      %s2818 = ssub.s32 128, 128
      %2819 = vsyncadd [#allocation4], %s2818
      %s2821 = sshll.u32 [#allocation8], 4
      %s2822 = int_to_ptr.vmem [resolvable:$true] %s2821
      %2824 = dma.vmem_to_hbm [thread:$0]  %s2822, 128, %s11, [#allocation4]
    $region61: #{tpu_custom_call.1} parent=1 // pred_fallthru
      _
    // Predicated region
    $region62: #{tpu_custom_call.1} parent=1 // pred_check
      _
    $region63: #{tpu_custom_call.1} parent=1 // pred_check_branch
      %2826 = sbr.rel (0) target = $region65
    $region64: #{tpu_custom_call.1} parent=1 // pred_region
      %2827 = dma.done [#allocation4], 128
    $region65: #{tpu_custom_call.1} parent=1 // pred_fallthru
      _
    %2828 = vsyncpa [#allocation3], 1
    %2829 = vsyncpa [#allocation6], 1
    %2830 = vsyncpa [#allocation4], 1

</llo_original>
